<compile_context>
chip_gen: v6e
topology: v6e:2x2x1
jax: 0.10.0
libtpu: 0.0.40
codegen_flags: <defaults>
</compile_context>

<pallas_src>
import jax
import jax.numpy as jnp
from jax import lax
from jax.experimental import pallas as pl
from jax.experimental.pallas import tpu as pltpu

# ---------------- config (small synthetic sizes) ----------------
B = 2               # real batch
BP = 8              # batch padded to one full sublane group
T = 8               # sequence length
NONSEQ_IN = 16      # config.nonseq_input_dim
NONSEQ_HID = 32     # config.nonseq_hidden_dim
NONSEQ_OUT = 16     # config.nonseq_output_dim
SEQ_IN = 16         # config.seq_input_dim
SEQ_HID = 16        # config.seq_hidden_dim
MIX_HID = 32        # config.mix_hidden_dim
MIX_OUT = 2         # config.mix_output_dim
DROPOUT_RATE = 0.0  # F.dropout(p=0) == identity (deterministic)
# TODO(synk): dropout with p>0 (training mode) would need pltpu.prng_*; with
# dropout_rate=0.0 the PyTorch forward is exactly reproduced.

H = SEQ_HID

# ---------------- weight slab layout ([W_ROWS, W_LANES] f32) -----------------
# All row offsets are multiples of 8 (sublane-aligned).
W_LANES = 4 * H                     # 64 lanes, widest weight (wih.T)
R_WIH = 0                           # wih.T                [SEQ_IN, 4H]
R_WHH = R_WIH + SEQ_IN              # per-gate whh.T       [4*H, H] (i,f,g,o stacked)
R_WM = R_WHH + 4 * H                # folded merge weight  [NONSEQ_IN + H, MIX_HID]
R_WC = R_WM + NONSEQ_IN + H         # classifier wc.T      [MIX_HID, MIX_OUT]
R_BG = R_WC + MIX_HID               # b_ih + b_hh          [4H]
R_BM = R_BG + 8                     # folded merge bias    [MIX_HID]
R_BC = R_BM + 8                     # classifier bias      [MIX_OUT]
W_ROWS = R_BC + 8                   # = 168

# ---------------- activation slab layout ([ACT_ROWS, ACT_LANES]) -------------
ACT_LANES = 16
R_SEQ = 0                           # time-major seq input [T*BP, SEQ_IN]
R_NS = R_SEQ + T * BP               # non-seq input        [BP, NONSEQ_IN]
R_Y = R_NS + BP                     # labels               [BP, MIX_OUT]
ACT_ROWS = R_Y + BP                 # = 80

# ---------------- output slab ([BP, 128] f32) --------------------------------
OUT_LANES = 128
C_PROB = MIX_HID                    # lanes 32:34  softmax probabilities
C_PRED = MIX_HID + MIX_OUT          # lane  34     argmax (as float)
C_LOSS = C_PRED + 1                 # lane  35     BCE loss


def _tree_sum(vals):
    """Balanced-tree sum of a list of same-shaped arrays (short dep chains)."""
    vals = list(vals)
    while len(vals) > 1:
        nxt = [vals[i] + vals[i + 1] for i in range(0, len(vals) - 1, 2)]
        if len(vals) % 2:
            nxt.append(vals[-1])
        vals = nxt
    return vals[0]


def mix_model_kernel(act_ref, w_ref, out_ref):
    f32 = jnp.float32

    # ---- activations (single slab -> one input DMA) ----
    seq_flat = act_ref[R_SEQ:R_SEQ + T * BP, 0:SEQ_IN]    # [T*BP, SEQ_IN], time-major
    x_ns = act_ref[R_NS:R_NS + BP, 0:NONSEQ_IN]           # [BP, NONSEQ_IN]
    y = act_ref[R_Y:R_Y + BP, 0:MIX_OUT]                  # [BP, MIX_OUT]

    # ---- weights (single slab, pre-transposed / pre-folded at pack time) ----
    wih = w_ref[R_WIH:R_WIH + SEQ_IN, 0:4 * H]            # [SEQ_IN, 4H]
    wm = w_ref[R_WM:R_WM + NONSEQ_IN + H, 0:MIX_HID]      # [32, MIX_HID]
    wc = w_ref[R_WC:R_WC + MIX_HID, 0:MIX_OUT]            # [MIX_HID, MIX_OUT]
    bg = w_ref[R_BG:R_BG + 1, 0:4 * H]                    # [1, 4H] (b_ih + b_hh)
    bm = w_ref[R_BM:R_BM + 1, 0:MIX_HID]                  # [1, MIX_HID] (folded)
    bc = w_ref[R_BC:R_BC + 1, 0:MIX_OUT]                  # [1, MIX_OUT]

    # Recurrent-weight rows, per gate, sublane-broadcast ONCE (reused by all T
    # steps of the VPU recurrence). g order: i, f, g, o (torch gate order).
    w_rows = [
        [jnp.broadcast_to(
            w_ref[R_WHH + g * H + k:R_WHH + g * H + k + 1, 0:H], (BP, H))
         for k in range(H)]
        for g in range(4)
    ]

    # ---- LSTM input projection hoisted out of the recurrence (one MXU dot) ----
    x_proj = jnp.dot(seq_flat, wih, preferred_element_type=f32) + bg   # [T*BP, 4H]
    # Split per gate ONCE, so per-step reads are 8-aligned sublane slices.
    xp = [x_proj[:, g * H:(g + 1) * H] for g in range(4)]              # 4 x [T*BP, H]

    def sigm(v):                               # sigmoid via a single EUP tanh
        return 0.5 * jnp.tanh(0.5 * v) + 0.5

    # ---- recurrence on the VPU: gates = x_proj_t + h @ Whh, per-gate MACs ----
    h = jnp.zeros((BP, H), f32)
    c = jnp.zeros((BP, H), f32)
    for t in range(T):                         # static full unroll (T = 8)
        r0 = t * BP
        acc = [[xp[g][r0:r0 + BP, :]] for g in range(4)]
        for k in range(H):
            hk = jnp.broadcast_to(h[:, k:k + 1], (BP, H))   # lane-broadcast h[:, k]
            for g in range(4):
                acc[g].append(hk * w_rows[g][k])
        gi = _tree_sum(acc[0])
        gf = _tree_sum(acc[1])
        gg = _tree_sum(acc[2])
        go = _tree_sum(acc[3])
        i_g = sigm(gi)
        f_g = sigm(gf)
        o_g = sigm(go)
        g_g = jnp.tanh(gg)
        c = f_g * c + i_g * g_g
        h = o_g * jnp.tanh(c)
    seq_rep = h                                # == h_n.squeeze(0)

    # ---- merge layer (NonSeq MLP folded into wm) + dropout(p=0) + classifier ----
    merged = jnp.concatenate([x_ns, seq_rep], axis=1)                  # [BP, 32]
    m_rep = jnp.dot(merged, wm, preferred_element_type=f32) + bm       # [BP, MIX_HID]
    logits = jnp.dot(m_rep, wc, preferred_element_type=f32) + bc       # [BP, MIX_OUT]

    # ---- softmax over last dim (exact divide -> matches torch) ----
    z = logits - jnp.max(logits, axis=-1, keepdims=True)
    ez = jnp.exp(z)
    prob = ez / jnp.sum(ez, axis=-1, keepdims=True)

    # ---- BCE-with-logits on raw logits, mean over the real B rows only ----
    bce = (jnp.maximum(logits, 0.0) - logits * y
           + jnp.log1p(jnp.exp(-jnp.abs(logits))))
    row_ids = lax.broadcasted_iota(jnp.int32, (BP, MIX_OUT), 0)
    loss = jnp.sum(jnp.where(row_ids < B, bce, 0.0), keepdims=True)    # [1, 1]
    loss = loss * (1.0 / (B * MIX_OUT))

    # ---- argmax (first max index) ----
    col_ids = lax.broadcasted_iota(jnp.int32, (BP, MIX_OUT), 1)
    is_max = prob == jnp.max(prob, axis=-1, keepdims=True)
    pred = jnp.min(jnp.where(is_max, col_ids, MIX_OUT), axis=-1, keepdims=True)

    # ---- single lane-dense [BP, 128] output, composed in registers, one store ----
    out = jnp.concatenate([
        m_rep,                                          # lanes 0:32
        prob,                                           # lanes 32:34
        pred.astype(f32),                               # lane 34
        jnp.broadcast_to(loss, (BP, 1)),                # lane 35
        jnp.zeros((BP, OUT_LANES - (C_LOSS + 1)), f32),  # pad to 128 lanes
    ], axis=1)
    out_ref[...] = out


@jax.jit
def mix_model_forward(non_seq_x, seq_x, y, w_slab):
    """seq_x is batch-first [B, T, SEQ_IN], as in torch (batch_first=True)."""
    # Pack all activations into ONE slab (single input DMA). The sequence is
    # made time-major and batch is padded to BP so per-step kernel reads are
    # contiguous, 8-aligned sublane slices. All of this fuses under jit.
    seq_tm = jnp.transpose(seq_x, (1, 0, 2))                      # [T, B, I]
    seq_tm = jnp.pad(seq_tm, ((0, 0), (0, BP - B), (0, 0)))       # [T, BP, I]
    act = jnp.zeros((ACT_ROWS, ACT_LANES), jnp.float32)
    act = act.at[R_SEQ:R_SEQ + T * BP, 0:SEQ_IN].set(seq_tm.reshape(T * BP, SEQ_IN))
    act = act.at[R_NS:R_NS + B, 0:NONSEQ_IN].set(non_seq_x)
    act = act.at[R_Y:R_Y + B, 0:MIX_OUT].set(y)

    vmem = pl.BlockSpec(memory_space=pltpu.MemorySpace.VMEM)
    out = pl.pallas_call(
        mix_model_kernel,
        out_shape=jax.ShapeDtypeStruct((BP, OUT_LANES), jnp.float32),
        in_specs=[vmem, vmem],
        out_specs=pl.BlockSpec(memory_space=pltpu.MemorySpace.VMEM),
    )(act, w_slab)

    m_rep = out[0:B, 0:MIX_HID]
    prob = out[0:B, C_PROB:C_PROB + MIX_OUT]
    pred = out[0:B, C_PRED].astype(jnp.int32)
    loss = out[0, C_LOSS]
    return loss, prob, pred, m_rep


# ---------------- deterministic parameter init (matches init_weights) --------
def xavier_uniform_t(key, fan_in, fan_out):
    # torch xavier_uniform_ on a [out, in] weight, stored pre-transposed
    # [in, out] (the xavier bound is symmetric in fan_in/fan_out).
    a = (6.0 / (fan_in + fan_out)) ** 0.5
    return jax.random.uniform(key, (fan_in, fan_out), jnp.float32, -a, a)


def make_raw_params(key):
    ks = jax.random.split(key, 6)
    return dict(
        # NonSeqModel (num_mlp=2, no non-linearity): Linear(in,hid), Linear(hid,out)
        w1t=xavier_uniform_t(ks[0], NONSEQ_IN, NONSEQ_HID),
        w2t=xavier_uniform_t(ks[1], NONSEQ_HID, NONSEQ_OUT),
        # nn.LSTM(seq_input_dim, seq_hidden_dim), gate order i,f,g,o
        wiht=xavier_uniform_t(ks[2], SEQ_IN, 4 * SEQ_HID),
        whht=xavier_uniform_t(ks[3], SEQ_HID, 4 * SEQ_HID),
        # merge_layer, classifier
        wmt=xavier_uniform_t(ks[4], NONSEQ_OUT + SEQ_HID, MIX_HID),
        wct=xavier_uniform_t(ks[5], MIX_HID, MIX_OUT),
        # init_weights: all 1-D params (biases) zero-initialized
        b1=jnp.zeros((NONSEQ_HID,), jnp.float32),
        b2=jnp.zeros((NONSEQ_OUT,), jnp.float32),
        b_ih=jnp.zeros((4 * SEQ_HID,), jnp.float32),
        b_hh=jnp.zeros((4 * SEQ_HID,), jnp.float32),
        bm=jnp.zeros((MIX_HID,), jnp.float32),
        bc=jnp.zeros((MIX_OUT,), jnp.float32),
    )


def pack_params(raw):
    """Fold (ReLU-less MLP -> merge layer, LSTM biases) and pack everything into
    one lane-aligned [W_ROWS, W_LANES] f32 slab (one-time cost, outside kernel)."""
    w12 = raw['w1t'] @ raw['w2t']                       # [NONSEQ_IN, NONSEQ_OUT]
    b12 = raw['b1'] @ raw['w2t'] + raw['b2']            # [NONSEQ_OUT]
    wmn = raw['wmt'][:NONSEQ_OUT]                       # non-seq half of merge.T
    wms = raw['wmt'][NONSEQ_OUT:]                       # seq half of merge.T
    w_ns = w12 @ wmn                                    # [NONSEQ_IN, MIX_HID]
    bm_f = b12 @ wmn + raw['bm']                        # folded merge bias
    bg = raw['b_ih'] + raw['b_hh']                      # folded LSTM bias

    slab = jnp.zeros((W_ROWS, W_LANES), jnp.float32)
    slab = slab.at[R_WIH:R_WIH + SEQ_IN, 0:4 * H].set(raw['wiht'])
    for g in range(4):                                  # per-gate recurrent weights
        slab = slab.at[R_WHH + g * H:R_WHH + (g + 1) * H, 0:H].set(
            raw['whht'][:, g * H:(g + 1) * H])
    slab = slab.at[R_WM:R_WM + NONSEQ_IN, 0:MIX_HID].set(w_ns)
    slab = slab.at[R_WM + NONSEQ_IN:R_WM + NONSEQ_IN + H, 0:MIX_HID].set(wms)
    slab = slab.at[R_WC:R_WC + MIX_HID, 0:MIX_OUT].set(raw['wct'])
    slab = slab.at[R_BG, 0:4 * H].set(bg)
    slab = slab.at[R_BM, 0:MIX_HID].set(bm_f)
    slab = slab.at[R_BC, 0:MIX_OUT].set(raw['bc'])
    return slab


def reference_forward(raw, non_seq_x, seq_x, y):
    """Pure-JAX, unfused reference of the torch MixModel forward (LSTM + BIN loss)."""
    ns = non_seq_x @ raw['w1t'] + raw['b1']
    ns = ns @ raw['w2t'] + raw['b2']
    h = jnp.zeros((B, SEQ_HID), jnp.float32)
    c = jnp.zeros((B, SEQ_HID), jnp.float32)
    for t in range(T):
        g = (seq_x[:, t, :] @ raw['wiht'] + raw['b_ih']
             + h @ raw['whht'] + raw['b_hh'])
        i = jax.nn.sigmoid(g[:, 0:SEQ_HID])
        f = jax.nn.sigmoid(g[:, SEQ_HID:2 * SEQ_HID])
        gg = jnp.tanh(g[:, 2 * SEQ_HID:3 * SEQ_HID])
        o = jax.nn.sigmoid(g[:, 3 * SEQ_HID:4 * SEQ_HID])
        c = f * c + i * gg
        h = o * jnp.tanh(c)
    m_rep = jnp.concatenate([ns, h], axis=1) @ raw['wmt'] + raw['bm']
    logits = m_rep @ raw['wct'] + raw['bc']
    prob = jax.nn.softmax(logits, axis=-1)
    bce = (jnp.maximum(logits, 0.0) - logits * y
           + jnp.log1p(jnp.exp(-jnp.abs(logits))))
    return jnp.mean(bce), prob, m_rep


if __name__ == "__main__":
    key = jax.random.PRNGKey(0)
    k_p, k_ns, k_s, k_y = jax.random.split(key, 4)
    raw = make_raw_params(k_p)
    w_slab = pack_params(raw)

    non_seq_x = jax.random.normal(k_ns, (B, NONSEQ_IN), jnp.float32)
    seq_x = jax.random.normal(k_s, (B, T, SEQ_IN), jnp.float32)      # batch-first
    y = jax.random.bernoulli(k_y, 0.5, (B, MIX_OUT)).astype(jnp.float32)

    loss, prob, pred, m_rep = mix_model_forward(non_seq_x, seq_x, y, w_slab)
    jax.block_until_ready((loss, prob, pred, m_rep))

    # shape / sanity checks
    assert prob.shape == (B, MIX_OUT) and pred.shape == (B,) and m_rep.shape == (B, MIX_HID)
    assert bool(jnp.isfinite(loss)) and bool(jnp.all(jnp.isfinite(prob)))
    assert bool(jnp.all(jnp.abs(jnp.sum(prob, axis=-1) - 1.0) < 1e-5))

    # numerical check against the unfused pure-JAX reference (last-ulp fp
    # differences from the pack-time folds are expected; tolerance 1e-4)
    ref_loss, ref_prob, ref_mrep = reference_forward(raw, non_seq_x, seq_x, y)
    assert bool(jnp.allclose(loss, ref_loss, atol=1e-4, rtol=1e-4))
    assert bool(jnp.allclose(prob, ref_prob, atol=1e-4, rtol=1e-4))
    assert bool(jnp.allclose(m_rep, ref_mrep, atol=1e-4, rtol=1e-4))
    print("KERNEL_OK")
</pallas_src>

<mosaic_0001>
module attributes {stable_mosaic.version = 11 : i64} {
  func.func @mix_model_kernel(%arg0: memref<80x16xf32, #tpu.memory_space<vmem>>, %arg1: memref<168x64xf32, #tpu.memory_space<vmem>>, %arg2: memref<8x128xf32, #tpu.memory_space<vmem>>) attributes {dimension_semantics = [], scalar_prefetch = 0 : i64, scratch_operands = 0 : i64, tpu.core_type = #tpu.core_type<tc>} {
    %c0 = arith.constant 0 : index
    %c0_0 = arith.constant 0 : index
    %0 = vector.load %arg0[%c0, %c0_0] : memref<80x16xf32, #tpu.memory_space<vmem>>, vector<64x16xf32>
    %c64 = arith.constant 64 : index
    %c0_1 = arith.constant 0 : index
    %1 = vector.load %arg0[%c64, %c0_1] : memref<80x16xf32, #tpu.memory_space<vmem>>, vector<8x16xf32>
    %c72 = arith.constant 72 : index
    %c0_2 = arith.constant 0 : index
    %2 = vector.load %arg0[%c72, %c0_2] : memref<80x16xf32, #tpu.memory_space<vmem>>, vector<8x2xf32>
    %c0_3 = arith.constant 0 : index
    %c0_4 = arith.constant 0 : index
    %3 = vector.load %arg1[%c0_3, %c0_4] : memref<168x64xf32, #tpu.memory_space<vmem>>, vector<16x64xf32>
    %c80 = arith.constant 80 : index
    %c0_5 = arith.constant 0 : index
    %4 = vector.load %arg1[%c80, %c0_5] : memref<168x64xf32, #tpu.memory_space<vmem>>, vector<32x32xf32>
    %c112 = arith.constant 112 : index
    %c0_6 = arith.constant 0 : index
    %5 = vector.load %arg1[%c112, %c0_6] : memref<168x64xf32, #tpu.memory_space<vmem>>, vector<32x2xf32>
    %c144 = arith.constant 144 : index
    %c0_7 = arith.constant 0 : index
    %6 = vector.load %arg1[%c144, %c0_7] : memref<168x64xf32, #tpu.memory_space<vmem>>, vector<1x64xf32>
    %c152 = arith.constant 152 : index
    %c0_8 = arith.constant 0 : index
    %7 = vector.load %arg1[%c152, %c0_8] : memref<168x64xf32, #tpu.memory_space<vmem>>, vector<1x32xf32>
    %c160 = arith.constant 160 : index
    %c0_9 = arith.constant 0 : index
    %8 = vector.load %arg1[%c160, %c0_9] : memref<168x64xf32, #tpu.memory_space<vmem>>, vector<1x2xf32>
    %c16 = arith.constant 16 : index
    %c0_10 = arith.constant 0 : index
    %9 = vector.load %arg1[%c16, %c0_10] : memref<168x64xf32, #tpu.memory_space<vmem>>, vector<1x16xf32>
    %10 = vector.shape_cast %9 : vector<1x16xf32> to vector<1x16xf32>
    %11 = vector.broadcast %10 : vector<1x16xf32> to vector<8x16xf32>
    %c17 = arith.constant 17 : index
    %c0_11 = arith.constant 0 : index
    %12 = vector.load %arg1[%c17, %c0_11] : memref<168x64xf32, #tpu.memory_space<vmem>>, vector<1x16xf32>
    %13 = vector.shape_cast %12 : vector<1x16xf32> to vector<1x16xf32>
    %14 = vector.broadcast %13 : vector<1x16xf32> to vector<8x16xf32>
    %c18 = arith.constant 18 : index
    %c0_12 = arith.constant 0 : index
    %15 = vector.load %arg1[%c18, %c0_12] : memref<168x64xf32, #tpu.memory_space<vmem>>, vector<1x16xf32>
    %16 = vector.shape_cast %15 : vector<1x16xf32> to vector<1x16xf32>
    %17 = vector.broadcast %16 : vector<1x16xf32> to vector<8x16xf32>
    %c19 = arith.constant 19 : index
    %c0_13 = arith.constant 0 : index
    %18 = vector.load %arg1[%c19, %c0_13] : memref<168x64xf32, #tpu.memory_space<vmem>>, vector<1x16xf32>
    %19 = vector.shape_cast %18 : vector<1x16xf32> to vector<1x16xf32>
    %20 = vector.broadcast %19 : vector<1x16xf32> to vector<8x16xf32>
    %c20 = arith.constant 20 : index
    %c0_14 = arith.constant 0 : index
    %21 = vector.load %arg1[%c20, %c0_14] : memref<168x64xf32, #tpu.memory_space<vmem>>, vector<1x16xf32>
    %22 = vector.shape_cast %21 : vector<1x16xf32> to vector<1x16xf32>
    %23 = vector.broadcast %22 : vector<1x16xf32> to vector<8x16xf32>
    %c21 = arith.constant 21 : index
    %c0_15 = arith.constant 0 : index
    %24 = vector.load %arg1[%c21, %c0_15] : memref<168x64xf32, #tpu.memory_space<vmem>>, vector<1x16xf32>
    %25 = vector.shape_cast %24 : vector<1x16xf32> to vector<1x16xf32>
    %26 = vector.broadcast %25 : vector<1x16xf32> to vector<8x16xf32>
    %c22 = arith.constant 22 : index
    %c0_16 = arith.constant 0 : index
    %27 = vector.load %arg1[%c22, %c0_16] : memref<168x64xf32, #tpu.memory_space<vmem>>, vector<1x16xf32>
    %28 = vector.shape_cast %27 : vector<1x16xf32> to vector<1x16xf32>
    %29 = vector.broadcast %28 : vector<1x16xf32> to vector<8x16xf32>
    %c23 = arith.constant 23 : index
    %c0_17 = arith.constant 0 : index
    %30 = vector.load %arg1[%c23, %c0_17] : memref<168x64xf32, #tpu.memory_space<vmem>>, vector<1x16xf32>
    %31 = vector.shape_cast %30 : vector<1x16xf32> to vector<1x16xf32>
    %32 = vector.broadcast %31 : vector<1x16xf32> to vector<8x16xf32>
    %c24 = arith.constant 24 : index
    %c0_18 = arith.constant 0 : index
    %33 = vector.load %arg1[%c24, %c0_18] : memref<168x64xf32, #tpu.memory_space<vmem>>, vector<1x16xf32>
    %34 = vector.shape_cast %33 : vector<1x16xf32> to vector<1x16xf32>
    %35 = vector.broadcast %34 : vector<1x16xf32> to vector<8x16xf32>
    %c25 = arith.constant 25 : index
    %c0_19 = arith.constant 0 : index
    %36 = vector.load %arg1[%c25, %c0_19] : memref<168x64xf32, #tpu.memory_space<vmem>>, vector<1x16xf32>
    %37 = vector.shape_cast %36 : vector<1x16xf32> to vector<1x16xf32>
    %38 = vector.broadcast %37 : vector<1x16xf32> to vector<8x16xf32>
    %c26 = arith.constant 26 : index
    %c0_20 = arith.constant 0 : index
    %39 = vector.load %arg1[%c26, %c0_20] : memref<168x64xf32, #tpu.memory_space<vmem>>, vector<1x16xf32>
    %40 = vector.shape_cast %39 : vector<1x16xf32> to vector<1x16xf32>
    %41 = vector.broadcast %40 : vector<1x16xf32> to vector<8x16xf32>
    %c27 = arith.constant 27 : index
    %c0_21 = arith.constant 0 : index
    %42 = vector.load %arg1[%c27, %c0_21] : memref<168x64xf32, #tpu.memory_space<vmem>>, vector<1x16xf32>
    %43 = vector.shape_cast %42 : vector<1x16xf32> to vector<1x16xf32>
    %44 = vector.broadcast %43 : vector<1x16xf32> to vector<8x16xf32>
    %c28 = arith.constant 28 : index
    %c0_22 = arith.constant 0 : index
    %45 = vector.load %arg1[%c28, %c0_22] : memref<168x64xf32, #tpu.memory_space<vmem>>, vector<1x16xf32>
    %46 = vector.shape_cast %45 : vector<1x16xf32> to vector<1x16xf32>
    %47 = vector.broadcast %46 : vector<1x16xf32> to vector<8x16xf32>
    %c29 = arith.constant 29 : index
    %c0_23 = arith.constant 0 : index
    %48 = vector.load %arg1[%c29, %c0_23] : memref<168x64xf32, #tpu.memory_space<vmem>>, vector<1x16xf32>
    %49 = vector.shape_cast %48 : vector<1x16xf32> to vector<1x16xf32>
    %50 = vector.broadcast %49 : vector<1x16xf32> to vector<8x16xf32>
    %c30 = arith.constant 30 : index
    %c0_24 = arith.constant 0 : index
    %51 = vector.load %arg1[%c30, %c0_24] : memref<168x64xf32, #tpu.memory_space<vmem>>, vector<1x16xf32>
    %52 = vector.shape_cast %51 : vector<1x16xf32> to vector<1x16xf32>
    %53 = vector.broadcast %52 : vector<1x16xf32> to vector<8x16xf32>
    %c31 = arith.constant 31 : index
    %c0_25 = arith.constant 0 : index
    %54 = vector.load %arg1[%c31, %c0_25] : memref<168x64xf32, #tpu.memory_space<vmem>>, vector<1x16xf32>
    %55 = vector.shape_cast %54 : vector<1x16xf32> to vector<1x16xf32>
    %56 = vector.broadcast %55 : vector<1x16xf32> to vector<8x16xf32>
    %c32 = arith.constant 32 : index
    %c0_26 = arith.constant 0 : index
    %57 = vector.load %arg1[%c32, %c0_26] : memref<168x64xf32, #tpu.memory_space<vmem>>, vector<1x16xf32>
    %58 = vector.shape_cast %57 : vector<1x16xf32> to vector<1x16xf32>
    %59 = vector.broadcast %58 : vector<1x16xf32> to vector<8x16xf32>
    %c33 = arith.constant 33 : index
    %c0_27 = arith.constant 0 : index
    %60 = vector.load %arg1[%c33, %c0_27] : memref<168x64xf32, #tpu.memory_space<vmem>>, vector<1x16xf32>
    %61 = vector.shape_cast %60 : vector<1x16xf32> to vector<1x16xf32>
    %62 = vector.broadcast %61 : vector<1x16xf32> to vector<8x16xf32>
    %c34 = arith.constant 34 : index
    %c0_28 = arith.constant 0 : index
    %63 = vector.load %arg1[%c34, %c0_28] : memref<168x64xf32, #tpu.memory_space<vmem>>, vector<1x16xf32>
    %64 = vector.shape_cast %63 : vector<1x16xf32> to vector<1x16xf32>
    %65 = vector.broadcast %64 : vector<1x16xf32> to vector<8x16xf32>
    %c35 = arith.constant 35 : index
    %c0_29 = arith.constant 0 : index
    %66 = vector.load %arg1[%c35, %c0_29] : memref<168x64xf32, #tpu.memory_space<vmem>>, vector<1x16xf32>
    %67 = vector.shape_cast %66 : vector<1x16xf32> to vector<1x16xf32>
    %68 = vector.broadcast %67 : vector<1x16xf32> to vector<8x16xf32>
    %c36 = arith.constant 36 : index
    %c0_30 = arith.constant 0 : index
    %69 = vector.load %arg1[%c36, %c0_30] : memref<168x64xf32, #tpu.memory_space<vmem>>, vector<1x16xf32>
    %70 = vector.shape_cast %69 : vector<1x16xf32> to vector<1x16xf32>
    %71 = vector.broadcast %70 : vector<1x16xf32> to vector<8x16xf32>
    %c37 = arith.constant 37 : index
    %c0_31 = arith.constant 0 : index
    %72 = vector.load %arg1[%c37, %c0_31] : memref<168x64xf32, #tpu.memory_space<vmem>>, vector<1x16xf32>
    %73 = vector.shape_cast %72 : vector<1x16xf32> to vector<1x16xf32>
    %74 = vector.broadcast %73 : vector<1x16xf32> to vector<8x16xf32>
    %c38 = arith.constant 38 : index
    %c0_32 = arith.constant 0 : index
    %75 = vector.load %arg1[%c38, %c0_32] : memref<168x64xf32, #tpu.memory_space<vmem>>, vector<1x16xf32>
    %76 = vector.shape_cast %75 : vector<1x16xf32> to vector<1x16xf32>
    %77 = vector.broadcast %76 : vector<1x16xf32> to vector<8x16xf32>
    %c39 = arith.constant 39 : index
    %c0_33 = arith.constant 0 : index
    %78 = vector.load %arg1[%c39, %c0_33] : memref<168x64xf32, #tpu.memory_space<vmem>>, vector<1x16xf32>
    %79 = vector.shape_cast %78 : vector<1x16xf32> to vector<1x16xf32>
    %80 = vector.broadcast %79 : vector<1x16xf32> to vector<8x16xf32>
    %c40 = arith.constant 40 : index
    %c0_34 = arith.constant 0 : index
    %81 = vector.load %arg1[%c40, %c0_34] : memref<168x64xf32, #tpu.memory_space<vmem>>, vector<1x16xf32>
    %82 = vector.shape_cast %81 : vector<1x16xf32> to vector<1x16xf32>
    %83 = vector.broadcast %82 : vector<1x16xf32> to vector<8x16xf32>
    %c41 = arith.constant 41 : index
    %c0_35 = arith.constant 0 : index
    %84 = vector.load %arg1[%c41, %c0_35] : memref<168x64xf32, #tpu.memory_space<vmem>>, vector<1x16xf32>
    %85 = vector.shape_cast %84 : vector<1x16xf32> to vector<1x16xf32>
    %86 = vector.broadcast %85 : vector<1x16xf32> to vector<8x16xf32>
    %c42 = arith.constant 42 : index
    %c0_36 = arith.constant 0 : index
    %87 = vector.load %arg1[%c42, %c0_36] : memref<168x64xf32, #tpu.memory_space<vmem>>, vector<1x16xf32>
    %88 = vector.shape_cast %87 : vector<1x16xf32> to vector<1x16xf32>
    %89 = vector.broadcast %88 : vector<1x16xf32> to vector<8x16xf32>
    %c43 = arith.constant 43 : index
    %c0_37 = arith.constant 0 : index
    %90 = vector.load %arg1[%c43, %c0_37] : memref<168x64xf32, #tpu.memory_space<vmem>>, vector<1x16xf32>
    %91 = vector.shape_cast %90 : vector<1x16xf32> to vector<1x16xf32>
    %92 = vector.broadcast %91 : vector<1x16xf32> to vector<8x16xf32>
    %c44 = arith.constant 44 : index
    %c0_38 = arith.constant 0 : index
    %93 = vector.load %arg1[%c44, %c0_38] : memref<168x64xf32, #tpu.memory_space<vmem>>, vector<1x16xf32>
    %94 = vector.shape_cast %93 : vector<1x16xf32> to vector<1x16xf32>
    %95 = vector.broadcast %94 : vector<1x16xf32> to vector<8x16xf32>
    %c45 = arith.constant 45 : index
    %c0_39 = arith.constant 0 : index
    %96 = vector.load %arg1[%c45, %c0_39] : memref<168x64xf32, #tpu.memory_space<vmem>>, vector<1x16xf32>
    %97 = vector.shape_cast %96 : vector<1x16xf32> to vector<1x16xf32>
    %98 = vector.broadcast %97 : vector<1x16xf32> to vector<8x16xf32>
    %c46 = arith.constant 46 : index
    %c0_40 = arith.constant 0 : index
    %99 = vector.load %arg1[%c46, %c0_40] : memref<168x64xf32, #tpu.memory_space<vmem>>, vector<1x16xf32>
    %100 = vector.shape_cast %99 : vector<1x16xf32> to vector<1x16xf32>
    %101 = vector.broadcast %100 : vector<1x16xf32> to vector<8x16xf32>
    %c47 = arith.constant 47 : index
    %c0_41 = arith.constant 0 : index
    %102 = vector.load %arg1[%c47, %c0_41] : memref<168x64xf32, #tpu.memory_space<vmem>>, vector<1x16xf32>
    %103 = vector.shape_cast %102 : vector<1x16xf32> to vector<1x16xf32>
    %104 = vector.broadcast %103 : vector<1x16xf32> to vector<8x16xf32>
    %c48 = arith.constant 48 : index
    %c0_42 = arith.constant 0 : index
    %105 = vector.load %arg1[%c48, %c0_42] : memref<168x64xf32, #tpu.memory_space<vmem>>, vector<1x16xf32>
    %106 = vector.shape_cast %105 : vector<1x16xf32> to vector<1x16xf32>
    %107 = vector.broadcast %106 : vector<1x16xf32> to vector<8x16xf32>
    %c49 = arith.constant 49 : index
    %c0_43 = arith.constant 0 : index
    %108 = vector.load %arg1[%c49, %c0_43] : memref<168x64xf32, #tpu.memory_space<vmem>>, vector<1x16xf32>
    %109 = vector.shape_cast %108 : vector<1x16xf32> to vector<1x16xf32>
    %110 = vector.broadcast %109 : vector<1x16xf32> to vector<8x16xf32>
    %c50 = arith.constant 50 : index
    %c0_44 = arith.constant 0 : index
    %111 = vector.load %arg1[%c50, %c0_44] : memref<168x64xf32, #tpu.memory_space<vmem>>, vector<1x16xf32>
    %112 = vector.shape_cast %111 : vector<1x16xf32> to vector<1x16xf32>
    %113 = vector.broadcast %112 : vector<1x16xf32> to vector<8x16xf32>
    %c51 = arith.constant 51 : index
    %c0_45 = arith.constant 0 : index
    %114 = vector.load %arg1[%c51, %c0_45] : memref<168x64xf32, #tpu.memory_space<vmem>>, vector<1x16xf32>
    %115 = vector.shape_cast %114 : vector<1x16xf32> to vector<1x16xf32>
    %116 = vector.broadcast %115 : vector<1x16xf32> to vector<8x16xf32>
    %c52 = arith.constant 52 : index
    %c0_46 = arith.constant 0 : index
    %117 = vector.load %arg1[%c52, %c0_46] : memref<168x64xf32, #tpu.memory_space<vmem>>, vector<1x16xf32>
    %118 = vector.shape_cast %117 : vector<1x16xf32> to vector<1x16xf32>
    %119 = vector.broadcast %118 : vector<1x16xf32> to vector<8x16xf32>
    %c53 = arith.constant 53 : index
    %c0_47 = arith.constant 0 : index
    %120 = vector.load %arg1[%c53, %c0_47] : memref<168x64xf32, #tpu.memory_space<vmem>>, vector<1x16xf32>
    %121 = vector.shape_cast %120 : vector<1x16xf32> to vector<1x16xf32>
    %122 = vector.broadcast %121 : vector<1x16xf32> to vector<8x16xf32>
    %c54 = arith.constant 54 : index
    %c0_48 = arith.constant 0 : index
    %123 = vector.load %arg1[%c54, %c0_48] : memref<168x64xf32, #tpu.memory_space<vmem>>, vector<1x16xf32>
    %124 = vector.shape_cast %123 : vector<1x16xf32> to vector<1x16xf32>
    %125 = vector.broadcast %124 : vector<1x16xf32> to vector<8x16xf32>
    %c55 = arith.constant 55 : index
    %c0_49 = arith.constant 0 : index
    %126 = vector.load %arg1[%c55, %c0_49] : memref<168x64xf32, #tpu.memory_space<vmem>>, vector<1x16xf32>
    %127 = vector.shape_cast %126 : vector<1x16xf32> to vector<1x16xf32>
    %128 = vector.broadcast %127 : vector<1x16xf32> to vector<8x16xf32>
    %c56 = arith.constant 56 : index
    %c0_50 = arith.constant 0 : index
    %129 = vector.load %arg1[%c56, %c0_50] : memref<168x64xf32, #tpu.memory_space<vmem>>, vector<1x16xf32>
    %130 = vector.shape_cast %129 : vector<1x16xf32> to vector<1x16xf32>
    %131 = vector.broadcast %130 : vector<1x16xf32> to vector<8x16xf32>
    %c57 = arith.constant 57 : index
    %c0_51 = arith.constant 0 : index
    %132 = vector.load %arg1[%c57, %c0_51] : memref<168x64xf32, #tpu.memory_space<vmem>>, vector<1x16xf32>
    %133 = vector.shape_cast %132 : vector<1x16xf32> to vector<1x16xf32>
    %134 = vector.broadcast %133 : vector<1x16xf32> to vector<8x16xf32>
    %c58 = arith.constant 58 : index
    %c0_52 = arith.constant 0 : index
    %135 = vector.load %arg1[%c58, %c0_52] : memref<168x64xf32, #tpu.memory_space<vmem>>, vector<1x16xf32>
    %136 = vector.shape_cast %135 : vector<1x16xf32> to vector<1x16xf32>
    %137 = vector.broadcast %136 : vector<1x16xf32> to vector<8x16xf32>
    %c59 = arith.constant 59 : index
    %c0_53 = arith.constant 0 : index
    %138 = vector.load %arg1[%c59, %c0_53] : memref<168x64xf32, #tpu.memory_space<vmem>>, vector<1x16xf32>
    %139 = vector.shape_cast %138 : vector<1x16xf32> to vector<1x16xf32>
    %140 = vector.broadcast %139 : vector<1x16xf32> to vector<8x16xf32>
    %c60 = arith.constant 60 : index
    %c0_54 = arith.constant 0 : index
    %141 = vector.load %arg1[%c60, %c0_54] : memref<168x64xf32, #tpu.memory_space<vmem>>, vector<1x16xf32>
    %142 = vector.shape_cast %141 : vector<1x16xf32> to vector<1x16xf32>
    %143 = vector.broadcast %142 : vector<1x16xf32> to vector<8x16xf32>
    %c61 = arith.constant 61 : index
    %c0_55 = arith.constant 0 : index
    %144 = vector.load %arg1[%c61, %c0_55] : memref<168x64xf32, #tpu.memory_space<vmem>>, vector<1x16xf32>
    %145 = vector.shape_cast %144 : vector<1x16xf32> to vector<1x16xf32>
    %146 = vector.broadcast %145 : vector<1x16xf32> to vector<8x16xf32>
    %c62 = arith.constant 62 : index
    %c0_56 = arith.constant 0 : index
    %147 = vector.load %arg1[%c62, %c0_56] : memref<168x64xf32, #tpu.memory_space<vmem>>, vector<1x16xf32>
    %148 = vector.shape_cast %147 : vector<1x16xf32> to vector<1x16xf32>
    %149 = vector.broadcast %148 : vector<1x16xf32> to vector<8x16xf32>
    %c63 = arith.constant 63 : index
    %c0_57 = arith.constant 0 : index
    %150 = vector.load %arg1[%c63, %c0_57] : memref<168x64xf32, #tpu.memory_space<vmem>>, vector<1x16xf32>
    %151 = vector.shape_cast %150 : vector<1x16xf32> to vector<1x16xf32>
    %152 = vector.broadcast %151 : vector<1x16xf32> to vector<8x16xf32>
    %c64_58 = arith.constant 64 : index
    %c0_59 = arith.constant 0 : index
    %153 = vector.load %arg1[%c64_58, %c0_59] : memref<168x64xf32, #tpu.memory_space<vmem>>, vector<1x16xf32>
    %154 = vector.shape_cast %153 : vector<1x16xf32> to vector<1x16xf32>
    %155 = vector.broadcast %154 : vector<1x16xf32> to vector<8x16xf32>
    %c65 = arith.constant 65 : index
    %c0_60 = arith.constant 0 : index
    %156 = vector.load %arg1[%c65, %c0_60] : memref<168x64xf32, #tpu.memory_space<vmem>>, vector<1x16xf32>
    %157 = vector.shape_cast %156 : vector<1x16xf32> to vector<1x16xf32>
    %158 = vector.broadcast %157 : vector<1x16xf32> to vector<8x16xf32>
    %c66 = arith.constant 66 : index
    %c0_61 = arith.constant 0 : index
    %159 = vector.load %arg1[%c66, %c0_61] : memref<168x64xf32, #tpu.memory_space<vmem>>, vector<1x16xf32>
    %160 = vector.shape_cast %159 : vector<1x16xf32> to vector<1x16xf32>
    %161 = vector.broadcast %160 : vector<1x16xf32> to vector<8x16xf32>
    %c67 = arith.constant 67 : index
    %c0_62 = arith.constant 0 : index
    %162 = vector.load %arg1[%c67, %c0_62] : memref<168x64xf32, #tpu.memory_space<vmem>>, vector<1x16xf32>
    %163 = vector.shape_cast %162 : vector<1x16xf32> to vector<1x16xf32>
    %164 = vector.broadcast %163 : vector<1x16xf32> to vector<8x16xf32>
    %c68 = arith.constant 68 : index
    %c0_63 = arith.constant 0 : index
    %165 = vector.load %arg1[%c68, %c0_63] : memref<168x64xf32, #tpu.memory_space<vmem>>, vector<1x16xf32>
    %166 = vector.shape_cast %165 : vector<1x16xf32> to vector<1x16xf32>
    %167 = vector.broadcast %166 : vector<1x16xf32> to vector<8x16xf32>
    %c69 = arith.constant 69 : index
    %c0_64 = arith.constant 0 : index
    %168 = vector.load %arg1[%c69, %c0_64] : memref<168x64xf32, #tpu.memory_space<vmem>>, vector<1x16xf32>
    %169 = vector.shape_cast %168 : vector<1x16xf32> to vector<1x16xf32>
    %170 = vector.broadcast %169 : vector<1x16xf32> to vector<8x16xf32>
    %c70 = arith.constant 70 : index
    %c0_65 = arith.constant 0 : index
    %171 = vector.load %arg1[%c70, %c0_65] : memref<168x64xf32, #tpu.memory_space<vmem>>, vector<1x16xf32>
    %172 = vector.shape_cast %171 : vector<1x16xf32> to vector<1x16xf32>
    %173 = vector.broadcast %172 : vector<1x16xf32> to vector<8x16xf32>
    %c71 = arith.constant 71 : index
    %c0_66 = arith.constant 0 : index
    %174 = vector.load %arg1[%c71, %c0_66] : memref<168x64xf32, #tpu.memory_space<vmem>>, vector<1x16xf32>
    %175 = vector.shape_cast %174 : vector<1x16xf32> to vector<1x16xf32>
    %176 = vector.broadcast %175 : vector<1x16xf32> to vector<8x16xf32>
    %c72_67 = arith.constant 72 : index
    %c0_68 = arith.constant 0 : index
    %177 = vector.load %arg1[%c72_67, %c0_68] : memref<168x64xf32, #tpu.memory_space<vmem>>, vector<1x16xf32>
    %178 = vector.shape_cast %177 : vector<1x16xf32> to vector<1x16xf32>
    %179 = vector.broadcast %178 : vector<1x16xf32> to vector<8x16xf32>
    %c73 = arith.constant 73 : index
    %c0_69 = arith.constant 0 : index
    %180 = vector.load %arg1[%c73, %c0_69] : memref<168x64xf32, #tpu.memory_space<vmem>>, vector<1x16xf32>
    %181 = vector.shape_cast %180 : vector<1x16xf32> to vector<1x16xf32>
    %182 = vector.broadcast %181 : vector<1x16xf32> to vector<8x16xf32>
    %c74 = arith.constant 74 : index
    %c0_70 = arith.constant 0 : index
    %183 = vector.load %arg1[%c74, %c0_70] : memref<168x64xf32, #tpu.memory_space<vmem>>, vector<1x16xf32>
    %184 = vector.shape_cast %183 : vector<1x16xf32> to vector<1x16xf32>
    %185 = vector.broadcast %184 : vector<1x16xf32> to vector<8x16xf32>
    %c75 = arith.constant 75 : index
    %c0_71 = arith.constant 0 : index
    %186 = vector.load %arg1[%c75, %c0_71] : memref<168x64xf32, #tpu.memory_space<vmem>>, vector<1x16xf32>
    %187 = vector.shape_cast %186 : vector<1x16xf32> to vector<1x16xf32>
    %188 = vector.broadcast %187 : vector<1x16xf32> to vector<8x16xf32>
    %c76 = arith.constant 76 : index
    %c0_72 = arith.constant 0 : index
    %189 = vector.load %arg1[%c76, %c0_72] : memref<168x64xf32, #tpu.memory_space<vmem>>, vector<1x16xf32>
    %190 = vector.shape_cast %189 : vector<1x16xf32> to vector<1x16xf32>
    %191 = vector.broadcast %190 : vector<1x16xf32> to vector<8x16xf32>
    %c77 = arith.constant 77 : index
    %c0_73 = arith.constant 0 : index
    %192 = vector.load %arg1[%c77, %c0_73] : memref<168x64xf32, #tpu.memory_space<vmem>>, vector<1x16xf32>
    %193 = vector.shape_cast %192 : vector<1x16xf32> to vector<1x16xf32>
    %194 = vector.broadcast %193 : vector<1x16xf32> to vector<8x16xf32>
    %c78 = arith.constant 78 : index
    %c0_74 = arith.constant 0 : index
    %195 = vector.load %arg1[%c78, %c0_74] : memref<168x64xf32, #tpu.memory_space<vmem>>, vector<1x16xf32>
    %196 = vector.shape_cast %195 : vector<1x16xf32> to vector<1x16xf32>
    %197 = vector.broadcast %196 : vector<1x16xf32> to vector<8x16xf32>
    %c79 = arith.constant 79 : index
    %c0_75 = arith.constant 0 : index
    %198 = vector.load %arg1[%c79, %c0_75] : memref<168x64xf32, #tpu.memory_space<vmem>>, vector<1x16xf32>
    %199 = vector.shape_cast %198 : vector<1x16xf32> to vector<1x16xf32>
    %200 = vector.broadcast %199 : vector<1x16xf32> to vector<8x16xf32>
    %cst = arith.constant dense<0.000000e+00> : vector<64x64xf32>
    %201 = tpu.matmul %0, %3, %cst {dimension_numbers = #tpu.dot_dimension_numbers<[1], [0], [0], [1], [0, 0, 1, 1], [], []>} : vector<64x16xf32>, vector<16x64xf32>, vector<64x64xf32> -> vector<64x64xf32>
    %202 = vector.broadcast %6 : vector<1x64xf32> to vector<64x64xf32>
    %203 = arith.addf %201, %202 : vector<64x64xf32>
    %204 = vector.extract_strided_slice %203 {offsets = [0, 0], sizes = [64, 16], strides = [1, 1]} : vector<64x64xf32> to vector<64x16xf32>
    %205 = vector.extract_strided_slice %203 {offsets = [0, 16], sizes = [64, 16], strides = [1, 1]} : vector<64x64xf32> to vector<64x16xf32>
    %206 = vector.extract_strided_slice %203 {offsets = [0, 32], sizes = [64, 16], strides = [1, 1]} : vector<64x64xf32> to vector<64x16xf32>
    %207 = vector.extract_strided_slice %203 {offsets = [0, 48], sizes = [64, 16], strides = [1, 1]} : vector<64x64xf32> to vector<64x16xf32>
    %cst_76 = arith.constant 0.000000e+00 : f32
    %208 = vector.broadcast %cst_76 : f32 to vector<8x16xf32>
    %cst_77 = arith.constant 0.000000e+00 : f32
    %209 = vector.broadcast %cst_77 : f32 to vector<8x16xf32>
    %210 = vector.extract_strided_slice %204 {offsets = [0, 0], sizes = [8, 16], strides = [1, 1]} : vector<64x16xf32> to vector<8x16xf32>
    %211 = vector.extract_strided_slice %205 {offsets = [0, 0], sizes = [8, 16], strides = [1, 1]} : vector<64x16xf32> to vector<8x16xf32>
    %212 = vector.extract_strided_slice %206 {offsets = [0, 0], sizes = [8, 16], strides = [1, 1]} : vector<64x16xf32> to vector<8x16xf32>
    %213 = vector.extract_strided_slice %207 {offsets = [0, 0], sizes = [8, 16], strides = [1, 1]} : vector<64x16xf32> to vector<8x16xf32>
    %214 = vector.extract_strided_slice %208 {offsets = [0, 0], sizes = [8, 1], strides = [1, 1]} : vector<8x16xf32> to vector<8x1xf32>
    %215 = vector.shape_cast %214 : vector<8x1xf32> to vector<8x1xf32>
    %216 = vector.broadcast %215 : vector<8x1xf32> to vector<8x16xf32>
    %217 = arith.mulf %216, %11 : vector<8x16xf32>
    %218 = arith.mulf %216, %59 : vector<8x16xf32>
    %219 = arith.mulf %216, %107 : vector<8x16xf32>
    %220 = arith.mulf %216, %155 : vector<8x16xf32>
    %221 = vector.extract_strided_slice %208 {offsets = [0, 1], sizes = [8, 1], strides = [1, 1]} : vector<8x16xf32> to vector<8x1xf32>
    %222 = vector.shape_cast %221 : vector<8x1xf32> to vector<8x1xf32>
    %223 = vector.broadcast %222 : vector<8x1xf32> to vector<8x16xf32>
    %224 = arith.mulf %223, %14 : vector<8x16xf32>
    %225 = arith.mulf %223, %62 : vector<8x16xf32>
    %226 = arith.mulf %223, %110 : vector<8x16xf32>
    %227 = arith.mulf %223, %158 : vector<8x16xf32>
    %228 = vector.extract_strided_slice %208 {offsets = [0, 2], sizes = [8, 1], strides = [1, 1]} : vector<8x16xf32> to vector<8x1xf32>
    %229 = vector.shape_cast %228 : vector<8x1xf32> to vector<8x1xf32>
    %230 = vector.broadcast %229 : vector<8x1xf32> to vector<8x16xf32>
    %231 = arith.mulf %230, %17 : vector<8x16xf32>
    %232 = arith.mulf %230, %65 : vector<8x16xf32>
    %233 = arith.mulf %230, %113 : vector<8x16xf32>
    %234 = arith.mulf %230, %161 : vector<8x16xf32>
    %235 = vector.extract_strided_slice %208 {offsets = [0, 3], sizes = [8, 1], strides = [1, 1]} : vector<8x16xf32> to vector<8x1xf32>
    %236 = vector.shape_cast %235 : vector<8x1xf32> to vector<8x1xf32>
    %237 = vector.broadcast %236 : vector<8x1xf32> to vector<8x16xf32>
    %238 = arith.mulf %237, %20 : vector<8x16xf32>
    %239 = arith.mulf %237, %68 : vector<8x16xf32>
    %240 = arith.mulf %237, %116 : vector<8x16xf32>
    %241 = arith.mulf %237, %164 : vector<8x16xf32>
    %242 = vector.extract_strided_slice %208 {offsets = [0, 4], sizes = [8, 1], strides = [1, 1]} : vector<8x16xf32> to vector<8x1xf32>
    %243 = vector.shape_cast %242 : vector<8x1xf32> to vector<8x1xf32>
    %244 = vector.broadcast %243 : vector<8x1xf32> to vector<8x16xf32>
    %245 = arith.mulf %244, %23 : vector<8x16xf32>
    %246 = arith.mulf %244, %71 : vector<8x16xf32>
    %247 = arith.mulf %244, %119 : vector<8x16xf32>
    %248 = arith.mulf %244, %167 : vector<8x16xf32>
    %249 = vector.extract_strided_slice %208 {offsets = [0, 5], sizes = [8, 1], strides = [1, 1]} : vector<8x16xf32> to vector<8x1xf32>
    %250 = vector.shape_cast %249 : vector<8x1xf32> to vector<8x1xf32>
    %251 = vector.broadcast %250 : vector<8x1xf32> to vector<8x16xf32>
    %252 = arith.mulf %251, %26 : vector<8x16xf32>
    %253 = arith.mulf %251, %74 : vector<8x16xf32>
    %254 = arith.mulf %251, %122 : vector<8x16xf32>
    %255 = arith.mulf %251, %170 : vector<8x16xf32>
    %256 = vector.extract_strided_slice %208 {offsets = [0, 6], sizes = [8, 1], strides = [1, 1]} : vector<8x16xf32> to vector<8x1xf32>
    %257 = vector.shape_cast %256 : vector<8x1xf32> to vector<8x1xf32>
    %258 = vector.broadcast %257 : vector<8x1xf32> to vector<8x16xf32>
    %259 = arith.mulf %258, %29 : vector<8x16xf32>
    %260 = arith.mulf %258, %77 : vector<8x16xf32>
    %261 = arith.mulf %258, %125 : vector<8x16xf32>
    %262 = arith.mulf %258, %173 : vector<8x16xf32>
    %263 = vector.extract_strided_slice %208 {offsets = [0, 7], sizes = [8, 1], strides = [1, 1]} : vector<8x16xf32> to vector<8x1xf32>
    %264 = vector.shape_cast %263 : vector<8x1xf32> to vector<8x1xf32>
    %265 = vector.broadcast %264 : vector<8x1xf32> to vector<8x16xf32>
    %266 = arith.mulf %265, %32 : vector<8x16xf32>
    %267 = arith.mulf %265, %80 : vector<8x16xf32>
    %268 = arith.mulf %265, %128 : vector<8x16xf32>
    %269 = arith.mulf %265, %176 : vector<8x16xf32>
    %270 = vector.extract_strided_slice %208 {offsets = [0, 8], sizes = [8, 1], strides = [1, 1]} : vector<8x16xf32> to vector<8x1xf32>
    %271 = vector.shape_cast %270 : vector<8x1xf32> to vector<8x1xf32>
    %272 = vector.broadcast %271 : vector<8x1xf32> to vector<8x16xf32>
    %273 = arith.mulf %272, %35 : vector<8x16xf32>
    %274 = arith.mulf %272, %83 : vector<8x16xf32>
    %275 = arith.mulf %272, %131 : vector<8x16xf32>
    %276 = arith.mulf %272, %179 : vector<8x16xf32>
    %277 = vector.extract_strided_slice %208 {offsets = [0, 9], sizes = [8, 1], strides = [1, 1]} : vector<8x16xf32> to vector<8x1xf32>
    %278 = vector.shape_cast %277 : vector<8x1xf32> to vector<8x1xf32>
    %279 = vector.broadcast %278 : vector<8x1xf32> to vector<8x16xf32>
    %280 = arith.mulf %279, %38 : vector<8x16xf32>
    %281 = arith.mulf %279, %86 : vector<8x16xf32>
    %282 = arith.mulf %279, %134 : vector<8x16xf32>
    %283 = arith.mulf %279, %182 : vector<8x16xf32>
    %284 = vector.extract_strided_slice %208 {offsets = [0, 10], sizes = [8, 1], strides = [1, 1]} : vector<8x16xf32> to vector<8x1xf32>
    %285 = vector.shape_cast %284 : vector<8x1xf32> to vector<8x1xf32>
    %286 = vector.broadcast %285 : vector<8x1xf32> to vector<8x16xf32>
    %287 = arith.mulf %286, %41 : vector<8x16xf32>
    %288 = arith.mulf %286, %89 : vector<8x16xf32>
    %289 = arith.mulf %286, %137 : vector<8x16xf32>
    %290 = arith.mulf %286, %185 : vector<8x16xf32>
    %291 = vector.extract_strided_slice %208 {offsets = [0, 11], sizes = [8, 1], strides = [1, 1]} : vector<8x16xf32> to vector<8x1xf32>
    %292 = vector.shape_cast %291 : vector<8x1xf32> to vector<8x1xf32>
    %293 = vector.broadcast %292 : vector<8x1xf32> to vector<8x16xf32>
    %294 = arith.mulf %293, %44 : vector<8x16xf32>
    %295 = arith.mulf %293, %92 : vector<8x16xf32>
    %296 = arith.mulf %293, %140 : vector<8x16xf32>
    %297 = arith.mulf %293, %188 : vector<8x16xf32>
    %298 = vector.extract_strided_slice %208 {offsets = [0, 12], sizes = [8, 1], strides = [1, 1]} : vector<8x16xf32> to vector<8x1xf32>
    %299 = vector.shape_cast %298 : vector<8x1xf32> to vector<8x1xf32>
    %300 = vector.broadcast %299 : vector<8x1xf32> to vector<8x16xf32>
    %301 = arith.mulf %300, %47 : vector<8x16xf32>
    %302 = arith.mulf %300, %95 : vector<8x16xf32>
    %303 = arith.mulf %300, %143 : vector<8x16xf32>
    %304 = arith.mulf %300, %191 : vector<8x16xf32>
    %305 = vector.extract_strided_slice %208 {offsets = [0, 13], sizes = [8, 1], strides = [1, 1]} : vector<8x16xf32> to vector<8x1xf32>
    %306 = vector.shape_cast %305 : vector<8x1xf32> to vector<8x1xf32>
    %307 = vector.broadcast %306 : vector<8x1xf32> to vector<8x16xf32>
    %308 = arith.mulf %307, %50 : vector<8x16xf32>
    %309 = arith.mulf %307, %98 : vector<8x16xf32>
    %310 = arith.mulf %307, %146 : vector<8x16xf32>
    %311 = arith.mulf %307, %194 : vector<8x16xf32>
    %312 = vector.extract_strided_slice %208 {offsets = [0, 14], sizes = [8, 1], strides = [1, 1]} : vector<8x16xf32> to vector<8x1xf32>
    %313 = vector.shape_cast %312 : vector<8x1xf32> to vector<8x1xf32>
    %314 = vector.broadcast %313 : vector<8x1xf32> to vector<8x16xf32>
    %315 = arith.mulf %314, %53 : vector<8x16xf32>
    %316 = arith.mulf %314, %101 : vector<8x16xf32>
    %317 = arith.mulf %314, %149 : vector<8x16xf32>
    %318 = arith.mulf %314, %197 : vector<8x16xf32>
    %319 = vector.extract_strided_slice %208 {offsets = [0, 15], sizes = [8, 1], strides = [1, 1]} : vector<8x16xf32> to vector<8x1xf32>
    %320 = vector.shape_cast %319 : vector<8x1xf32> to vector<8x1xf32>
    %321 = vector.broadcast %320 : vector<8x1xf32> to vector<8x16xf32>
    %322 = arith.mulf %321, %56 : vector<8x16xf32>
    %323 = arith.mulf %321, %104 : vector<8x16xf32>
    %324 = arith.mulf %321, %152 : vector<8x16xf32>
    %325 = arith.mulf %321, %200 : vector<8x16xf32>
    %326 = arith.addf %210, %217 : vector<8x16xf32>
    %327 = arith.addf %224, %231 : vector<8x16xf32>
    %328 = arith.addf %238, %245 : vector<8x16xf32>
    %329 = arith.addf %252, %259 : vector<8x16xf32>
    %330 = arith.addf %266, %273 : vector<8x16xf32>
    %331 = arith.addf %280, %287 : vector<8x16xf32>
    %332 = arith.addf %294, %301 : vector<8x16xf32>
    %333 = arith.addf %308, %315 : vector<8x16xf32>
    %334 = arith.addf %326, %327 : vector<8x16xf32>
    %335 = arith.addf %328, %329 : vector<8x16xf32>
    %336 = arith.addf %330, %331 : vector<8x16xf32>
    %337 = arith.addf %332, %333 : vector<8x16xf32>
    %338 = arith.addf %334, %335 : vector<8x16xf32>
    %339 = arith.addf %336, %337 : vector<8x16xf32>
    %340 = arith.addf %338, %339 : vector<8x16xf32>
    %341 = arith.addf %340, %322 : vector<8x16xf32>
    %342 = arith.addf %211, %218 : vector<8x16xf32>
    %343 = arith.addf %225, %232 : vector<8x16xf32>
    %344 = arith.addf %239, %246 : vector<8x16xf32>
    %345 = arith.addf %253, %260 : vector<8x16xf32>
    %346 = arith.addf %267, %274 : vector<8x16xf32>
    %347 = arith.addf %281, %288 : vector<8x16xf32>
    %348 = arith.addf %295, %302 : vector<8x16xf32>
    %349 = arith.addf %309, %316 : vector<8x16xf32>
    %350 = arith.addf %342, %343 : vector<8x16xf32>
    %351 = arith.addf %344, %345 : vector<8x16xf32>
    %352 = arith.addf %346, %347 : vector<8x16xf32>
    %353 = arith.addf %348, %349 : vector<8x16xf32>
    %354 = arith.addf %350, %351 : vector<8x16xf32>
    %355 = arith.addf %352, %353 : vector<8x16xf32>
    %356 = arith.addf %354, %355 : vector<8x16xf32>
    %357 = arith.addf %356, %323 : vector<8x16xf32>
    %358 = arith.addf %212, %219 : vector<8x16xf32>
    %359 = arith.addf %226, %233 : vector<8x16xf32>
    %360 = arith.addf %240, %247 : vector<8x16xf32>
    %361 = arith.addf %254, %261 : vector<8x16xf32>
    %362 = arith.addf %268, %275 : vector<8x16xf32>
    %363 = arith.addf %282, %289 : vector<8x16xf32>
    %364 = arith.addf %296, %303 : vector<8x16xf32>
    %365 = arith.addf %310, %317 : vector<8x16xf32>
    %366 = arith.addf %358, %359 : vector<8x16xf32>
    %367 = arith.addf %360, %361 : vector<8x16xf32>
    %368 = arith.addf %362, %363 : vector<8x16xf32>
    %369 = arith.addf %364, %365 : vector<8x16xf32>
    %370 = arith.addf %366, %367 : vector<8x16xf32>
    %371 = arith.addf %368, %369 : vector<8x16xf32>
    %372 = arith.addf %370, %371 : vector<8x16xf32>
    %373 = arith.addf %372, %324 : vector<8x16xf32>
    %374 = arith.addf %213, %220 : vector<8x16xf32>
    %375 = arith.addf %227, %234 : vector<8x16xf32>
    %376 = arith.addf %241, %248 : vector<8x16xf32>
    %377 = arith.addf %255, %262 : vector<8x16xf32>
    %378 = arith.addf %269, %276 : vector<8x16xf32>
    %379 = arith.addf %283, %290 : vector<8x16xf32>
    %380 = arith.addf %297, %304 : vector<8x16xf32>
    %381 = arith.addf %311, %318 : vector<8x16xf32>
    %382 = arith.addf %374, %375 : vector<8x16xf32>
    %383 = arith.addf %376, %377 : vector<8x16xf32>
    %384 = arith.addf %378, %379 : vector<8x16xf32>
    %385 = arith.addf %380, %381 : vector<8x16xf32>
    %386 = arith.addf %382, %383 : vector<8x16xf32>
    %387 = arith.addf %384, %385 : vector<8x16xf32>
    %388 = arith.addf %386, %387 : vector<8x16xf32>
    %389 = arith.addf %388, %325 : vector<8x16xf32>
    %cst_78 = arith.constant 5.000000e-01 : f32
    %390 = vector.broadcast %cst_78 : f32 to vector<8x16xf32>
    %391 = arith.mulf %390, %341 : vector<8x16xf32>
    %392 = math.tanh %391 : vector<8x16xf32>
    %cst_79 = arith.constant 5.000000e-01 : f32
    %393 = vector.broadcast %cst_79 : f32 to vector<8x16xf32>
    %394 = arith.mulf %393, %392 : vector<8x16xf32>
    %cst_80 = arith.constant 5.000000e-01 : f32
    %395 = vector.broadcast %cst_80 : f32 to vector<8x16xf32>
    %396 = arith.addf %394, %395 : vector<8x16xf32>
    %cst_81 = arith.constant 5.000000e-01 : f32
    %397 = vector.broadcast %cst_81 : f32 to vector<8x16xf32>
    %398 = arith.mulf %397, %357 : vector<8x16xf32>
    %399 = math.tanh %398 : vector<8x16xf32>
    %cst_82 = arith.constant 5.000000e-01 : f32
    %400 = vector.broadcast %cst_82 : f32 to vector<8x16xf32>
    %401 = arith.mulf %400, %399 : vector<8x16xf32>
    %cst_83 = arith.constant 5.000000e-01 : f32
    %402 = vector.broadcast %cst_83 : f32 to vector<8x16xf32>
    %403 = arith.addf %401, %402 : vector<8x16xf32>
    %cst_84 = arith.constant 5.000000e-01 : f32
    %404 = vector.broadcast %cst_84 : f32 to vector<8x16xf32>
    %405 = arith.mulf %404, %389 : vector<8x16xf32>
    %406 = math.tanh %405 : vector<8x16xf32>
    %cst_85 = arith.constant 5.000000e-01 : f32
    %407 = vector.broadcast %cst_85 : f32 to vector<8x16xf32>
    %408 = arith.mulf %407, %406 : vector<8x16xf32>
    %cst_86 = arith.constant 5.000000e-01 : f32
    %409 = vector.broadcast %cst_86 : f32 to vector<8x16xf32>
    %410 = arith.addf %408, %409 : vector<8x16xf32>
    %411 = math.tanh %373 : vector<8x16xf32>
    %412 = arith.mulf %403, %209 : vector<8x16xf32>
    %413 = arith.mulf %396, %411 : vector<8x16xf32>
    %414 = arith.addf %412, %413 : vector<8x16xf32>
    %415 = math.tanh %414 : vector<8x16xf32>
    %416 = arith.mulf %410, %415 : vector<8x16xf32>
    %417 = vector.extract_strided_slice %204 {offsets = [8, 0], sizes = [8, 16], strides = [1, 1]} : vector<64x16xf32> to vector<8x16xf32>
    %418 = vector.extract_strided_slice %205 {offsets = [8, 0], sizes = [8, 16], strides = [1, 1]} : vector<64x16xf32> to vector<8x16xf32>
    %419 = vector.extract_strided_slice %206 {offsets = [8, 0], sizes = [8, 16], strides = [1, 1]} : vector<64x16xf32> to vector<8x16xf32>
    %420 = vector.extract_strided_slice %207 {offsets = [8, 0], sizes = [8, 16], strides = [1, 1]} : vector<64x16xf32> to vector<8x16xf32>
    %421 = vector.extract_strided_slice %416 {offsets = [0, 0], sizes = [8, 1], strides = [1, 1]} : vector<8x16xf32> to vector<8x1xf32>
    %422 = vector.shape_cast %421 : vector<8x1xf32> to vector<8x1xf32>
    %423 = vector.broadcast %422 : vector<8x1xf32> to vector<8x16xf32>
    %424 = arith.mulf %423, %11 : vector<8x16xf32>
    %425 = arith.mulf %423, %59 : vector<8x16xf32>
    %426 = arith.mulf %423, %107 : vector<8x16xf32>
    %427 = arith.mulf %423, %155 : vector<8x16xf32>
    %428 = vector.extract_strided_slice %416 {offsets = [0, 1], sizes = [8, 1], strides = [1, 1]} : vector<8x16xf32> to vector<8x1xf32>
    %429 = vector.shape_cast %428 : vector<8x1xf32> to vector<8x1xf32>
    %430 = vector.broadcast %429 : vector<8x1xf32> to vector<8x16xf32>
    %431 = arith.mulf %430, %14 : vector<8x16xf32>
    %432 = arith.mulf %430, %62 : vector<8x16xf32>
    %433 = arith.mulf %430, %110 : vector<8x16xf32>
    %434 = arith.mulf %430, %158 : vector<8x16xf32>
    %435 = vector.extract_strided_slice %416 {offsets = [0, 2], sizes = [8, 1], strides = [1, 1]} : vector<8x16xf32> to vector<8x1xf32>
    %436 = vector.shape_cast %435 : vector<8x1xf32> to vector<8x1xf32>
    %437 = vector.broadcast %436 : vector<8x1xf32> to vector<8x16xf32>
    %438 = arith.mulf %437, %17 : vector<8x16xf32>
    %439 = arith.mulf %437, %65 : vector<8x16xf32>
    %440 = arith.mulf %437, %113 : vector<8x16xf32>
    %441 = arith.mulf %437, %161 : vector<8x16xf32>
    %442 = vector.extract_strided_slice %416 {offsets = [0, 3], sizes = [8, 1], strides = [1, 1]} : vector<8x16xf32> to vector<8x1xf32>
    %443 = vector.shape_cast %442 : vector<8x1xf32> to vector<8x1xf32>
    %444 = vector.broadcast %443 : vector<8x1xf32> to vector<8x16xf32>
    %445 = arith.mulf %444, %20 : vector<8x16xf32>
    %446 = arith.mulf %444, %68 : vector<8x16xf32>
    %447 = arith.mulf %444, %116 : vector<8x16xf32>
    %448 = arith.mulf %444, %164 : vector<8x16xf32>
    %449 = vector.extract_strided_slice %416 {offsets = [0, 4], sizes = [8, 1], strides = [1, 1]} : vector<8x16xf32> to vector<8x1xf32>
    %450 = vector.shape_cast %449 : vector<8x1xf32> to vector<8x1xf32>
    %451 = vector.broadcast %450 : vector<8x1xf32> to vector<8x16xf32>
    %452 = arith.mulf %451, %23 : vector<8x16xf32>
    %453 = arith.mulf %451, %71 : vector<8x16xf32>
    %454 = arith.mulf %451, %119 : vector<8x16xf32>
    %455 = arith.mulf %451, %167 : vector<8x16xf32>
    %456 = vector.extract_strided_slice %416 {offsets = [0, 5], sizes = [8, 1], strides = [1, 1]} : vector<8x16xf32> to vector<8x1xf32>
    %457 = vector.shape_cast %456 : vector<8x1xf32> to vector<8x1xf32>
    %458 = vector.broadcast %457 : vector<8x1xf32> to vector<8x16xf32>
    %459 = arith.mulf %458, %26 : vector<8x16xf32>
    %460 = arith.mulf %458, %74 : vector<8x16xf32>
    %461 = arith.mulf %458, %122 : vector<8x16xf32>
    %462 = arith.mulf %458, %170 : vector<8x16xf32>
    %463 = vector.extract_strided_slice %416 {offsets = [0, 6], sizes = [8, 1], strides = [1, 1]} : vector<8x16xf32> to vector<8x1xf32>
    %464 = vector.shape_cast %463 : vector<8x1xf32> to vector<8x1xf32>
    %465 = vector.broadcast %464 : vector<8x1xf32> to vector<8x16xf32>
    %466 = arith.mulf %465, %29 : vector<8x16xf32>
    %467 = arith.mulf %465, %77 : vector<8x16xf32>
    %468 = arith.mulf %465, %125 : vector<8x16xf32>
    %469 = arith.mulf %465, %173 : vector<8x16xf32>
    %470 = vector.extract_strided_slice %416 {offsets = [0, 7], sizes = [8, 1], strides = [1, 1]} : vector<8x16xf32> to vector<8x1xf32>
    %471 = vector.shape_cast %470 : vector<8x1xf32> to vector<8x1xf32>
    %472 = vector.broadcast %471 : vector<8x1xf32> to vector<8x16xf32>
    %473 = arith.mulf %472, %32 : vector<8x16xf32>
    %474 = arith.mulf %472, %80 : vector<8x16xf32>
    %475 = arith.mulf %472, %128 : vector<8x16xf32>
    %476 = arith.mulf %472, %176 : vector<8x16xf32>
    %477 = vector.extract_strided_slice %416 {offsets = [0, 8], sizes = [8, 1], strides = [1, 1]} : vector<8x16xf32> to vector<8x1xf32>
    %478 = vector.shape_cast %477 : vector<8x1xf32> to vector<8x1xf32>
    %479 = vector.broadcast %478 : vector<8x1xf32> to vector<8x16xf32>
    %480 = arith.mulf %479, %35 : vector<8x16xf32>
    %481 = arith.mulf %479, %83 : vector<8x16xf32>
    %482 = arith.mulf %479, %131 : vector<8x16xf32>
    %483 = arith.mulf %479, %179 : vector<8x16xf32>
    %484 = vector.extract_strided_slice %416 {offsets = [0, 9], sizes = [8, 1], strides = [1, 1]} : vector<8x16xf32> to vector<8x1xf32>
    %485 = vector.shape_cast %484 : vector<8x1xf32> to vector<8x1xf32>
    %486 = vector.broadcast %485 : vector<8x1xf32> to vector<8x16xf32>
    %487 = arith.mulf %486, %38 : vector<8x16xf32>
    %488 = arith.mulf %486, %86 : vector<8x16xf32>
    %489 = arith.mulf %486, %134 : vector<8x16xf32>
    %490 = arith.mulf %486, %182 : vector<8x16xf32>
    %491 = vector.extract_strided_slice %416 {offsets = [0, 10], sizes = [8, 1], strides = [1, 1]} : vector<8x16xf32> to vector<8x1xf32>
    %492 = vector.shape_cast %491 : vector<8x1xf32> to vector<8x1xf32>
    %493 = vector.broadcast %492 : vector<8x1xf32> to vector<8x16xf32>
    %494 = arith.mulf %493, %41 : vector<8x16xf32>
    %495 = arith.mulf %493, %89 : vector<8x16xf32>
    %496 = arith.mulf %493, %137 : vector<8x16xf32>
    %497 = arith.mulf %493, %185 : vector<8x16xf32>
    %498 = vector.extract_strided_slice %416 {offsets = [0, 11], sizes = [8, 1], strides = [1, 1]} : vector<8x16xf32> to vector<8x1xf32>
    %499 = vector.shape_cast %498 : vector<8x1xf32> to vector<8x1xf32>
    %500 = vector.broadcast %499 : vector<8x1xf32> to vector<8x16xf32>
    %501 = arith.mulf %500, %44 : vector<8x16xf32>
    %502 = arith.mulf %500, %92 : vector<8x16xf32>
    %503 = arith.mulf %500, %140 : vector<8x16xf32>
    %504 = arith.mulf %500, %188 : vector<8x16xf32>
    %505 = vector.extract_strided_slice %416 {offsets = [0, 12], sizes = [8, 1], strides = [1, 1]} : vector<8x16xf32> to vector<8x1xf32>
    %506 = vector.shape_cast %505 : vector<8x1xf32> to vector<8x1xf32>
    %507 = vector.broadcast %506 : vector<8x1xf32> to vector<8x16xf32>
    %508 = arith.mulf %507, %47 : vector<8x16xf32>
    %509 = arith.mulf %507, %95 : vector<8x16xf32>
    %510 = arith.mulf %507, %143 : vector<8x16xf32>
    %511 = arith.mulf %507, %191 : vector<8x16xf32>
    %512 = vector.extract_strided_slice %416 {offsets = [0, 13], sizes = [8, 1], strides = [1, 1]} : vector<8x16xf32> to vector<8x1xf32>
    %513 = vector.shape_cast %512 : vector<8x1xf32> to vector<8x1xf32>
    %514 = vector.broadcast %513 : vector<8x1xf32> to vector<8x16xf32>
    %515 = arith.mulf %514, %50 : vector<8x16xf32>
    %516 = arith.mulf %514, %98 : vector<8x16xf32>
    %517 = arith.mulf %514, %146 : vector<8x16xf32>
    %518 = arith.mulf %514, %194 : vector<8x16xf32>
    %519 = vector.extract_strided_slice %416 {offsets = [0, 14], sizes = [8, 1], strides = [1, 1]} : vector<8x16xf32> to vector<8x1xf32>
    %520 = vector.shape_cast %519 : vector<8x1xf32> to vector<8x1xf32>
    %521 = vector.broadcast %520 : vector<8x1xf32> to vector<8x16xf32>
    %522 = arith.mulf %521, %53 : vector<8x16xf32>
    %523 = arith.mulf %521, %101 : vector<8x16xf32>
    %524 = arith.mulf %521, %149 : vector<8x16xf32>
    %525 = arith.mulf %521, %197 : vector<8x16xf32>
    %526 = vector.extract_strided_slice %416 {offsets = [0, 15], sizes = [8, 1], strides = [1, 1]} : vector<8x16xf32> to vector<8x1xf32>
    %527 = vector.shape_cast %526 : vector<8x1xf32> to vector<8x1xf32>
    %528 = vector.broadcast %527 : vector<8x1xf32> to vector<8x16xf32>
    %529 = arith.mulf %528, %56 : vector<8x16xf32>
    %530 = arith.mulf %528, %104 : vector<8x16xf32>
    %531 = arith.mulf %528, %152 : vector<8x16xf32>
    %532 = arith.mulf %528, %200 : vector<8x16xf32>
    %533 = arith.addf %417, %424 : vector<8x16xf32>
    %534 = arith.addf %431, %438 : vector<8x16xf32>
    %535 = arith.addf %445, %452 : vector<8x16xf32>
    %536 = arith.addf %459, %466 : vector<8x16xf32>
    %537 = arith.addf %473, %480 : vector<8x16xf32>
    %538 = arith.addf %487, %494 : vector<8x16xf32>
    %539 = arith.addf %501, %508 : vector<8x16xf32>
    %540 = arith.addf %515, %522 : vector<8x16xf32>
    %541 = arith.addf %533, %534 : vector<8x16xf32>
    %542 = arith.addf %535, %536 : vector<8x16xf32>
    %543 = arith.addf %537, %538 : vector<8x16xf32>
    %544 = arith.addf %539, %540 : vector<8x16xf32>
    %545 = arith.addf %541, %542 : vector<8x16xf32>
    %546 = arith.addf %543, %544 : vector<8x16xf32>
    %547 = arith.addf %545, %546 : vector<8x16xf32>
    %548 = arith.addf %547, %529 : vector<8x16xf32>
    %549 = arith.addf %418, %425 : vector<8x16xf32>
    %550 = arith.addf %432, %439 : vector<8x16xf32>
    %551 = arith.addf %446, %453 : vector<8x16xf32>
    %552 = arith.addf %460, %467 : vector<8x16xf32>
    %553 = arith.addf %474, %481 : vector<8x16xf32>
    %554 = arith.addf %488, %495 : vector<8x16xf32>
    %555 = arith.addf %502, %509 : vector<8x16xf32>
    %556 = arith.addf %516, %523 : vector<8x16xf32>
    %557 = arith.addf %549, %550 : vector<8x16xf32>
    %558 = arith.addf %551, %552 : vector<8x16xf32>
    %559 = arith.addf %553, %554 : vector<8x16xf32>
    %560 = arith.addf %555, %556 : vector<8x16xf32>
    %561 = arith.addf %557, %558 : vector<8x16xf32>
    %562 = arith.addf %559, %560 : vector<8x16xf32>
    %563 = arith.addf %561, %562 : vector<8x16xf32>
    %564 = arith.addf %563, %530 : vector<8x16xf32>
    %565 = arith.addf %419, %426 : vector<8x16xf32>
    %566 = arith.addf %433, %440 : vector<8x16xf32>
    %567 = arith.addf %447, %454 : vector<8x16xf32>
    %568 = arith.addf %461, %468 : vector<8x16xf32>
    %569 = arith.addf %475, %482 : vector<8x16xf32>
    %570 = arith.addf %489, %496 : vector<8x16xf32>
    %571 = arith.addf %503, %510 : vector<8x16xf32>
    %572 = arith.addf %517, %524 : vector<8x16xf32>
    %573 = arith.addf %565, %566 : vector<8x16xf32>
    %574 = arith.addf %567, %568 : vector<8x16xf32>
    %575 = arith.addf %569, %570 : vector<8x16xf32>
    %576 = arith.addf %571, %572 : vector<8x16xf32>
    %577 = arith.addf %573, %574 : vector<8x16xf32>
    %578 = arith.addf %575, %576 : vector<8x16xf32>
    %579 = arith.addf %577, %578 : vector<8x16xf32>
    %580 = arith.addf %579, %531 : vector<8x16xf32>
    %581 = arith.addf %420, %427 : vector<8x16xf32>
    %582 = arith.addf %434, %441 : vector<8x16xf32>
    %583 = arith.addf %448, %455 : vector<8x16xf32>
    %584 = arith.addf %462, %469 : vector<8x16xf32>
    %585 = arith.addf %476, %483 : vector<8x16xf32>
    %586 = arith.addf %490, %497 : vector<8x16xf32>
    %587 = arith.addf %504, %511 : vector<8x16xf32>
    %588 = arith.addf %518, %525 : vector<8x16xf32>
    %589 = arith.addf %581, %582 : vector<8x16xf32>
    %590 = arith.addf %583, %584 : vector<8x16xf32>
    %591 = arith.addf %585, %586 : vector<8x16xf32>
    %592 = arith.addf %587, %588 : vector<8x16xf32>
    %593 = arith.addf %589, %590 : vector<8x16xf32>
    %594 = arith.addf %591, %592 : vector<8x16xf32>
    %595 = arith.addf %593, %594 : vector<8x16xf32>
    %596 = arith.addf %595, %532 : vector<8x16xf32>
    %cst_87 = arith.constant 5.000000e-01 : f32
    %597 = vector.broadcast %cst_87 : f32 to vector<8x16xf32>
    %598 = arith.mulf %597, %548 : vector<8x16xf32>
    %599 = math.tanh %598 : vector<8x16xf32>
    %cst_88 = arith.constant 5.000000e-01 : f32
    %600 = vector.broadcast %cst_88 : f32 to vector<8x16xf32>
    %601 = arith.mulf %600, %599 : vector<8x16xf32>
    %cst_89 = arith.constant 5.000000e-01 : f32
    %602 = vector.broadcast %cst_89 : f32 to vector<8x16xf32>
    %603 = arith.addf %601, %602 : vector<8x16xf32>
    %cst_90 = arith.constant 5.000000e-01 : f32
    %604 = vector.broadcast %cst_90 : f32 to vector<8x16xf32>
    %605 = arith.mulf %604, %564 : vector<8x16xf32>
    %606 = math.tanh %605 : vector<8x16xf32>
    %cst_91 = arith.constant 5.000000e-01 : f32
    %607 = vector.broadcast %cst_91 : f32 to vector<8x16xf32>
    %608 = arith.mulf %607, %606 : vector<8x16xf32>
    %cst_92 = arith.constant 5.000000e-01 : f32
    %609 = vector.broadcast %cst_92 : f32 to vector<8x16xf32>
    %610 = arith.addf %608, %609 : vector<8x16xf32>
    %cst_93 = arith.constant 5.000000e-01 : f32
    %611 = vector.broadcast %cst_93 : f32 to vector<8x16xf32>
    %612 = arith.mulf %611, %596 : vector<8x16xf32>
    %613 = math.tanh %612 : vector<8x16xf32>
    %cst_94 = arith.constant 5.000000e-01 : f32
    %614 = vector.broadcast %cst_94 : f32 to vector<8x16xf32>
    %615 = arith.mulf %614, %613 : vector<8x16xf32>
    %cst_95 = arith.constant 5.000000e-01 : f32
    %616 = vector.broadcast %cst_95 : f32 to vector<8x16xf32>
    %617 = arith.addf %615, %616 : vector<8x16xf32>
    %618 = math.tanh %580 : vector<8x16xf32>
    %619 = arith.mulf %610, %414 : vector<8x16xf32>
    %620 = arith.mulf %603, %618 : vector<8x16xf32>
    %621 = arith.addf %619, %620 : vector<8x16xf32>
    %622 = math.tanh %621 : vector<8x16xf32>
    %623 = arith.mulf %617, %622 : vector<8x16xf32>
    %624 = vector.extract_strided_slice %204 {offsets = [16, 0], sizes = [8, 16], strides = [1, 1]} : vector<64x16xf32> to vector<8x16xf32>
    %625 = vector.extract_strided_slice %205 {offsets = [16, 0], sizes = [8, 16], strides = [1, 1]} : vector<64x16xf32> to vector<8x16xf32>
    %626 = vector.extract_strided_slice %206 {offsets = [16, 0], sizes = [8, 16], strides = [1, 1]} : vector<64x16xf32> to vector<8x16xf32>
    %627 = vector.extract_strided_slice %207 {offsets = [16, 0], sizes = [8, 16], strides = [1, 1]} : vector<64x16xf32> to vector<8x16xf32>
    %628 = vector.extract_strided_slice %623 {offsets = [0, 0], sizes = [8, 1], strides = [1, 1]} : vector<8x16xf32> to vector<8x1xf32>
    %629 = vector.shape_cast %628 : vector<8x1xf32> to vector<8x1xf32>
    %630 = vector.broadcast %629 : vector<8x1xf32> to vector<8x16xf32>
    %631 = arith.mulf %630, %11 : vector<8x16xf32>
    %632 = arith.mulf %630, %59 : vector<8x16xf32>
    %633 = arith.mulf %630, %107 : vector<8x16xf32>
    %634 = arith.mulf %630, %155 : vector<8x16xf32>
    %635 = vector.extract_strided_slice %623 {offsets = [0, 1], sizes = [8, 1], strides = [1, 1]} : vector<8x16xf32> to vector<8x1xf32>
    %636 = vector.shape_cast %635 : vector<8x1xf32> to vector<8x1xf32>
    %637 = vector.broadcast %636 : vector<8x1xf32> to vector<8x16xf32>
    %638 = arith.mulf %637, %14 : vector<8x16xf32>
    %639 = arith.mulf %637, %62 : vector<8x16xf32>
    %640 = arith.mulf %637, %110 : vector<8x16xf32>
    %641 = arith.mulf %637, %158 : vector<8x16xf32>
    %642 = vector.extract_strided_slice %623 {offsets = [0, 2], sizes = [8, 1], strides = [1, 1]} : vector<8x16xf32> to vector<8x1xf32>
    %643 = vector.shape_cast %642 : vector<8x1xf32> to vector<8x1xf32>
    %644 = vector.broadcast %643 : vector<8x1xf32> to vector<8x16xf32>
    %645 = arith.mulf %644, %17 : vector<8x16xf32>
    %646 = arith.mulf %644, %65 : vector<8x16xf32>
    %647 = arith.mulf %644, %113 : vector<8x16xf32>
    %648 = arith.mulf %644, %161 : vector<8x16xf32>
    %649 = vector.extract_strided_slice %623 {offsets = [0, 3], sizes = [8, 1], strides = [1, 1]} : vector<8x16xf32> to vector<8x1xf32>
    %650 = vector.shape_cast %649 : vector<8x1xf32> to vector<8x1xf32>
    %651 = vector.broadcast %650 : vector<8x1xf32> to vector<8x16xf32>
    %652 = arith.mulf %651, %20 : vector<8x16xf32>
    %653 = arith.mulf %651, %68 : vector<8x16xf32>
    %654 = arith.mulf %651, %116 : vector<8x16xf32>
    %655 = arith.mulf %651, %164 : vector<8x16xf32>
    %656 = vector.extract_strided_slice %623 {offsets = [0, 4], sizes = [8, 1], strides = [1, 1]} : vector<8x16xf32> to vector<8x1xf32>
    %657 = vector.shape_cast %656 : vector<8x1xf32> to vector<8x1xf32>
    %658 = vector.broadcast %657 : vector<8x1xf32> to vector<8x16xf32>
    %659 = arith.mulf %658, %23 : vector<8x16xf32>
    %660 = arith.mulf %658, %71 : vector<8x16xf32>
    %661 = arith.mulf %658, %119 : vector<8x16xf32>
    %662 = arith.mulf %658, %167 : vector<8x16xf32>
    %663 = vector.extract_strided_slice %623 {offsets = [0, 5], sizes = [8, 1], strides = [1, 1]} : vector<8x16xf32> to vector<8x1xf32>
    %664 = vector.shape_cast %663 : vector<8x1xf32> to vector<8x1xf32>
    %665 = vector.broadcast %664 : vector<8x1xf32> to vector<8x16xf32>
    %666 = arith.mulf %665, %26 : vector<8x16xf32>
    %667 = arith.mulf %665, %74 : vector<8x16xf32>
    %668 = arith.mulf %665, %122 : vector<8x16xf32>
    %669 = arith.mulf %665, %170 : vector<8x16xf32>
    %670 = vector.extract_strided_slice %623 {offsets = [0, 6], sizes = [8, 1], strides = [1, 1]} : vector<8x16xf32> to vector<8x1xf32>
    %671 = vector.shape_cast %670 : vector<8x1xf32> to vector<8x1xf32>
    %672 = vector.broadcast %671 : vector<8x1xf32> to vector<8x16xf32>
    %673 = arith.mulf %672, %29 : vector<8x16xf32>
    %674 = arith.mulf %672, %77 : vector<8x16xf32>
    %675 = arith.mulf %672, %125 : vector<8x16xf32>
    %676 = arith.mulf %672, %173 : vector<8x16xf32>
    %677 = vector.extract_strided_slice %623 {offsets = [0, 7], sizes = [8, 1], strides = [1, 1]} : vector<8x16xf32> to vector<8x1xf32>
    %678 = vector.shape_cast %677 : vector<8x1xf32> to vector<8x1xf32>
    %679 = vector.broadcast %678 : vector<8x1xf32> to vector<8x16xf32>
    %680 = arith.mulf %679, %32 : vector<8x16xf32>
    %681 = arith.mulf %679, %80 : vector<8x16xf32>
    %682 = arith.mulf %679, %128 : vector<8x16xf32>
    %683 = arith.mulf %679, %176 : vector<8x16xf32>
    %684 = vector.extract_strided_slice %623 {offsets = [0, 8], sizes = [8, 1], strides = [1, 1]} : vector<8x16xf32> to vector<8x1xf32>
    %685 = vector.shape_cast %684 : vector<8x1xf32> to vector<8x1xf32>
    %686 = vector.broadcast %685 : vector<8x1xf32> to vector<8x16xf32>
    %687 = arith.mulf %686, %35 : vector<8x16xf32>
    %688 = arith.mulf %686, %83 : vector<8x16xf32>
    %689 = arith.mulf %686, %131 : vector<8x16xf32>
    %690 = arith.mulf %686, %179 : vector<8x16xf32>
    %691 = vector.extract_strided_slice %623 {offsets = [0, 9], sizes = [8, 1], strides = [1, 1]} : vector<8x16xf32> to vector<8x1xf32>
    %692 = vector.shape_cast %691 : vector<8x1xf32> to vector<8x1xf32>
    %693 = vector.broadcast %692 : vector<8x1xf32> to vector<8x16xf32>
    %694 = arith.mulf %693, %38 : vector<8x16xf32>
    %695 = arith.mulf %693, %86 : vector<8x16xf32>
    %696 = arith.mulf %693, %134 : vector<8x16xf32>
    %697 = arith.mulf %693, %182 : vector<8x16xf32>
    %698 = vector.extract_strided_slice %623 {offsets = [0, 10], sizes = [8, 1], strides = [1, 1]} : vector<8x16xf32> to vector<8x1xf32>
    %699 = vector.shape_cast %698 : vector<8x1xf32> to vector<8x1xf32>
    %700 = vector.broadcast %699 : vector<8x1xf32> to vector<8x16xf32>
    %701 = arith.mulf %700, %41 : vector<8x16xf32>
    %702 = arith.mulf %700, %89 : vector<8x16xf32>
    %703 = arith.mulf %700, %137 : vector<8x16xf32>
    %704 = arith.mulf %700, %185 : vector<8x16xf32>
    %705 = vector.extract_strided_slice %623 {offsets = [0, 11], sizes = [8, 1], strides = [1, 1]} : vector<8x16xf32> to vector<8x1xf32>
    %706 = vector.shape_cast %705 : vector<8x1xf32> to vector<8x1xf32>
    %707 = vector.broadcast %706 : vector<8x1xf32> to vector<8x16xf32>
    %708 = arith.mulf %707, %44 : vector<8x16xf32>
    %709 = arith.mulf %707, %92 : vector<8x16xf32>
    %710 = arith.mulf %707, %140 : vector<8x16xf32>
    %711 = arith.mulf %707, %188 : vector<8x16xf32>
    %712 = vector.extract_strided_slice %623 {offsets = [0, 12], sizes = [8, 1], strides = [1, 1]} : vector<8x16xf32> to vector<8x1xf32>
    %713 = vector.shape_cast %712 : vector<8x1xf32> to vector<8x1xf32>
    %714 = vector.broadcast %713 : vector<8x1xf32> to vector<8x16xf32>
    %715 = arith.mulf %714, %47 : vector<8x16xf32>
    %716 = arith.mulf %714, %95 : vector<8x16xf32>
    %717 = arith.mulf %714, %143 : vector<8x16xf32>
    %718 = arith.mulf %714, %191 : vector<8x16xf32>
    %719 = vector.extract_strided_slice %623 {offsets = [0, 13], sizes = [8, 1], strides = [1, 1]} : vector<8x16xf32> to vector<8x1xf32>
    %720 = vector.shape_cast %719 : vector<8x1xf32> to vector<8x1xf32>
    %721 = vector.broadcast %720 : vector<8x1xf32> to vector<8x16xf32>
    %722 = arith.mulf %721, %50 : vector<8x16xf32>
    %723 = arith.mulf %721, %98 : vector<8x16xf32>
    %724 = arith.mulf %721, %146 : vector<8x16xf32>
    %725 = arith.mulf %721, %194 : vector<8x16xf32>
    %726 = vector.extract_strided_slice %623 {offsets = [0, 14], sizes = [8, 1], strides = [1, 1]} : vector<8x16xf32> to vector<8x1xf32>
    %727 = vector.shape_cast %726 : vector<8x1xf32> to vector<8x1xf32>
    %728 = vector.broadcast %727 : vector<8x1xf32> to vector<8x16xf32>
    %729 = arith.mulf %728, %53 : vector<8x16xf32>
    %730 = arith.mulf %728, %101 : vector<8x16xf32>
    %731 = arith.mulf %728, %149 : vector<8x16xf32>
    %732 = arith.mulf %728, %197 : vector<8x16xf32>
    %733 = vector.extract_strided_slice %623 {offsets = [0, 15], sizes = [8, 1], strides = [1, 1]} : vector<8x16xf32> to vector<8x1xf32>
    %734 = vector.shape_cast %733 : vector<8x1xf32> to vector<8x1xf32>
    %735 = vector.broadcast %734 : vector<8x1xf32> to vector<8x16xf32>
    %736 = arith.mulf %735, %56 : vector<8x16xf32>
    %737 = arith.mulf %735, %104 : vector<8x16xf32>
    %738 = arith.mulf %735, %152 : vector<8x16xf32>
    %739 = arith.mulf %735, %200 : vector<8x16xf32>
    %740 = arith.addf %624, %631 : vector<8x16xf32>
    %741 = arith.addf %638, %645 : vector<8x16xf32>
    %742 = arith.addf %652, %659 : vector<8x16xf32>
    %743 = arith.addf %666, %673 : vector<8x16xf32>
    %744 = arith.addf %680, %687 : vector<8x16xf32>
    %745 = arith.addf %694, %701 : vector<8x16xf32>
    %746 = arith.addf %708, %715 : vector<8x16xf32>
    %747 = arith.addf %722, %729 : vector<8x16xf32>
    %748 = arith.addf %740, %741 : vector<8x16xf32>
    %749 = arith.addf %742, %743 : vector<8x16xf32>
    %750 = arith.addf %744, %745 : vector<8x16xf32>
    %751 = arith.addf %746, %747 : vector<8x16xf32>
    %752 = arith.addf %748, %749 : vector<8x16xf32>
    %753 = arith.addf %750, %751 : vector<8x16xf32>
    %754 = arith.addf %752, %753 : vector<8x16xf32>
    %755 = arith.addf %754, %736 : vector<8x16xf32>
    %756 = arith.addf %625, %632 : vector<8x16xf32>
    %757 = arith.addf %639, %646 : vector<8x16xf32>
    %758 = arith.addf %653, %660 : vector<8x16xf32>
    %759 = arith.addf %667, %674 : vector<8x16xf32>
    %760 = arith.addf %681, %688 : vector<8x16xf32>
    %761 = arith.addf %695, %702 : vector<8x16xf32>
    %762 = arith.addf %709, %716 : vector<8x16xf32>
    %763 = arith.addf %723, %730 : vector<8x16xf32>
    %764 = arith.addf %756, %757 : vector<8x16xf32>
    %765 = arith.addf %758, %759 : vector<8x16xf32>
    %766 = arith.addf %760, %761 : vector<8x16xf32>
    %767 = arith.addf %762, %763 : vector<8x16xf32>
    %768 = arith.addf %764, %765 : vector<8x16xf32>
    %769 = arith.addf %766, %767 : vector<8x16xf32>
    %770 = arith.addf %768, %769 : vector<8x16xf32>
    %771 = arith.addf %770, %737 : vector<8x16xf32>
    %772 = arith.addf %626, %633 : vector<8x16xf32>
    %773 = arith.addf %640, %647 : vector<8x16xf32>
    %774 = arith.addf %654, %661 : vector<8x16xf32>
    %775 = arith.addf %668, %675 : vector<8x16xf32>
    %776 = arith.addf %682, %689 : vector<8x16xf32>
    %777 = arith.addf %696, %703 : vector<8x16xf32>
    %778 = arith.addf %710, %717 : vector<8x16xf32>
    %779 = arith.addf %724, %731 : vector<8x16xf32>
    %780 = arith.addf %772, %773 : vector<8x16xf32>
    %781 = arith.addf %774, %775 : vector<8x16xf32>
    %782 = arith.addf %776, %777 : vector<8x16xf32>
    %783 = arith.addf %778, %779 : vector<8x16xf32>
    %784 = arith.addf %780, %781 : vector<8x16xf32>
    %785 = arith.addf %782, %783 : vector<8x16xf32>
    %786 = arith.addf %784, %785 : vector<8x16xf32>
    %787 = arith.addf %786, %738 : vector<8x16xf32>
    %788 = arith.addf %627, %634 : vector<8x16xf32>
    %789 = arith.addf %641, %648 : vector<8x16xf32>
    %790 = arith.addf %655, %662 : vector<8x16xf32>
    %791 = arith.addf %669, %676 : vector<8x16xf32>
    %792 = arith.addf %683, %690 : vector<8x16xf32>
    %793 = arith.addf %697, %704 : vector<8x16xf32>
    %794 = arith.addf %711, %718 : vector<8x16xf32>
    %795 = arith.addf %725, %732 : vector<8x16xf32>
    %796 = arith.addf %788, %789 : vector<8x16xf32>
    %797 = arith.addf %790, %791 : vector<8x16xf32>
    %798 = arith.addf %792, %793 : vector<8x16xf32>
    %799 = arith.addf %794, %795 : vector<8x16xf32>
    %800 = arith.addf %796, %797 : vector<8x16xf32>
    %801 = arith.addf %798, %799 : vector<8x16xf32>
    %802 = arith.addf %800, %801 : vector<8x16xf32>
    %803 = arith.addf %802, %739 : vector<8x16xf32>
    %cst_96 = arith.constant 5.000000e-01 : f32
    %804 = vector.broadcast %cst_96 : f32 to vector<8x16xf32>
    %805 = arith.mulf %804, %755 : vector<8x16xf32>
    %806 = math.tanh %805 : vector<8x16xf32>
    %cst_97 = arith.constant 5.000000e-01 : f32
    %807 = vector.broadcast %cst_97 : f32 to vector<8x16xf32>
    %808 = arith.mulf %807, %806 : vector<8x16xf32>
    %cst_98 = arith.constant 5.000000e-01 : f32
    %809 = vector.broadcast %cst_98 : f32 to vector<8x16xf32>
    %810 = arith.addf %808, %809 : vector<8x16xf32>
    %cst_99 = arith.constant 5.000000e-01 : f32
    %811 = vector.broadcast %cst_99 : f32 to vector<8x16xf32>
    %812 = arith.mulf %811, %771 : vector<8x16xf32>
    %813 = math.tanh %812 : vector<8x16xf32>
    %cst_100 = arith.constant 5.000000e-01 : f32
    %814 = vector.broadcast %cst_100 : f32 to vector<8x16xf32>
    %815 = arith.mulf %814, %813 : vector<8x16xf32>
    %cst_101 = arith.constant 5.000000e-01 : f32
    %816 = vector.broadcast %cst_101 : f32 to vector<8x16xf32>
    %817 = arith.addf %815, %816 : vector<8x16xf32>
    %cst_102 = arith.constant 5.000000e-01 : f32
    %818 = vector.broadcast %cst_102 : f32 to vector<8x16xf32>
    %819 = arith.mulf %818, %803 : vector<8x16xf32>
    %820 = math.tanh %819 : vector<8x16xf32>
    %cst_103 = arith.constant 5.000000e-01 : f32
    %821 = vector.broadcast %cst_103 : f32 to vector<8x16xf32>
    %822 = arith.mulf %821, %820 : vector<8x16xf32>
    %cst_104 = arith.constant 5.000000e-01 : f32
    %823 = vector.broadcast %cst_104 : f32 to vector<8x16xf32>
    %824 = arith.addf %822, %823 : vector<8x16xf32>
    %825 = math.tanh %787 : vector<8x16xf32>
    %826 = arith.mulf %817, %621 : vector<8x16xf32>
    %827 = arith.mulf %810, %825 : vector<8x16xf32>
    %828 = arith.addf %826, %827 : vector<8x16xf32>
    %829 = math.tanh %828 : vector<8x16xf32>
    %830 = arith.mulf %824, %829 : vector<8x16xf32>
    %831 = vector.extract_strided_slice %204 {offsets = [24, 0], sizes = [8, 16], strides = [1, 1]} : vector<64x16xf32> to vector<8x16xf32>
    %832 = vector.extract_strided_slice %205 {offsets = [24, 0], sizes = [8, 16], strides = [1, 1]} : vector<64x16xf32> to vector<8x16xf32>
    %833 = vector.extract_strided_slice %206 {offsets = [24, 0], sizes = [8, 16], strides = [1, 1]} : vector<64x16xf32> to vector<8x16xf32>
    %834 = vector.extract_strided_slice %207 {offsets = [24, 0], sizes = [8, 16], strides = [1, 1]} : vector<64x16xf32> to vector<8x16xf32>
    %835 = vector.extract_strided_slice %830 {offsets = [0, 0], sizes = [8, 1], strides = [1, 1]} : vector<8x16xf32> to vector<8x1xf32>
    %836 = vector.shape_cast %835 : vector<8x1xf32> to vector<8x1xf32>
    %837 = vector.broadcast %836 : vector<8x1xf32> to vector<8x16xf32>
    %838 = arith.mulf %837, %11 : vector<8x16xf32>
    %839 = arith.mulf %837, %59 : vector<8x16xf32>
    %840 = arith.mulf %837, %107 : vector<8x16xf32>
    %841 = arith.mulf %837, %155 : vector<8x16xf32>
    %842 = vector.extract_strided_slice %830 {offsets = [0, 1], sizes = [8, 1], strides = [1, 1]} : vector<8x16xf32> to vector<8x1xf32>
    %843 = vector.shape_cast %842 : vector<8x1xf32> to vector<8x1xf32>
    %844 = vector.broadcast %843 : vector<8x1xf32> to vector<8x16xf32>
    %845 = arith.mulf %844, %14 : vector<8x16xf32>
    %846 = arith.mulf %844, %62 : vector<8x16xf32>
    %847 = arith.mulf %844, %110 : vector<8x16xf32>
    %848 = arith.mulf %844, %158 : vector<8x16xf32>
    %849 = vector.extract_strided_slice %830 {offsets = [0, 2], sizes = [8, 1], strides = [1, 1]} : vector<8x16xf32> to vector<8x1xf32>
    %850 = vector.shape_cast %849 : vector<8x1xf32> to vector<8x1xf32>
    %851 = vector.broadcast %850 : vector<8x1xf32> to vector<8x16xf32>
    %852 = arith.mulf %851, %17 : vector<8x16xf32>
    %853 = arith.mulf %851, %65 : vector<8x16xf32>
    %854 = arith.mulf %851, %113 : vector<8x16xf32>
    %855 = arith.mulf %851, %161 : vector<8x16xf32>
    %856 = vector.extract_strided_slice %830 {offsets = [0, 3], sizes = [8, 1], strides = [1, 1]} : vector<8x16xf32> to vector<8x1xf32>
    %857 = vector.shape_cast %856 : vector<8x1xf32> to vector<8x1xf32>
    %858 = vector.broadcast %857 : vector<8x1xf32> to vector<8x16xf32>
    %859 = arith.mulf %858, %20 : vector<8x16xf32>
    %860 = arith.mulf %858, %68 : vector<8x16xf32>
    %861 = arith.mulf %858, %116 : vector<8x16xf32>
    %862 = arith.mulf %858, %164 : vector<8x16xf32>
    %863 = vector.extract_strided_slice %830 {offsets = [0, 4], sizes = [8, 1], strides = [1, 1]} : vector<8x16xf32> to vector<8x1xf32>
    %864 = vector.shape_cast %863 : vector<8x1xf32> to vector<8x1xf32>
    %865 = vector.broadcast %864 : vector<8x1xf32> to vector<8x16xf32>
    %866 = arith.mulf %865, %23 : vector<8x16xf32>
    %867 = arith.mulf %865, %71 : vector<8x16xf32>
    %868 = arith.mulf %865, %119 : vector<8x16xf32>
    %869 = arith.mulf %865, %167 : vector<8x16xf32>
    %870 = vector.extract_strided_slice %830 {offsets = [0, 5], sizes = [8, 1], strides = [1, 1]} : vector<8x16xf32> to vector<8x1xf32>
    %871 = vector.shape_cast %870 : vector<8x1xf32> to vector<8x1xf32>
    %872 = vector.broadcast %871 : vector<8x1xf32> to vector<8x16xf32>
    %873 = arith.mulf %872, %26 : vector<8x16xf32>
    %874 = arith.mulf %872, %74 : vector<8x16xf32>
    %875 = arith.mulf %872, %122 : vector<8x16xf32>
    %876 = arith.mulf %872, %170 : vector<8x16xf32>
    %877 = vector.extract_strided_slice %830 {offsets = [0, 6], sizes = [8, 1], strides = [1, 1]} : vector<8x16xf32> to vector<8x1xf32>
    %878 = vector.shape_cast %877 : vector<8x1xf32> to vector<8x1xf32>
    %879 = vector.broadcast %878 : vector<8x1xf32> to vector<8x16xf32>
    %880 = arith.mulf %879, %29 : vector<8x16xf32>
    %881 = arith.mulf %879, %77 : vector<8x16xf32>
    %882 = arith.mulf %879, %125 : vector<8x16xf32>
    %883 = arith.mulf %879, %173 : vector<8x16xf32>
    %884 = vector.extract_strided_slice %830 {offsets = [0, 7], sizes = [8, 1], strides = [1, 1]} : vector<8x16xf32> to vector<8x1xf32>
    %885 = vector.shape_cast %884 : vector<8x1xf32> to vector<8x1xf32>
    %886 = vector.broadcast %885 : vector<8x1xf32> to vector<8x16xf32>
    %887 = arith.mulf %886, %32 : vector<8x16xf32>
    %888 = arith.mulf %886, %80 : vector<8x16xf32>
    %889 = arith.mulf %886, %128 : vector<8x16xf32>
    %890 = arith.mulf %886, %176 : vector<8x16xf32>
    %891 = vector.extract_strided_slice %830 {offsets = [0, 8], sizes = [8, 1], strides = [1, 1]} : vector<8x16xf32> to vector<8x1xf32>
    %892 = vector.shape_cast %891 : vector<8x1xf32> to vector<8x1xf32>
    %893 = vector.broadcast %892 : vector<8x1xf32> to vector<8x16xf32>
    %894 = arith.mulf %893, %35 : vector<8x16xf32>
    %895 = arith.mulf %893, %83 : vector<8x16xf32>
    %896 = arith.mulf %893, %131 : vector<8x16xf32>
    %897 = arith.mulf %893, %179 : vector<8x16xf32>
    %898 = vector.extract_strided_slice %830 {offsets = [0, 9], sizes = [8, 1], strides = [1, 1]} : vector<8x16xf32> to vector<8x1xf32>
    %899 = vector.shape_cast %898 : vector<8x1xf32> to vector<8x1xf32>
    %900 = vector.broadcast %899 : vector<8x1xf32> to vector<8x16xf32>
    %901 = arith.mulf %900, %38 : vector<8x16xf32>
    %902 = arith.mulf %900, %86 : vector<8x16xf32>
    %903 = arith.mulf %900, %134 : vector<8x16xf32>
    %904 = arith.mulf %900, %182 : vector<8x16xf32>
    %905 = vector.extract_strided_slice %830 {offsets = [0, 10], sizes = [8, 1], strides = [1, 1]} : vector<8x16xf32> to vector<8x1xf32>
    %906 = vector.shape_cast %905 : vector<8x1xf32> to vector<8x1xf32>
    %907 = vector.broadcast %906 : vector<8x1xf32> to vector<8x16xf32>
    %908 = arith.mulf %907, %41 : vector<8x16xf32>
    %909 = arith.mulf %907, %89 : vector<8x16xf32>
    %910 = arith.mulf %907, %137 : vector<8x16xf32>
    %911 = arith.mulf %907, %185 : vector<8x16xf32>
    %912 = vector.extract_strided_slice %830 {offsets = [0, 11], sizes = [8, 1], strides = [1, 1]} : vector<8x16xf32> to vector<8x1xf32>
    %913 = vector.shape_cast %912 : vector<8x1xf32> to vector<8x1xf32>
    %914 = vector.broadcast %913 : vector<8x1xf32> to vector<8x16xf32>
    %915 = arith.mulf %914, %44 : vector<8x16xf32>
    %916 = arith.mulf %914, %92 : vector<8x16xf32>
    %917 = arith.mulf %914, %140 : vector<8x16xf32>
    %918 = arith.mulf %914, %188 : vector<8x16xf32>
    %919 = vector.extract_strided_slice %830 {offsets = [0, 12], sizes = [8, 1], strides = [1, 1]} : vector<8x16xf32> to vector<8x1xf32>
    %920 = vector.shape_cast %919 : vector<8x1xf32> to vector<8x1xf32>
    %921 = vector.broadcast %920 : vector<8x1xf32> to vector<8x16xf32>
    %922 = arith.mulf %921, %47 : vector<8x16xf32>
    %923 = arith.mulf %921, %95 : vector<8x16xf32>
    %924 = arith.mulf %921, %143 : vector<8x16xf32>
    %925 = arith.mulf %921, %191 : vector<8x16xf32>
    %926 = vector.extract_strided_slice %830 {offsets = [0, 13], sizes = [8, 1], strides = [1, 1]} : vector<8x16xf32> to vector<8x1xf32>
    %927 = vector.shape_cast %926 : vector<8x1xf32> to vector<8x1xf32>
    %928 = vector.broadcast %927 : vector<8x1xf32> to vector<8x16xf32>
    %929 = arith.mulf %928, %50 : vector<8x16xf32>
    %930 = arith.mulf %928, %98 : vector<8x16xf32>
    %931 = arith.mulf %928, %146 : vector<8x16xf32>
    %932 = arith.mulf %928, %194 : vector<8x16xf32>
    %933 = vector.extract_strided_slice %830 {offsets = [0, 14], sizes = [8, 1], strides = [1, 1]} : vector<8x16xf32> to vector<8x1xf32>
    %934 = vector.shape_cast %933 : vector<8x1xf32> to vector<8x1xf32>
    %935 = vector.broadcast %934 : vector<8x1xf32> to vector<8x16xf32>
    %936 = arith.mulf %935, %53 : vector<8x16xf32>
    %937 = arith.mulf %935, %101 : vector<8x16xf32>
    %938 = arith.mulf %935, %149 : vector<8x16xf32>
    %939 = arith.mulf %935, %197 : vector<8x16xf32>
    %940 = vector.extract_strided_slice %830 {offsets = [0, 15], sizes = [8, 1], strides = [1, 1]} : vector<8x16xf32> to vector<8x1xf32>
    %941 = vector.shape_cast %940 : vector<8x1xf32> to vector<8x1xf32>
    %942 = vector.broadcast %941 : vector<8x1xf32> to vector<8x16xf32>
    %943 = arith.mulf %942, %56 : vector<8x16xf32>
    %944 = arith.mulf %942, %104 : vector<8x16xf32>
    %945 = arith.mulf %942, %152 : vector<8x16xf32>
    %946 = arith.mulf %942, %200 : vector<8x16xf32>
    %947 = arith.addf %831, %838 : vector<8x16xf32>
    %948 = arith.addf %845, %852 : vector<8x16xf32>
    %949 = arith.addf %859, %866 : vector<8x16xf32>
    %950 = arith.addf %873, %880 : vector<8x16xf32>
    %951 = arith.addf %887, %894 : vector<8x16xf32>
    %952 = arith.addf %901, %908 : vector<8x16xf32>
    %953 = arith.addf %915, %922 : vector<8x16xf32>
    %954 = arith.addf %929, %936 : vector<8x16xf32>
    %955 = arith.addf %947, %948 : vector<8x16xf32>
    %956 = arith.addf %949, %950 : vector<8x16xf32>
    %957 = arith.addf %951, %952 : vector<8x16xf32>
    %958 = arith.addf %953, %954 : vector<8x16xf32>
    %959 = arith.addf %955, %956 : vector<8x16xf32>
    %960 = arith.addf %957, %958 : vector<8x16xf32>
    %961 = arith.addf %959, %960 : vector<8x16xf32>
    %962 = arith.addf %961, %943 : vector<8x16xf32>
    %963 = arith.addf %832, %839 : vector<8x16xf32>
    %964 = arith.addf %846, %853 : vector<8x16xf32>
    %965 = arith.addf %860, %867 : vector<8x16xf32>
    %966 = arith.addf %874, %881 : vector<8x16xf32>
    %967 = arith.addf %888, %895 : vector<8x16xf32>
    %968 = arith.addf %902, %909 : vector<8x16xf32>
    %969 = arith.addf %916, %923 : vector<8x16xf32>
    %970 = arith.addf %930, %937 : vector<8x16xf32>
    %971 = arith.addf %963, %964 : vector<8x16xf32>
    %972 = arith.addf %965, %966 : vector<8x16xf32>
    %973 = arith.addf %967, %968 : vector<8x16xf32>
    %974 = arith.addf %969, %970 : vector<8x16xf32>
    %975 = arith.addf %971, %972 : vector<8x16xf32>
    %976 = arith.addf %973, %974 : vector<8x16xf32>
    %977 = arith.addf %975, %976 : vector<8x16xf32>
    %978 = arith.addf %977, %944 : vector<8x16xf32>
    %979 = arith.addf %833, %840 : vector<8x16xf32>
    %980 = arith.addf %847, %854 : vector<8x16xf32>
    %981 = arith.addf %861, %868 : vector<8x16xf32>
    %982 = arith.addf %875, %882 : vector<8x16xf32>
    %983 = arith.addf %889, %896 : vector<8x16xf32>
    %984 = arith.addf %903, %910 : vector<8x16xf32>
    %985 = arith.addf %917, %924 : vector<8x16xf32>
    %986 = arith.addf %931, %938 : vector<8x16xf32>
    %987 = arith.addf %979, %980 : vector<8x16xf32>
    %988 = arith.addf %981, %982 : vector<8x16xf32>
    %989 = arith.addf %983, %984 : vector<8x16xf32>
    %990 = arith.addf %985, %986 : vector<8x16xf32>
    %991 = arith.addf %987, %988 : vector<8x16xf32>
    %992 = arith.addf %989, %990 : vector<8x16xf32>
    %993 = arith.addf %991, %992 : vector<8x16xf32>
    %994 = arith.addf %993, %945 : vector<8x16xf32>
    %995 = arith.addf %834, %841 : vector<8x16xf32>
    %996 = arith.addf %848, %855 : vector<8x16xf32>
    %997 = arith.addf %862, %869 : vector<8x16xf32>
    %998 = arith.addf %876, %883 : vector<8x16xf32>
    %999 = arith.addf %890, %897 : vector<8x16xf32>
    %1000 = arith.addf %904, %911 : vector<8x16xf32>
    %1001 = arith.addf %918, %925 : vector<8x16xf32>
    %1002 = arith.addf %932, %939 : vector<8x16xf32>
    %1003 = arith.addf %995, %996 : vector<8x16xf32>
    %1004 = arith.addf %997, %998 : vector<8x16xf32>
    %1005 = arith.addf %999, %1000 : vector<8x16xf32>
    %1006 = arith.addf %1001, %1002 : vector<8x16xf32>
    %1007 = arith.addf %1003, %1004 : vector<8x16xf32>
    %1008 = arith.addf %1005, %1006 : vector<8x16xf32>
    %1009 = arith.addf %1007, %1008 : vector<8x16xf32>
    %1010 = arith.addf %1009, %946 : vector<8x16xf32>
    %cst_105 = arith.constant 5.000000e-01 : f32
    %1011 = vector.broadcast %cst_105 : f32 to vector<8x16xf32>
    %1012 = arith.mulf %1011, %962 : vector<8x16xf32>
    %1013 = math.tanh %1012 : vector<8x16xf32>
    %cst_106 = arith.constant 5.000000e-01 : f32
    %1014 = vector.broadcast %cst_106 : f32 to vector<8x16xf32>
    %1015 = arith.mulf %1014, %1013 : vector<8x16xf32>
    %cst_107 = arith.constant 5.000000e-01 : f32
    %1016 = vector.broadcast %cst_107 : f32 to vector<8x16xf32>
    %1017 = arith.addf %1015, %1016 : vector<8x16xf32>
    %cst_108 = arith.constant 5.000000e-01 : f32
    %1018 = vector.broadcast %cst_108 : f32 to vector<8x16xf32>
    %1019 = arith.mulf %1018, %978 : vector<8x16xf32>
    %1020 = math.tanh %1019 : vector<8x16xf32>
    %cst_109 = arith.constant 5.000000e-01 : f32
    %1021 = vector.broadcast %cst_109 : f32 to vector<8x16xf32>
    %1022 = arith.mulf %1021, %1020 : vector<8x16xf32>
    %cst_110 = arith.constant 5.000000e-01 : f32
    %1023 = vector.broadcast %cst_110 : f32 to vector<8x16xf32>
    %1024 = arith.addf %1022, %1023 : vector<8x16xf32>
    %cst_111 = arith.constant 5.000000e-01 : f32
    %1025 = vector.broadcast %cst_111 : f32 to vector<8x16xf32>
    %1026 = arith.mulf %1025, %1010 : vector<8x16xf32>
    %1027 = math.tanh %1026 : vector<8x16xf32>
    %cst_112 = arith.constant 5.000000e-01 : f32
    %1028 = vector.broadcast %cst_112 : f32 to vector<8x16xf32>
    %1029 = arith.mulf %1028, %1027 : vector<8x16xf32>
    %cst_113 = arith.constant 5.000000e-01 : f32
    %1030 = vector.broadcast %cst_113 : f32 to vector<8x16xf32>
    %1031 = arith.addf %1029, %1030 : vector<8x16xf32>
    %1032 = math.tanh %994 : vector<8x16xf32>
    %1033 = arith.mulf %1024, %828 : vector<8x16xf32>
    %1034 = arith.mulf %1017, %1032 : vector<8x16xf32>
    %1035 = arith.addf %1033, %1034 : vector<8x16xf32>
    %1036 = math.tanh %1035 : vector<8x16xf32>
    %1037 = arith.mulf %1031, %1036 : vector<8x16xf32>
    %1038 = vector.extract_strided_slice %204 {offsets = [32, 0], sizes = [8, 16], strides = [1, 1]} : vector<64x16xf32> to vector<8x16xf32>
    %1039 = vector.extract_strided_slice %205 {offsets = [32, 0], sizes = [8, 16], strides = [1, 1]} : vector<64x16xf32> to vector<8x16xf32>
    %1040 = vector.extract_strided_slice %206 {offsets = [32, 0], sizes = [8, 16], strides = [1, 1]} : vector<64x16xf32> to vector<8x16xf32>
    %1041 = vector.extract_strided_slice %207 {offsets = [32, 0], sizes = [8, 16], strides = [1, 1]} : vector<64x16xf32> to vector<8x16xf32>
    %1042 = vector.extract_strided_slice %1037 {offsets = [0, 0], sizes = [8, 1], strides = [1, 1]} : vector<8x16xf32> to vector<8x1xf32>
    %1043 = vector.shape_cast %1042 : vector<8x1xf32> to vector<8x1xf32>
    %1044 = vector.broadcast %1043 : vector<8x1xf32> to vector<8x16xf32>
    %1045 = arith.mulf %1044, %11 : vector<8x16xf32>
    %1046 = arith.mulf %1044, %59 : vector<8x16xf32>
    %1047 = arith.mulf %1044, %107 : vector<8x16xf32>
    %1048 = arith.mulf %1044, %155 : vector<8x16xf32>
    %1049 = vector.extract_strided_slice %1037 {offsets = [0, 1], sizes = [8, 1], strides = [1, 1]} : vector<8x16xf32> to vector<8x1xf32>
    %1050 = vector.shape_cast %1049 : vector<8x1xf32> to vector<8x1xf32>
    %1051 = vector.broadcast %1050 : vector<8x1xf32> to vector<8x16xf32>
    %1052 = arith.mulf %1051, %14 : vector<8x16xf32>
    %1053 = arith.mulf %1051, %62 : vector<8x16xf32>
    %1054 = arith.mulf %1051, %110 : vector<8x16xf32>
    %1055 = arith.mulf %1051, %158 : vector<8x16xf32>
    %1056 = vector.extract_strided_slice %1037 {offsets = [0, 2], sizes = [8, 1], strides = [1, 1]} : vector<8x16xf32> to vector<8x1xf32>
    %1057 = vector.shape_cast %1056 : vector<8x1xf32> to vector<8x1xf32>
    %1058 = vector.broadcast %1057 : vector<8x1xf32> to vector<8x16xf32>
    %1059 = arith.mulf %1058, %17 : vector<8x16xf32>
    %1060 = arith.mulf %1058, %65 : vector<8x16xf32>
    %1061 = arith.mulf %1058, %113 : vector<8x16xf32>
    %1062 = arith.mulf %1058, %161 : vector<8x16xf32>
    %1063 = vector.extract_strided_slice %1037 {offsets = [0, 3], sizes = [8, 1], strides = [1, 1]} : vector<8x16xf32> to vector<8x1xf32>
    %1064 = vector.shape_cast %1063 : vector<8x1xf32> to vector<8x1xf32>
    %1065 = vector.broadcast %1064 : vector<8x1xf32> to vector<8x16xf32>
    %1066 = arith.mulf %1065, %20 : vector<8x16xf32>
    %1067 = arith.mulf %1065, %68 : vector<8x16xf32>
    %1068 = arith.mulf %1065, %116 : vector<8x16xf32>
    %1069 = arith.mulf %1065, %164 : vector<8x16xf32>
    %1070 = vector.extract_strided_slice %1037 {offsets = [0, 4], sizes = [8, 1], strides = [1, 1]} : vector<8x16xf32> to vector<8x1xf32>
    %1071 = vector.shape_cast %1070 : vector<8x1xf32> to vector<8x1xf32>
    %1072 = vector.broadcast %1071 : vector<8x1xf32> to vector<8x16xf32>
    %1073 = arith.mulf %1072, %23 : vector<8x16xf32>
    %1074 = arith.mulf %1072, %71 : vector<8x16xf32>
    %1075 = arith.mulf %1072, %119 : vector<8x16xf32>
    %1076 = arith.mulf %1072, %167 : vector<8x16xf32>
    %1077 = vector.extract_strided_slice %1037 {offsets = [0, 5], sizes = [8, 1], strides = [1, 1]} : vector<8x16xf32> to vector<8x1xf32>
    %1078 = vector.shape_cast %1077 : vector<8x1xf32> to vector<8x1xf32>
    %1079 = vector.broadcast %1078 : vector<8x1xf32> to vector<8x16xf32>
    %1080 = arith.mulf %1079, %26 : vector<8x16xf32>
    %1081 = arith.mulf %1079, %74 : vector<8x16xf32>
    %1082 = arith.mulf %1079, %122 : vector<8x16xf32>
    %1083 = arith.mulf %1079, %170 : vector<8x16xf32>
    %1084 = vector.extract_strided_slice %1037 {offsets = [0, 6], sizes = [8, 1], strides = [1, 1]} : vector<8x16xf32> to vector<8x1xf32>
    %1085 = vector.shape_cast %1084 : vector<8x1xf32> to vector<8x1xf32>
    %1086 = vector.broadcast %1085 : vector<8x1xf32> to vector<8x16xf32>
    %1087 = arith.mulf %1086, %29 : vector<8x16xf32>
    %1088 = arith.mulf %1086, %77 : vector<8x16xf32>
    %1089 = arith.mulf %1086, %125 : vector<8x16xf32>
    %1090 = arith.mulf %1086, %173 : vector<8x16xf32>
    %1091 = vector.extract_strided_slice %1037 {offsets = [0, 7], sizes = [8, 1], strides = [1, 1]} : vector<8x16xf32> to vector<8x1xf32>
    %1092 = vector.shape_cast %1091 : vector<8x1xf32> to vector<8x1xf32>
    %1093 = vector.broadcast %1092 : vector<8x1xf32> to vector<8x16xf32>
    %1094 = arith.mulf %1093, %32 : vector<8x16xf32>
    %1095 = arith.mulf %1093, %80 : vector<8x16xf32>
    %1096 = arith.mulf %1093, %128 : vector<8x16xf32>
    %1097 = arith.mulf %1093, %176 : vector<8x16xf32>
    %1098 = vector.extract_strided_slice %1037 {offsets = [0, 8], sizes = [8, 1], strides = [1, 1]} : vector<8x16xf32> to vector<8x1xf32>
    %1099 = vector.shape_cast %1098 : vector<8x1xf32> to vector<8x1xf32>
    %1100 = vector.broadcast %1099 : vector<8x1xf32> to vector<8x16xf32>
    %1101 = arith.mulf %1100, %35 : vector<8x16xf32>
    %1102 = arith.mulf %1100, %83 : vector<8x16xf32>
    %1103 = arith.mulf %1100, %131 : vector<8x16xf32>
    %1104 = arith.mulf %1100, %179 : vector<8x16xf32>
    %1105 = vector.extract_strided_slice %1037 {offsets = [0, 9], sizes = [8, 1], strides = [1, 1]} : vector<8x16xf32> to vector<8x1xf32>
    %1106 = vector.shape_cast %1105 : vector<8x1xf32> to vector<8x1xf32>
    %1107 = vector.broadcast %1106 : vector<8x1xf32> to vector<8x16xf32>
    %1108 = arith.mulf %1107, %38 : vector<8x16xf32>
    %1109 = arith.mulf %1107, %86 : vector<8x16xf32>
    %1110 = arith.mulf %1107, %134 : vector<8x16xf32>
    %1111 = arith.mulf %1107, %182 : vector<8x16xf32>
    %1112 = vector.extract_strided_slice %1037 {offsets = [0, 10], sizes = [8, 1], strides = [1, 1]} : vector<8x16xf32> to vector<8x1xf32>
    %1113 = vector.shape_cast %1112 : vector<8x1xf32> to vector<8x1xf32>
    %1114 = vector.broadcast %1113 : vector<8x1xf32> to vector<8x16xf32>
    %1115 = arith.mulf %1114, %41 : vector<8x16xf32>
    %1116 = arith.mulf %1114, %89 : vector<8x16xf32>
    %1117 = arith.mulf %1114, %137 : vector<8x16xf32>
    %1118 = arith.mulf %1114, %185 : vector<8x16xf32>
    %1119 = vector.extract_strided_slice %1037 {offsets = [0, 11], sizes = [8, 1], strides = [1, 1]} : vector<8x16xf32> to vector<8x1xf32>
    %1120 = vector.shape_cast %1119 : vector<8x1xf32> to vector<8x1xf32>
    %1121 = vector.broadcast %1120 : vector<8x1xf32> to vector<8x16xf32>
    %1122 = arith.mulf %1121, %44 : vector<8x16xf32>
    %1123 = arith.mulf %1121, %92 : vector<8x16xf32>
    %1124 = arith.mulf %1121, %140 : vector<8x16xf32>
    %1125 = arith.mulf %1121, %188 : vector<8x16xf32>
    %1126 = vector.extract_strided_slice %1037 {offsets = [0, 12], sizes = [8, 1], strides = [1, 1]} : vector<8x16xf32> to vector<8x1xf32>
    %1127 = vector.shape_cast %1126 : vector<8x1xf32> to vector<8x1xf32>
    %1128 = vector.broadcast %1127 : vector<8x1xf32> to vector<8x16xf32>
    %1129 = arith.mulf %1128, %47 : vector<8x16xf32>
    %1130 = arith.mulf %1128, %95 : vector<8x16xf32>
    %1131 = arith.mulf %1128, %143 : vector<8x16xf32>
    %1132 = arith.mulf %1128, %191 : vector<8x16xf32>
    %1133 = vector.extract_strided_slice %1037 {offsets = [0, 13], sizes = [8, 1], strides = [1, 1]} : vector<8x16xf32> to vector<8x1xf32>
    %1134 = vector.shape_cast %1133 : vector<8x1xf32> to vector<8x1xf32>
    %1135 = vector.broadcast %1134 : vector<8x1xf32> to vector<8x16xf32>
    %1136 = arith.mulf %1135, %50 : vector<8x16xf32>
    %1137 = arith.mulf %1135, %98 : vector<8x16xf32>
    %1138 = arith.mulf %1135, %146 : vector<8x16xf32>
    %1139 = arith.mulf %1135, %194 : vector<8x16xf32>
    %1140 = vector.extract_strided_slice %1037 {offsets = [0, 14], sizes = [8, 1], strides = [1, 1]} : vector<8x16xf32> to vector<8x1xf32>
    %1141 = vector.shape_cast %1140 : vector<8x1xf32> to vector<8x1xf32>
    %1142 = vector.broadcast %1141 : vector<8x1xf32> to vector<8x16xf32>
    %1143 = arith.mulf %1142, %53 : vector<8x16xf32>
    %1144 = arith.mulf %1142, %101 : vector<8x16xf32>
    %1145 = arith.mulf %1142, %149 : vector<8x16xf32>
    %1146 = arith.mulf %1142, %197 : vector<8x16xf32>
    %1147 = vector.extract_strided_slice %1037 {offsets = [0, 15], sizes = [8, 1], strides = [1, 1]} : vector<8x16xf32> to vector<8x1xf32>
    %1148 = vector.shape_cast %1147 : vector<8x1xf32> to vector<8x1xf32>
    %1149 = vector.broadcast %1148 : vector<8x1xf32> to vector<8x16xf32>
    %1150 = arith.mulf %1149, %56 : vector<8x16xf32>
    %1151 = arith.mulf %1149, %104 : vector<8x16xf32>
    %1152 = arith.mulf %1149, %152 : vector<8x16xf32>
    %1153 = arith.mulf %1149, %200 : vector<8x16xf32>
    %1154 = arith.addf %1038, %1045 : vector<8x16xf32>
    %1155 = arith.addf %1052, %1059 : vector<8x16xf32>
    %1156 = arith.addf %1066, %1073 : vector<8x16xf32>
    %1157 = arith.addf %1080, %1087 : vector<8x16xf32>
    %1158 = arith.addf %1094, %1101 : vector<8x16xf32>
    %1159 = arith.addf %1108, %1115 : vector<8x16xf32>
    %1160 = arith.addf %1122, %1129 : vector<8x16xf32>
    %1161 = arith.addf %1136, %1143 : vector<8x16xf32>
    %1162 = arith.addf %1154, %1155 : vector<8x16xf32>
    %1163 = arith.addf %1156, %1157 : vector<8x16xf32>
    %1164 = arith.addf %1158, %1159 : vector<8x16xf32>
    %1165 = arith.addf %1160, %1161 : vector<8x16xf32>
    %1166 = arith.addf %1162, %1163 : vector<8x16xf32>
    %1167 = arith.addf %1164, %1165 : vector<8x16xf32>
    %1168 = arith.addf %1166, %1167 : vector<8x16xf32>
    %1169 = arith.addf %1168, %1150 : vector<8x16xf32>
    %1170 = arith.addf %1039, %1046 : vector<8x16xf32>
    %1171 = arith.addf %1053, %1060 : vector<8x16xf32>
    %1172 = arith.addf %1067, %1074 : vector<8x16xf32>
    %1173 = arith.addf %1081, %1088 : vector<8x16xf32>
    %1174 = arith.addf %1095, %1102 : vector<8x16xf32>
    %1175 = arith.addf %1109, %1116 : vector<8x16xf32>
    %1176 = arith.addf %1123, %1130 : vector<8x16xf32>
    %1177 = arith.addf %1137, %1144 : vector<8x16xf32>
    %1178 = arith.addf %1170, %1171 : vector<8x16xf32>
    %1179 = arith.addf %1172, %1173 : vector<8x16xf32>
    %1180 = arith.addf %1174, %1175 : vector<8x16xf32>
    %1181 = arith.addf %1176, %1177 : vector<8x16xf32>
    %1182 = arith.addf %1178, %1179 : vector<8x16xf32>
    %1183 = arith.addf %1180, %1181 : vector<8x16xf32>
    %1184 = arith.addf %1182, %1183 : vector<8x16xf32>
    %1185 = arith.addf %1184, %1151 : vector<8x16xf32>
    %1186 = arith.addf %1040, %1047 : vector<8x16xf32>
    %1187 = arith.addf %1054, %1061 : vector<8x16xf32>
    %1188 = arith.addf %1068, %1075 : vector<8x16xf32>
    %1189 = arith.addf %1082, %1089 : vector<8x16xf32>
    %1190 = arith.addf %1096, %1103 : vector<8x16xf32>
    %1191 = arith.addf %1110, %1117 : vector<8x16xf32>
    %1192 = arith.addf %1124, %1131 : vector<8x16xf32>
    %1193 = arith.addf %1138, %1145 : vector<8x16xf32>
    %1194 = arith.addf %1186, %1187 : vector<8x16xf32>
    %1195 = arith.addf %1188, %1189 : vector<8x16xf32>
    %1196 = arith.addf %1190, %1191 : vector<8x16xf32>
    %1197 = arith.addf %1192, %1193 : vector<8x16xf32>
    %1198 = arith.addf %1194, %1195 : vector<8x16xf32>
    %1199 = arith.addf %1196, %1197 : vector<8x16xf32>
    %1200 = arith.addf %1198, %1199 : vector<8x16xf32>
    %1201 = arith.addf %1200, %1152 : vector<8x16xf32>
    %1202 = arith.addf %1041, %1048 : vector<8x16xf32>
    %1203 = arith.addf %1055, %1062 : vector<8x16xf32>
    %1204 = arith.addf %1069, %1076 : vector<8x16xf32>
    %1205 = arith.addf %1083, %1090 : vector<8x16xf32>
    %1206 = arith.addf %1097, %1104 : vector<8x16xf32>
    %1207 = arith.addf %1111, %1118 : vector<8x16xf32>
    %1208 = arith.addf %1125, %1132 : vector<8x16xf32>
    %1209 = arith.addf %1139, %1146 : vector<8x16xf32>
    %1210 = arith.addf %1202, %1203 : vector<8x16xf32>
    %1211 = arith.addf %1204, %1205 : vector<8x16xf32>
    %1212 = arith.addf %1206, %1207 : vector<8x16xf32>
    %1213 = arith.addf %1208, %1209 : vector<8x16xf32>
    %1214 = arith.addf %1210, %1211 : vector<8x16xf32>
    %1215 = arith.addf %1212, %1213 : vector<8x16xf32>
    %1216 = arith.addf %1214, %1215 : vector<8x16xf32>
    %1217 = arith.addf %1216, %1153 : vector<8x16xf32>
    %cst_114 = arith.constant 5.000000e-01 : f32
    %1218 = vector.broadcast %cst_114 : f32 to vector<8x16xf32>
    %1219 = arith.mulf %1218, %1169 : vector<8x16xf32>
    %1220 = math.tanh %1219 : vector<8x16xf32>
    %cst_115 = arith.constant 5.000000e-01 : f32
    %1221 = vector.broadcast %cst_115 : f32 to vector<8x16xf32>
    %1222 = arith.mulf %1221, %1220 : vector<8x16xf32>
    %cst_116 = arith.constant 5.000000e-01 : f32
    %1223 = vector.broadcast %cst_116 : f32 to vector<8x16xf32>
    %1224 = arith.addf %1222, %1223 : vector<8x16xf32>
    %cst_117 = arith.constant 5.000000e-01 : f32
    %1225 = vector.broadcast %cst_117 : f32 to vector<8x16xf32>
    %1226 = arith.mulf %1225, %1185 : vector<8x16xf32>
    %1227 = math.tanh %1226 : vector<8x16xf32>
    %cst_118 = arith.constant 5.000000e-01 : f32
    %1228 = vector.broadcast %cst_118 : f32 to vector<8x16xf32>
    %1229 = arith.mulf %1228, %1227 : vector<8x16xf32>
    %cst_119 = arith.constant 5.000000e-01 : f32
    %1230 = vector.broadcast %cst_119 : f32 to vector<8x16xf32>
    %1231 = arith.addf %1229, %1230 : vector<8x16xf32>
    %cst_120 = arith.constant 5.000000e-01 : f32
    %1232 = vector.broadcast %cst_120 : f32 to vector<8x16xf32>
    %1233 = arith.mulf %1232, %1217 : vector<8x16xf32>
    %1234 = math.tanh %1233 : vector<8x16xf32>
    %cst_121 = arith.constant 5.000000e-01 : f32
    %1235 = vector.broadcast %cst_121 : f32 to vector<8x16xf32>
    %1236 = arith.mulf %1235, %1234 : vector<8x16xf32>
    %cst_122 = arith.constant 5.000000e-01 : f32
    %1237 = vector.broadcast %cst_122 : f32 to vector<8x16xf32>
    %1238 = arith.addf %1236, %1237 : vector<8x16xf32>
    %1239 = math.tanh %1201 : vector<8x16xf32>
    %1240 = arith.mulf %1231, %1035 : vector<8x16xf32>
    %1241 = arith.mulf %1224, %1239 : vector<8x16xf32>
    %1242 = arith.addf %1240, %1241 : vector<8x16xf32>
    %1243 = math.tanh %1242 : vector<8x16xf32>
    %1244 = arith.mulf %1238, %1243 : vector<8x16xf32>
    %1245 = vector.extract_strided_slice %204 {offsets = [40, 0], sizes = [8, 16], strides = [1, 1]} : vector<64x16xf32> to vector<8x16xf32>
    %1246 = vector.extract_strided_slice %205 {offsets = [40, 0], sizes = [8, 16], strides = [1, 1]} : vector<64x16xf32> to vector<8x16xf32>
    %1247 = vector.extract_strided_slice %206 {offsets = [40, 0], sizes = [8, 16], strides = [1, 1]} : vector<64x16xf32> to vector<8x16xf32>
    %1248 = vector.extract_strided_slice %207 {offsets = [40, 0], sizes = [8, 16], strides = [1, 1]} : vector<64x16xf32> to vector<8x16xf32>
    %1249 = vector.extract_strided_slice %1244 {offsets = [0, 0], sizes = [8, 1], strides = [1, 1]} : vector<8x16xf32> to vector<8x1xf32>
    %1250 = vector.shape_cast %1249 : vector<8x1xf32> to vector<8x1xf32>
    %1251 = vector.broadcast %1250 : vector<8x1xf32> to vector<8x16xf32>
    %1252 = arith.mulf %1251, %11 : vector<8x16xf32>
    %1253 = arith.mulf %1251, %59 : vector<8x16xf32>
    %1254 = arith.mulf %1251, %107 : vector<8x16xf32>
    %1255 = arith.mulf %1251, %155 : vector<8x16xf32>
    %1256 = vector.extract_strided_slice %1244 {offsets = [0, 1], sizes = [8, 1], strides = [1, 1]} : vector<8x16xf32> to vector<8x1xf32>
    %1257 = vector.shape_cast %1256 : vector<8x1xf32> to vector<8x1xf32>
    %1258 = vector.broadcast %1257 : vector<8x1xf32> to vector<8x16xf32>
    %1259 = arith.mulf %1258, %14 : vector<8x16xf32>
    %1260 = arith.mulf %1258, %62 : vector<8x16xf32>
    %1261 = arith.mulf %1258, %110 : vector<8x16xf32>
    %1262 = arith.mulf %1258, %158 : vector<8x16xf32>
    %1263 = vector.extract_strided_slice %1244 {offsets = [0, 2], sizes = [8, 1], strides = [1, 1]} : vector<8x16xf32> to vector<8x1xf32>
    %1264 = vector.shape_cast %1263 : vector<8x1xf32> to vector<8x1xf32>
    %1265 = vector.broadcast %1264 : vector<8x1xf32> to vector<8x16xf32>
    %1266 = arith.mulf %1265, %17 : vector<8x16xf32>
    %1267 = arith.mulf %1265, %65 : vector<8x16xf32>
    %1268 = arith.mulf %1265, %113 : vector<8x16xf32>
    %1269 = arith.mulf %1265, %161 : vector<8x16xf32>
    %1270 = vector.extract_strided_slice %1244 {offsets = [0, 3], sizes = [8, 1], strides = [1, 1]} : vector<8x16xf32> to vector<8x1xf32>
    %1271 = vector.shape_cast %1270 : vector<8x1xf32> to vector<8x1xf32>
    %1272 = vector.broadcast %1271 : vector<8x1xf32> to vector<8x16xf32>
    %1273 = arith.mulf %1272, %20 : vector<8x16xf32>
    %1274 = arith.mulf %1272, %68 : vector<8x16xf32>
    %1275 = arith.mulf %1272, %116 : vector<8x16xf32>
    %1276 = arith.mulf %1272, %164 : vector<8x16xf32>
    %1277 = vector.extract_strided_slice %1244 {offsets = [0, 4], sizes = [8, 1], strides = [1, 1]} : vector<8x16xf32> to vector<8x1xf32>
    %1278 = vector.shape_cast %1277 : vector<8x1xf32> to vector<8x1xf32>
    %1279 = vector.broadcast %1278 : vector<8x1xf32> to vector<8x16xf32>
    %1280 = arith.mulf %1279, %23 : vector<8x16xf32>
    %1281 = arith.mulf %1279, %71 : vector<8x16xf32>
    %1282 = arith.mulf %1279, %119 : vector<8x16xf32>
    %1283 = arith.mulf %1279, %167 : vector<8x16xf32>
    %1284 = vector.extract_strided_slice %1244 {offsets = [0, 5], sizes = [8, 1], strides = [1, 1]} : vector<8x16xf32> to vector<8x1xf32>
    %1285 = vector.shape_cast %1284 : vector<8x1xf32> to vector<8x1xf32>
    %1286 = vector.broadcast %1285 : vector<8x1xf32> to vector<8x16xf32>
    %1287 = arith.mulf %1286, %26 : vector<8x16xf32>
    %1288 = arith.mulf %1286, %74 : vector<8x16xf32>
    %1289 = arith.mulf %1286, %122 : vector<8x16xf32>
    %1290 = arith.mulf %1286, %170 : vector<8x16xf32>
    %1291 = vector.extract_strided_slice %1244 {offsets = [0, 6], sizes = [8, 1], strides = [1, 1]} : vector<8x16xf32> to vector<8x1xf32>
    %1292 = vector.shape_cast %1291 : vector<8x1xf32> to vector<8x1xf32>
    %1293 = vector.broadcast %1292 : vector<8x1xf32> to vector<8x16xf32>
    %1294 = arith.mulf %1293, %29 : vector<8x16xf32>
    %1295 = arith.mulf %1293, %77 : vector<8x16xf32>
    %1296 = arith.mulf %1293, %125 : vector<8x16xf32>
    %1297 = arith.mulf %1293, %173 : vector<8x16xf32>
    %1298 = vector.extract_strided_slice %1244 {offsets = [0, 7], sizes = [8, 1], strides = [1, 1]} : vector<8x16xf32> to vector<8x1xf32>
    %1299 = vector.shape_cast %1298 : vector<8x1xf32> to vector<8x1xf32>
    %1300 = vector.broadcast %1299 : vector<8x1xf32> to vector<8x16xf32>
    %1301 = arith.mulf %1300, %32 : vector<8x16xf32>
    %1302 = arith.mulf %1300, %80 : vector<8x16xf32>
    %1303 = arith.mulf %1300, %128 : vector<8x16xf32>
    %1304 = arith.mulf %1300, %176 : vector<8x16xf32>
    %1305 = vector.extract_strided_slice %1244 {offsets = [0, 8], sizes = [8, 1], strides = [1, 1]} : vector<8x16xf32> to vector<8x1xf32>
    %1306 = vector.shape_cast %1305 : vector<8x1xf32> to vector<8x1xf32>
    %1307 = vector.broadcast %1306 : vector<8x1xf32> to vector<8x16xf32>
    %1308 = arith.mulf %1307, %35 : vector<8x16xf32>
    %1309 = arith.mulf %1307, %83 : vector<8x16xf32>
    %1310 = arith.mulf %1307, %131 : vector<8x16xf32>
    %1311 = arith.mulf %1307, %179 : vector<8x16xf32>
    %1312 = vector.extract_strided_slice %1244 {offsets = [0, 9], sizes = [8, 1], strides = [1, 1]} : vector<8x16xf32> to vector<8x1xf32>
    %1313 = vector.shape_cast %1312 : vector<8x1xf32> to vector<8x1xf32>
    %1314 = vector.broadcast %1313 : vector<8x1xf32> to vector<8x16xf32>
    %1315 = arith.mulf %1314, %38 : vector<8x16xf32>
    %1316 = arith.mulf %1314, %86 : vector<8x16xf32>
    %1317 = arith.mulf %1314, %134 : vector<8x16xf32>
    %1318 = arith.mulf %1314, %182 : vector<8x16xf32>
    %1319 = vector.extract_strided_slice %1244 {offsets = [0, 10], sizes = [8, 1], strides = [1, 1]} : vector<8x16xf32> to vector<8x1xf32>
    %1320 = vector.shape_cast %1319 : vector<8x1xf32> to vector<8x1xf32>
    %1321 = vector.broadcast %1320 : vector<8x1xf32> to vector<8x16xf32>
    %1322 = arith.mulf %1321, %41 : vector<8x16xf32>
    %1323 = arith.mulf %1321, %89 : vector<8x16xf32>
    %1324 = arith.mulf %1321, %137 : vector<8x16xf32>
    %1325 = arith.mulf %1321, %185 : vector<8x16xf32>
    %1326 = vector.extract_strided_slice %1244 {offsets = [0, 11], sizes = [8, 1], strides = [1, 1]} : vector<8x16xf32> to vector<8x1xf32>
    %1327 = vector.shape_cast %1326 : vector<8x1xf32> to vector<8x1xf32>
    %1328 = vector.broadcast %1327 : vector<8x1xf32> to vector<8x16xf32>
    %1329 = arith.mulf %1328, %44 : vector<8x16xf32>
    %1330 = arith.mulf %1328, %92 : vector<8x16xf32>
    %1331 = arith.mulf %1328, %140 : vector<8x16xf32>
    %1332 = arith.mulf %1328, %188 : vector<8x16xf32>
    %1333 = vector.extract_strided_slice %1244 {offsets = [0, 12], sizes = [8, 1], strides = [1, 1]} : vector<8x16xf32> to vector<8x1xf32>
    %1334 = vector.shape_cast %1333 : vector<8x1xf32> to vector<8x1xf32>
    %1335 = vector.broadcast %1334 : vector<8x1xf32> to vector<8x16xf32>
    %1336 = arith.mulf %1335, %47 : vector<8x16xf32>
    %1337 = arith.mulf %1335, %95 : vector<8x16xf32>
    %1338 = arith.mulf %1335, %143 : vector<8x16xf32>
    %1339 = arith.mulf %1335, %191 : vector<8x16xf32>
    %1340 = vector.extract_strided_slice %1244 {offsets = [0, 13], sizes = [8, 1], strides = [1, 1]} : vector<8x16xf32> to vector<8x1xf32>
    %1341 = vector.shape_cast %1340 : vector<8x1xf32> to vector<8x1xf32>
    %1342 = vector.broadcast %1341 : vector<8x1xf32> to vector<8x16xf32>
    %1343 = arith.mulf %1342, %50 : vector<8x16xf32>
    %1344 = arith.mulf %1342, %98 : vector<8x16xf32>
    %1345 = arith.mulf %1342, %146 : vector<8x16xf32>
    %1346 = arith.mulf %1342, %194 : vector<8x16xf32>
    %1347 = vector.extract_strided_slice %1244 {offsets = [0, 14], sizes = [8, 1], strides = [1, 1]} : vector<8x16xf32> to vector<8x1xf32>
    %1348 = vector.shape_cast %1347 : vector<8x1xf32> to vector<8x1xf32>
    %1349 = vector.broadcast %1348 : vector<8x1xf32> to vector<8x16xf32>
    %1350 = arith.mulf %1349, %53 : vector<8x16xf32>
    %1351 = arith.mulf %1349, %101 : vector<8x16xf32>
    %1352 = arith.mulf %1349, %149 : vector<8x16xf32>
    %1353 = arith.mulf %1349, %197 : vector<8x16xf32>
    %1354 = vector.extract_strided_slice %1244 {offsets = [0, 15], sizes = [8, 1], strides = [1, 1]} : vector<8x16xf32> to vector<8x1xf32>
    %1355 = vector.shape_cast %1354 : vector<8x1xf32> to vector<8x1xf32>
    %1356 = vector.broadcast %1355 : vector<8x1xf32> to vector<8x16xf32>
    %1357 = arith.mulf %1356, %56 : vector<8x16xf32>
    %1358 = arith.mulf %1356, %104 : vector<8x16xf32>
    %1359 = arith.mulf %1356, %152 : vector<8x16xf32>
    %1360 = arith.mulf %1356, %200 : vector<8x16xf32>
    %1361 = arith.addf %1245, %1252 : vector<8x16xf32>
    %1362 = arith.addf %1259, %1266 : vector<8x16xf32>
    %1363 = arith.addf %1273, %1280 : vector<8x16xf32>
    %1364 = arith.addf %1287, %1294 : vector<8x16xf32>
    %1365 = arith.addf %1301, %1308 : vector<8x16xf32>
    %1366 = arith.addf %1315, %1322 : vector<8x16xf32>
    %1367 = arith.addf %1329, %1336 : vector<8x16xf32>
    %1368 = arith.addf %1343, %1350 : vector<8x16xf32>
    %1369 = arith.addf %1361, %1362 : vector<8x16xf32>
    %1370 = arith.addf %1363, %1364 : vector<8x16xf32>
    %1371 = arith.addf %1365, %1366 : vector<8x16xf32>
    %1372 = arith.addf %1367, %1368 : vector<8x16xf32>
    %1373 = arith.addf %1369, %1370 : vector<8x16xf32>
    %1374 = arith.addf %1371, %1372 : vector<8x16xf32>
    %1375 = arith.addf %1373, %1374 : vector<8x16xf32>
    %1376 = arith.addf %1375, %1357 : vector<8x16xf32>
    %1377 = arith.addf %1246, %1253 : vector<8x16xf32>
    %1378 = arith.addf %1260, %1267 : vector<8x16xf32>
    %1379 = arith.addf %1274, %1281 : vector<8x16xf32>
    %1380 = arith.addf %1288, %1295 : vector<8x16xf32>
    %1381 = arith.addf %1302, %1309 : vector<8x16xf32>
    %1382 = arith.addf %1316, %1323 : vector<8x16xf32>
    %1383 = arith.addf %1330, %1337 : vector<8x16xf32>
    %1384 = arith.addf %1344, %1351 : vector<8x16xf32>
    %1385 = arith.addf %1377, %1378 : vector<8x16xf32>
    %1386 = arith.addf %1379, %1380 : vector<8x16xf32>
    %1387 = arith.addf %1381, %1382 : vector<8x16xf32>
    %1388 = arith.addf %1383, %1384 : vector<8x16xf32>
    %1389 = arith.addf %1385, %1386 : vector<8x16xf32>
    %1390 = arith.addf %1387, %1388 : vector<8x16xf32>
    %1391 = arith.addf %1389, %1390 : vector<8x16xf32>
    %1392 = arith.addf %1391, %1358 : vector<8x16xf32>
    %1393 = arith.addf %1247, %1254 : vector<8x16xf32>
    %1394 = arith.addf %1261, %1268 : vector<8x16xf32>
    %1395 = arith.addf %1275, %1282 : vector<8x16xf32>
    %1396 = arith.addf %1289, %1296 : vector<8x16xf32>
    %1397 = arith.addf %1303, %1310 : vector<8x16xf32>
    %1398 = arith.addf %1317, %1324 : vector<8x16xf32>
    %1399 = arith.addf %1331, %1338 : vector<8x16xf32>
    %1400 = arith.addf %1345, %1352 : vector<8x16xf32>
    %1401 = arith.addf %1393, %1394 : vector<8x16xf32>
    %1402 = arith.addf %1395, %1396 : vector<8x16xf32>
    %1403 = arith.addf %1397, %1398 : vector<8x16xf32>
    %1404 = arith.addf %1399, %1400 : vector<8x16xf32>
    %1405 = arith.addf %1401, %1402 : vector<8x16xf32>
    %1406 = arith.addf %1403, %1404 : vector<8x16xf32>
    %1407 = arith.addf %1405, %1406 : vector<8x16xf32>
    %1408 = arith.addf %1407, %1359 : vector<8x16xf32>
    %1409 = arith.addf %1248, %1255 : vector<8x16xf32>
    %1410 = arith.addf %1262, %1269 : vector<8x16xf32>
    %1411 = arith.addf %1276, %1283 : vector<8x16xf32>
    %1412 = arith.addf %1290, %1297 : vector<8x16xf32>
    %1413 = arith.addf %1304, %1311 : vector<8x16xf32>
    %1414 = arith.addf %1318, %1325 : vector<8x16xf32>
    %1415 = arith.addf %1332, %1339 : vector<8x16xf32>
    %1416 = arith.addf %1346, %1353 : vector<8x16xf32>
    %1417 = arith.addf %1409, %1410 : vector<8x16xf32>
    %1418 = arith.addf %1411, %1412 : vector<8x16xf32>
    %1419 = arith.addf %1413, %1414 : vector<8x16xf32>
    %1420 = arith.addf %1415, %1416 : vector<8x16xf32>
    %1421 = arith.addf %1417, %1418 : vector<8x16xf32>
    %1422 = arith.addf %1419, %1420 : vector<8x16xf32>
    %1423 = arith.addf %1421, %1422 : vector<8x16xf32>
    %1424 = arith.addf %1423, %1360 : vector<8x16xf32>
    %cst_123 = arith.constant 5.000000e-01 : f32
    %1425 = vector.broadcast %cst_123 : f32 to vector<8x16xf32>
    %1426 = arith.mulf %1425, %1376 : vector<8x16xf32>
    %1427 = math.tanh %1426 : vector<8x16xf32>
    %cst_124 = arith.constant 5.000000e-01 : f32
    %1428 = vector.broadcast %cst_124 : f32 to vector<8x16xf32>
    %1429 = arith.mulf %1428, %1427 : vector<8x16xf32>
    %cst_125 = arith.constant 5.000000e-01 : f32
    %1430 = vector.broadcast %cst_125 : f32 to vector<8x16xf32>
    %1431 = arith.addf %1429, %1430 : vector<8x16xf32>
    %cst_126 = arith.constant 5.000000e-01 : f32
    %1432 = vector.broadcast %cst_126 : f32 to vector<8x16xf32>
    %1433 = arith.mulf %1432, %1392 : vector<8x16xf32>
    %1434 = math.tanh %1433 : vector<8x16xf32>
    %cst_127 = arith.constant 5.000000e-01 : f32
    %1435 = vector.broadcast %cst_127 : f32 to vector<8x16xf32>
    %1436 = arith.mulf %1435, %1434 : vector<8x16xf32>
    %cst_128 = arith.constant 5.000000e-01 : f32
    %1437 = vector.broadcast %cst_128 : f32 to vector<8x16xf32>
    %1438 = arith.addf %1436, %1437 : vector<8x16xf32>
    %cst_129 = arith.constant 5.000000e-01 : f32
    %1439 = vector.broadcast %cst_129 : f32 to vector<8x16xf32>
    %1440 = arith.mulf %1439, %1424 : vector<8x16xf32>
    %1441 = math.tanh %1440 : vector<8x16xf32>
    %cst_130 = arith.constant 5.000000e-01 : f32
    %1442 = vector.broadcast %cst_130 : f32 to vector<8x16xf32>
    %1443 = arith.mulf %1442, %1441 : vector<8x16xf32>
    %cst_131 = arith.constant 5.000000e-01 : f32
    %1444 = vector.broadcast %cst_131 : f32 to vector<8x16xf32>
    %1445 = arith.addf %1443, %1444 : vector<8x16xf32>
    %1446 = math.tanh %1408 : vector<8x16xf32>
    %1447 = arith.mulf %1438, %1242 : vector<8x16xf32>
    %1448 = arith.mulf %1431, %1446 : vector<8x16xf32>
    %1449 = arith.addf %1447, %1448 : vector<8x16xf32>
    %1450 = math.tanh %1449 : vector<8x16xf32>
    %1451 = arith.mulf %1445, %1450 : vector<8x16xf32>
    %1452 = vector.extract_strided_slice %204 {offsets = [48, 0], sizes = [8, 16], strides = [1, 1]} : vector<64x16xf32> to vector<8x16xf32>
    %1453 = vector.extract_strided_slice %205 {offsets = [48, 0], sizes = [8, 16], strides = [1, 1]} : vector<64x16xf32> to vector<8x16xf32>
    %1454 = vector.extract_strided_slice %206 {offsets = [48, 0], sizes = [8, 16], strides = [1, 1]} : vector<64x16xf32> to vector<8x16xf32>
    %1455 = vector.extract_strided_slice %207 {offsets = [48, 0], sizes = [8, 16], strides = [1, 1]} : vector<64x16xf32> to vector<8x16xf32>
    %1456 = vector.extract_strided_slice %1451 {offsets = [0, 0], sizes = [8, 1], strides = [1, 1]} : vector<8x16xf32> to vector<8x1xf32>
    %1457 = vector.shape_cast %1456 : vector<8x1xf32> to vector<8x1xf32>
    %1458 = vector.broadcast %1457 : vector<8x1xf32> to vector<8x16xf32>
    %1459 = arith.mulf %1458, %11 : vector<8x16xf32>
    %1460 = arith.mulf %1458, %59 : vector<8x16xf32>
    %1461 = arith.mulf %1458, %107 : vector<8x16xf32>
    %1462 = arith.mulf %1458, %155 : vector<8x16xf32>
    %1463 = vector.extract_strided_slice %1451 {offsets = [0, 1], sizes = [8, 1], strides = [1, 1]} : vector<8x16xf32> to vector<8x1xf32>
    %1464 = vector.shape_cast %1463 : vector<8x1xf32> to vector<8x1xf32>
    %1465 = vector.broadcast %1464 : vector<8x1xf32> to vector<8x16xf32>
    %1466 = arith.mulf %1465, %14 : vector<8x16xf32>
    %1467 = arith.mulf %1465, %62 : vector<8x16xf32>
    %1468 = arith.mulf %1465, %110 : vector<8x16xf32>
    %1469 = arith.mulf %1465, %158 : vector<8x16xf32>
    %1470 = vector.extract_strided_slice %1451 {offsets = [0, 2], sizes = [8, 1], strides = [1, 1]} : vector<8x16xf32> to vector<8x1xf32>
    %1471 = vector.shape_cast %1470 : vector<8x1xf32> to vector<8x1xf32>
    %1472 = vector.broadcast %1471 : vector<8x1xf32> to vector<8x16xf32>
    %1473 = arith.mulf %1472, %17 : vector<8x16xf32>
    %1474 = arith.mulf %1472, %65 : vector<8x16xf32>
    %1475 = arith.mulf %1472, %113 : vector<8x16xf32>
    %1476 = arith.mulf %1472, %161 : vector<8x16xf32>
    %1477 = vector.extract_strided_slice %1451 {offsets = [0, 3], sizes = [8, 1], strides = [1, 1]} : vector<8x16xf32> to vector<8x1xf32>
    %1478 = vector.shape_cast %1477 : vector<8x1xf32> to vector<8x1xf32>
    %1479 = vector.broadcast %1478 : vector<8x1xf32> to vector<8x16xf32>
    %1480 = arith.mulf %1479, %20 : vector<8x16xf32>
    %1481 = arith.mulf %1479, %68 : vector<8x16xf32>
    %1482 = arith.mulf %1479, %116 : vector<8x16xf32>
    %1483 = arith.mulf %1479, %164 : vector<8x16xf32>
    %1484 = vector.extract_strided_slice %1451 {offsets = [0, 4], sizes = [8, 1], strides = [1, 1]} : vector<8x16xf32> to vector<8x1xf32>
    %1485 = vector.shape_cast %1484 : vector<8x1xf32> to vector<8x1xf32>
    %1486 = vector.broadcast %1485 : vector<8x1xf32> to vector<8x16xf32>
    %1487 = arith.mulf %1486, %23 : vector<8x16xf32>
    %1488 = arith.mulf %1486, %71 : vector<8x16xf32>
    %1489 = arith.mulf %1486, %119 : vector<8x16xf32>
    %1490 = arith.mulf %1486, %167 : vector<8x16xf32>
    %1491 = vector.extract_strided_slice %1451 {offsets = [0, 5], sizes = [8, 1], strides = [1, 1]} : vector<8x16xf32> to vector<8x1xf32>
    %1492 = vector.shape_cast %1491 : vector<8x1xf32> to vector<8x1xf32>
    %1493 = vector.broadcast %1492 : vector<8x1xf32> to vector<8x16xf32>
    %1494 = arith.mulf %1493, %26 : vector<8x16xf32>
    %1495 = arith.mulf %1493, %74 : vector<8x16xf32>
    %1496 = arith.mulf %1493, %122 : vector<8x16xf32>
    %1497 = arith.mulf %1493, %170 : vector<8x16xf32>
    %1498 = vector.extract_strided_slice %1451 {offsets = [0, 6], sizes = [8, 1], strides = [1, 1]} : vector<8x16xf32> to vector<8x1xf32>
    %1499 = vector.shape_cast %1498 : vector<8x1xf32> to vector<8x1xf32>
    %1500 = vector.broadcast %1499 : vector<8x1xf32> to vector<8x16xf32>
    %1501 = arith.mulf %1500, %29 : vector<8x16xf32>
    %1502 = arith.mulf %1500, %77 : vector<8x16xf32>
    %1503 = arith.mulf %1500, %125 : vector<8x16xf32>
    %1504 = arith.mulf %1500, %173 : vector<8x16xf32>
    %1505 = vector.extract_strided_slice %1451 {offsets = [0, 7], sizes = [8, 1], strides = [1, 1]} : vector<8x16xf32> to vector<8x1xf32>
    %1506 = vector.shape_cast %1505 : vector<8x1xf32> to vector<8x1xf32>
    %1507 = vector.broadcast %1506 : vector<8x1xf32> to vector<8x16xf32>
    %1508 = arith.mulf %1507, %32 : vector<8x16xf32>
    %1509 = arith.mulf %1507, %80 : vector<8x16xf32>
    %1510 = arith.mulf %1507, %128 : vector<8x16xf32>
    %1511 = arith.mulf %1507, %176 : vector<8x16xf32>
    %1512 = vector.extract_strided_slice %1451 {offsets = [0, 8], sizes = [8, 1], strides = [1, 1]} : vector<8x16xf32> to vector<8x1xf32>
    %1513 = vector.shape_cast %1512 : vector<8x1xf32> to vector<8x1xf32>
    %1514 = vector.broadcast %1513 : vector<8x1xf32> to vector<8x16xf32>
    %1515 = arith.mulf %1514, %35 : vector<8x16xf32>
    %1516 = arith.mulf %1514, %83 : vector<8x16xf32>
    %1517 = arith.mulf %1514, %131 : vector<8x16xf32>
    %1518 = arith.mulf %1514, %179 : vector<8x16xf32>
    %1519 = vector.extract_strided_slice %1451 {offsets = [0, 9], sizes = [8, 1], strides = [1, 1]} : vector<8x16xf32> to vector<8x1xf32>
    %1520 = vector.shape_cast %1519 : vector<8x1xf32> to vector<8x1xf32>
    %1521 = vector.broadcast %1520 : vector<8x1xf32> to vector<8x16xf32>
    %1522 = arith.mulf %1521, %38 : vector<8x16xf32>
    %1523 = arith.mulf %1521, %86 : vector<8x16xf32>
    %1524 = arith.mulf %1521, %134 : vector<8x16xf32>
    %1525 = arith.mulf %1521, %182 : vector<8x16xf32>
    %1526 = vector.extract_strided_slice %1451 {offsets = [0, 10], sizes = [8, 1], strides = [1, 1]} : vector<8x16xf32> to vector<8x1xf32>
    %1527 = vector.shape_cast %1526 : vector<8x1xf32> to vector<8x1xf32>
    %1528 = vector.broadcast %1527 : vector<8x1xf32> to vector<8x16xf32>
    %1529 = arith.mulf %1528, %41 : vector<8x16xf32>
    %1530 = arith.mulf %1528, %89 : vector<8x16xf32>
    %1531 = arith.mulf %1528, %137 : vector<8x16xf32>
    %1532 = arith.mulf %1528, %185 : vector<8x16xf32>
    %1533 = vector.extract_strided_slice %1451 {offsets = [0, 11], sizes = [8, 1], strides = [1, 1]} : vector<8x16xf32> to vector<8x1xf32>
    %1534 = vector.shape_cast %1533 : vector<8x1xf32> to vector<8x1xf32>
    %1535 = vector.broadcast %1534 : vector<8x1xf32> to vector<8x16xf32>
    %1536 = arith.mulf %1535, %44 : vector<8x16xf32>
    %1537 = arith.mulf %1535, %92 : vector<8x16xf32>
    %1538 = arith.mulf %1535, %140 : vector<8x16xf32>
    %1539 = arith.mulf %1535, %188 : vector<8x16xf32>
    %1540 = vector.extract_strided_slice %1451 {offsets = [0, 12], sizes = [8, 1], strides = [1, 1]} : vector<8x16xf32> to vector<8x1xf32>
    %1541 = vector.shape_cast %1540 : vector<8x1xf32> to vector<8x1xf32>
    %1542 = vector.broadcast %1541 : vector<8x1xf32> to vector<8x16xf32>
    %1543 = arith.mulf %1542, %47 : vector<8x16xf32>
    %1544 = arith.mulf %1542, %95 : vector<8x16xf32>
    %1545 = arith.mulf %1542, %143 : vector<8x16xf32>
    %1546 = arith.mulf %1542, %191 : vector<8x16xf32>
    %1547 = vector.extract_strided_slice %1451 {offsets = [0, 13], sizes = [8, 1], strides = [1, 1]} : vector<8x16xf32> to vector<8x1xf32>
    %1548 = vector.shape_cast %1547 : vector<8x1xf32> to vector<8x1xf32>
    %1549 = vector.broadcast %1548 : vector<8x1xf32> to vector<8x16xf32>
    %1550 = arith.mulf %1549, %50 : vector<8x16xf32>
    %1551 = arith.mulf %1549, %98 : vector<8x16xf32>
    %1552 = arith.mulf %1549, %146 : vector<8x16xf32>
    %1553 = arith.mulf %1549, %194 : vector<8x16xf32>
    %1554 = vector.extract_strided_slice %1451 {offsets = [0, 14], sizes = [8, 1], strides = [1, 1]} : vector<8x16xf32> to vector<8x1xf32>
    %1555 = vector.shape_cast %1554 : vector<8x1xf32> to vector<8x1xf32>
    %1556 = vector.broadcast %1555 : vector<8x1xf32> to vector<8x16xf32>
    %1557 = arith.mulf %1556, %53 : vector<8x16xf32>
    %1558 = arith.mulf %1556, %101 : vector<8x16xf32>
    %1559 = arith.mulf %1556, %149 : vector<8x16xf32>
    %1560 = arith.mulf %1556, %197 : vector<8x16xf32>
    %1561 = vector.extract_strided_slice %1451 {offsets = [0, 15], sizes = [8, 1], strides = [1, 1]} : vector<8x16xf32> to vector<8x1xf32>
    %1562 = vector.shape_cast %1561 : vector<8x1xf32> to vector<8x1xf32>
    %1563 = vector.broadcast %1562 : vector<8x1xf32> to vector<8x16xf32>
    %1564 = arith.mulf %1563, %56 : vector<8x16xf32>
    %1565 = arith.mulf %1563, %104 : vector<8x16xf32>
    %1566 = arith.mulf %1563, %152 : vector<8x16xf32>
    %1567 = arith.mulf %1563, %200 : vector<8x16xf32>
    %1568 = arith.addf %1452, %1459 : vector<8x16xf32>
    %1569 = arith.addf %1466, %1473 : vector<8x16xf32>
    %1570 = arith.addf %1480, %1487 : vector<8x16xf32>
    %1571 = arith.addf %1494, %1501 : vector<8x16xf32>
    %1572 = arith.addf %1508, %1515 : vector<8x16xf32>
    %1573 = arith.addf %1522, %1529 : vector<8x16xf32>
    %1574 = arith.addf %1536, %1543 : vector<8x16xf32>
    %1575 = arith.addf %1550, %1557 : vector<8x16xf32>
    %1576 = arith.addf %1568, %1569 : vector<8x16xf32>
    %1577 = arith.addf %1570, %1571 : vector<8x16xf32>
    %1578 = arith.addf %1572, %1573 : vector<8x16xf32>
    %1579 = arith.addf %1574, %1575 : vector<8x16xf32>
    %1580 = arith.addf %1576, %1577 : vector<8x16xf32>
    %1581 = arith.addf %1578, %1579 : vector<8x16xf32>
    %1582 = arith.addf %1580, %1581 : vector<8x16xf32>
    %1583 = arith.addf %1582, %1564 : vector<8x16xf32>
    %1584 = arith.addf %1453, %1460 : vector<8x16xf32>
    %1585 = arith.addf %1467, %1474 : vector<8x16xf32>
    %1586 = arith.addf %1481, %1488 : vector<8x16xf32>
    %1587 = arith.addf %1495, %1502 : vector<8x16xf32>
    %1588 = arith.addf %1509, %1516 : vector<8x16xf32>
    %1589 = arith.addf %1523, %1530 : vector<8x16xf32>
    %1590 = arith.addf %1537, %1544 : vector<8x16xf32>
    %1591 = arith.addf %1551, %1558 : vector<8x16xf32>
    %1592 = arith.addf %1584, %1585 : vector<8x16xf32>
    %1593 = arith.addf %1586, %1587 : vector<8x16xf32>
    %1594 = arith.addf %1588, %1589 : vector<8x16xf32>
    %1595 = arith.addf %1590, %1591 : vector<8x16xf32>
    %1596 = arith.addf %1592, %1593 : vector<8x16xf32>
    %1597 = arith.addf %1594, %1595 : vector<8x16xf32>
    %1598 = arith.addf %1596, %1597 : vector<8x16xf32>
    %1599 = arith.addf %1598, %1565 : vector<8x16xf32>
    %1600 = arith.addf %1454, %1461 : vector<8x16xf32>
    %1601 = arith.addf %1468, %1475 : vector<8x16xf32>
    %1602 = arith.addf %1482, %1489 : vector<8x16xf32>
    %1603 = arith.addf %1496, %1503 : vector<8x16xf32>
    %1604 = arith.addf %1510, %1517 : vector<8x16xf32>
    %1605 = arith.addf %1524, %1531 : vector<8x16xf32>
    %1606 = arith.addf %1538, %1545 : vector<8x16xf32>
    %1607 = arith.addf %1552, %1559 : vector<8x16xf32>
    %1608 = arith.addf %1600, %1601 : vector<8x16xf32>
    %1609 = arith.addf %1602, %1603 : vector<8x16xf32>
    %1610 = arith.addf %1604, %1605 : vector<8x16xf32>
    %1611 = arith.addf %1606, %1607 : vector<8x16xf32>
    %1612 = arith.addf %1608, %1609 : vector<8x16xf32>
    %1613 = arith.addf %1610, %1611 : vector<8x16xf32>
    %1614 = arith.addf %1612, %1613 : vector<8x16xf32>
    %1615 = arith.addf %1614, %1566 : vector<8x16xf32>
    %1616 = arith.addf %1455, %1462 : vector<8x16xf32>
    %1617 = arith.addf %1469, %1476 : vector<8x16xf32>
    %1618 = arith.addf %1483, %1490 : vector<8x16xf32>
    %1619 = arith.addf %1497, %1504 : vector<8x16xf32>
    %1620 = arith.addf %1511, %1518 : vector<8x16xf32>
    %1621 = arith.addf %1525, %1532 : vector<8x16xf32>
    %1622 = arith.addf %1539, %1546 : vector<8x16xf32>
    %1623 = arith.addf %1553, %1560 : vector<8x16xf32>
    %1624 = arith.addf %1616, %1617 : vector<8x16xf32>
    %1625 = arith.addf %1618, %1619 : vector<8x16xf32>
    %1626 = arith.addf %1620, %1621 : vector<8x16xf32>
    %1627 = arith.addf %1622, %1623 : vector<8x16xf32>
    %1628 = arith.addf %1624, %1625 : vector<8x16xf32>
    %1629 = arith.addf %1626, %1627 : vector<8x16xf32>
    %1630 = arith.addf %1628, %1629 : vector<8x16xf32>
    %1631 = arith.addf %1630, %1567 : vector<8x16xf32>
    %cst_132 = arith.constant 5.000000e-01 : f32
    %1632 = vector.broadcast %cst_132 : f32 to vector<8x16xf32>
    %1633 = arith.mulf %1632, %1583 : vector<8x16xf32>
    %1634 = math.tanh %1633 : vector<8x16xf32>
    %cst_133 = arith.constant 5.000000e-01 : f32
    %1635 = vector.broadcast %cst_133 : f32 to vector<8x16xf32>
    %1636 = arith.mulf %1635, %1634 : vector<8x16xf32>
    %cst_134 = arith.constant 5.000000e-01 : f32
    %1637 = vector.broadcast %cst_134 : f32 to vector<8x16xf32>
    %1638 = arith.addf %1636, %1637 : vector<8x16xf32>
    %cst_135 = arith.constant 5.000000e-01 : f32
    %1639 = vector.broadcast %cst_135 : f32 to vector<8x16xf32>
    %1640 = arith.mulf %1639, %1599 : vector<8x16xf32>
    %1641 = math.tanh %1640 : vector<8x16xf32>
    %cst_136 = arith.constant 5.000000e-01 : f32
    %1642 = vector.broadcast %cst_136 : f32 to vector<8x16xf32>
    %1643 = arith.mulf %1642, %1641 : vector<8x16xf32>
    %cst_137 = arith.constant 5.000000e-01 : f32
    %1644 = vector.broadcast %cst_137 : f32 to vector<8x16xf32>
    %1645 = arith.addf %1643, %1644 : vector<8x16xf32>
    %cst_138 = arith.constant 5.000000e-01 : f32
    %1646 = vector.broadcast %cst_138 : f32 to vector<8x16xf32>
    %1647 = arith.mulf %1646, %1631 : vector<8x16xf32>
    %1648 = math.tanh %1647 : vector<8x16xf32>
    %cst_139 = arith.constant 5.000000e-01 : f32
    %1649 = vector.broadcast %cst_139 : f32 to vector<8x16xf32>
    %1650 = arith.mulf %1649, %1648 : vector<8x16xf32>
    %cst_140 = arith.constant 5.000000e-01 : f32
    %1651 = vector.broadcast %cst_140 : f32 to vector<8x16xf32>
    %1652 = arith.addf %1650, %1651 : vector<8x16xf32>
    %1653 = math.tanh %1615 : vector<8x16xf32>
    %1654 = arith.mulf %1645, %1449 : vector<8x16xf32>
    %1655 = arith.mulf %1638, %1653 : vector<8x16xf32>
    %1656 = arith.addf %1654, %1655 : vector<8x16xf32>
    %1657 = math.tanh %1656 : vector<8x16xf32>
    %1658 = arith.mulf %1652, %1657 : vector<8x16xf32>
    %1659 = vector.extract_strided_slice %204 {offsets = [56, 0], sizes = [8, 16], strides = [1, 1]} : vector<64x16xf32> to vector<8x16xf32>
    %1660 = vector.extract_strided_slice %205 {offsets = [56, 0], sizes = [8, 16], strides = [1, 1]} : vector<64x16xf32> to vector<8x16xf32>
    %1661 = vector.extract_strided_slice %206 {offsets = [56, 0], sizes = [8, 16], strides = [1, 1]} : vector<64x16xf32> to vector<8x16xf32>
    %1662 = vector.extract_strided_slice %207 {offsets = [56, 0], sizes = [8, 16], strides = [1, 1]} : vector<64x16xf32> to vector<8x16xf32>
    %1663 = vector.extract_strided_slice %1658 {offsets = [0, 0], sizes = [8, 1], strides = [1, 1]} : vector<8x16xf32> to vector<8x1xf32>
    %1664 = vector.shape_cast %1663 : vector<8x1xf32> to vector<8x1xf32>
    %1665 = vector.broadcast %1664 : vector<8x1xf32> to vector<8x16xf32>
    %1666 = arith.mulf %1665, %11 : vector<8x16xf32>
    %1667 = arith.mulf %1665, %59 : vector<8x16xf32>
    %1668 = arith.mulf %1665, %107 : vector<8x16xf32>
    %1669 = arith.mulf %1665, %155 : vector<8x16xf32>
    %1670 = vector.extract_strided_slice %1658 {offsets = [0, 1], sizes = [8, 1], strides = [1, 1]} : vector<8x16xf32> to vector<8x1xf32>
    %1671 = vector.shape_cast %1670 : vector<8x1xf32> to vector<8x1xf32>
    %1672 = vector.broadcast %1671 : vector<8x1xf32> to vector<8x16xf32>
    %1673 = arith.mulf %1672, %14 : vector<8x16xf32>
    %1674 = arith.mulf %1672, %62 : vector<8x16xf32>
    %1675 = arith.mulf %1672, %110 : vector<8x16xf32>
    %1676 = arith.mulf %1672, %158 : vector<8x16xf32>
    %1677 = vector.extract_strided_slice %1658 {offsets = [0, 2], sizes = [8, 1], strides = [1, 1]} : vector<8x16xf32> to vector<8x1xf32>
    %1678 = vector.shape_cast %1677 : vector<8x1xf32> to vector<8x1xf32>
    %1679 = vector.broadcast %1678 : vector<8x1xf32> to vector<8x16xf32>
    %1680 = arith.mulf %1679, %17 : vector<8x16xf32>
    %1681 = arith.mulf %1679, %65 : vector<8x16xf32>
    %1682 = arith.mulf %1679, %113 : vector<8x16xf32>
    %1683 = arith.mulf %1679, %161 : vector<8x16xf32>
    %1684 = vector.extract_strided_slice %1658 {offsets = [0, 3], sizes = [8, 1], strides = [1, 1]} : vector<8x16xf32> to vector<8x1xf32>
    %1685 = vector.shape_cast %1684 : vector<8x1xf32> to vector<8x1xf32>
    %1686 = vector.broadcast %1685 : vector<8x1xf32> to vector<8x16xf32>
    %1687 = arith.mulf %1686, %20 : vector<8x16xf32>
    %1688 = arith.mulf %1686, %68 : vector<8x16xf32>
    %1689 = arith.mulf %1686, %116 : vector<8x16xf32>
    %1690 = arith.mulf %1686, %164 : vector<8x16xf32>
    %1691 = vector.extract_strided_slice %1658 {offsets = [0, 4], sizes = [8, 1], strides = [1, 1]} : vector<8x16xf32> to vector<8x1xf32>
    %1692 = vector.shape_cast %1691 : vector<8x1xf32> to vector<8x1xf32>
    %1693 = vector.broadcast %1692 : vector<8x1xf32> to vector<8x16xf32>
    %1694 = arith.mulf %1693, %23 : vector<8x16xf32>
    %1695 = arith.mulf %1693, %71 : vector<8x16xf32>
    %1696 = arith.mulf %1693, %119 : vector<8x16xf32>
    %1697 = arith.mulf %1693, %167 : vector<8x16xf32>
    %1698 = vector.extract_strided_slice %1658 {offsets = [0, 5], sizes = [8, 1], strides = [1, 1]} : vector<8x16xf32> to vector<8x1xf32>
    %1699 = vector.shape_cast %1698 : vector<8x1xf32> to vector<8x1xf32>
    %1700 = vector.broadcast %1699 : vector<8x1xf32> to vector<8x16xf32>
    %1701 = arith.mulf %1700, %26 : vector<8x16xf32>
    %1702 = arith.mulf %1700, %74 : vector<8x16xf32>
    %1703 = arith.mulf %1700, %122 : vector<8x16xf32>
    %1704 = arith.mulf %1700, %170 : vector<8x16xf32>
    %1705 = vector.extract_strided_slice %1658 {offsets = [0, 6], sizes = [8, 1], strides = [1, 1]} : vector<8x16xf32> to vector<8x1xf32>
    %1706 = vector.shape_cast %1705 : vector<8x1xf32> to vector<8x1xf32>
    %1707 = vector.broadcast %1706 : vector<8x1xf32> to vector<8x16xf32>
    %1708 = arith.mulf %1707, %29 : vector<8x16xf32>
    %1709 = arith.mulf %1707, %77 : vector<8x16xf32>
    %1710 = arith.mulf %1707, %125 : vector<8x16xf32>
    %1711 = arith.mulf %1707, %173 : vector<8x16xf32>
    %1712 = vector.extract_strided_slice %1658 {offsets = [0, 7], sizes = [8, 1], strides = [1, 1]} : vector<8x16xf32> to vector<8x1xf32>
    %1713 = vector.shape_cast %1712 : vector<8x1xf32> to vector<8x1xf32>
    %1714 = vector.broadcast %1713 : vector<8x1xf32> to vector<8x16xf32>
    %1715 = arith.mulf %1714, %32 : vector<8x16xf32>
    %1716 = arith.mulf %1714, %80 : vector<8x16xf32>
    %1717 = arith.mulf %1714, %128 : vector<8x16xf32>
    %1718 = arith.mulf %1714, %176 : vector<8x16xf32>
    %1719 = vector.extract_strided_slice %1658 {offsets = [0, 8], sizes = [8, 1], strides = [1, 1]} : vector<8x16xf32> to vector<8x1xf32>
    %1720 = vector.shape_cast %1719 : vector<8x1xf32> to vector<8x1xf32>
    %1721 = vector.broadcast %1720 : vector<8x1xf32> to vector<8x16xf32>
    %1722 = arith.mulf %1721, %35 : vector<8x16xf32>
    %1723 = arith.mulf %1721, %83 : vector<8x16xf32>
    %1724 = arith.mulf %1721, %131 : vector<8x16xf32>
    %1725 = arith.mulf %1721, %179 : vector<8x16xf32>
    %1726 = vector.extract_strided_slice %1658 {offsets = [0, 9], sizes = [8, 1], strides = [1, 1]} : vector<8x16xf32> to vector<8x1xf32>
    %1727 = vector.shape_cast %1726 : vector<8x1xf32> to vector<8x1xf32>
    %1728 = vector.broadcast %1727 : vector<8x1xf32> to vector<8x16xf32>
    %1729 = arith.mulf %1728, %38 : vector<8x16xf32>
    %1730 = arith.mulf %1728, %86 : vector<8x16xf32>
    %1731 = arith.mulf %1728, %134 : vector<8x16xf32>
    %1732 = arith.mulf %1728, %182 : vector<8x16xf32>
    %1733 = vector.extract_strided_slice %1658 {offsets = [0, 10], sizes = [8, 1], strides = [1, 1]} : vector<8x16xf32> to vector<8x1xf32>
    %1734 = vector.shape_cast %1733 : vector<8x1xf32> to vector<8x1xf32>
    %1735 = vector.broadcast %1734 : vector<8x1xf32> to vector<8x16xf32>
    %1736 = arith.mulf %1735, %41 : vector<8x16xf32>
    %1737 = arith.mulf %1735, %89 : vector<8x16xf32>
    %1738 = arith.mulf %1735, %137 : vector<8x16xf32>
    %1739 = arith.mulf %1735, %185 : vector<8x16xf32>
    %1740 = vector.extract_strided_slice %1658 {offsets = [0, 11], sizes = [8, 1], strides = [1, 1]} : vector<8x16xf32> to vector<8x1xf32>
    %1741 = vector.shape_cast %1740 : vector<8x1xf32> to vector<8x1xf32>
    %1742 = vector.broadcast %1741 : vector<8x1xf32> to vector<8x16xf32>
    %1743 = arith.mulf %1742, %44 : vector<8x16xf32>
    %1744 = arith.mulf %1742, %92 : vector<8x16xf32>
    %1745 = arith.mulf %1742, %140 : vector<8x16xf32>
    %1746 = arith.mulf %1742, %188 : vector<8x16xf32>
    %1747 = vector.extract_strided_slice %1658 {offsets = [0, 12], sizes = [8, 1], strides = [1, 1]} : vector<8x16xf32> to vector<8x1xf32>
    %1748 = vector.shape_cast %1747 : vector<8x1xf32> to vector<8x1xf32>
    %1749 = vector.broadcast %1748 : vector<8x1xf32> to vector<8x16xf32>
    %1750 = arith.mulf %1749, %47 : vector<8x16xf32>
    %1751 = arith.mulf %1749, %95 : vector<8x16xf32>
    %1752 = arith.mulf %1749, %143 : vector<8x16xf32>
    %1753 = arith.mulf %1749, %191 : vector<8x16xf32>
    %1754 = vector.extract_strided_slice %1658 {offsets = [0, 13], sizes = [8, 1], strides = [1, 1]} : vector<8x16xf32> to vector<8x1xf32>
    %1755 = vector.shape_cast %1754 : vector<8x1xf32> to vector<8x1xf32>
    %1756 = vector.broadcast %1755 : vector<8x1xf32> to vector<8x16xf32>
    %1757 = arith.mulf %1756, %50 : vector<8x16xf32>
    %1758 = arith.mulf %1756, %98 : vector<8x16xf32>
    %1759 = arith.mulf %1756, %146 : vector<8x16xf32>
    %1760 = arith.mulf %1756, %194 : vector<8x16xf32>
    %1761 = vector.extract_strided_slice %1658 {offsets = [0, 14], sizes = [8, 1], strides = [1, 1]} : vector<8x16xf32> to vector<8x1xf32>
    %1762 = vector.shape_cast %1761 : vector<8x1xf32> to vector<8x1xf32>
    %1763 = vector.broadcast %1762 : vector<8x1xf32> to vector<8x16xf32>
    %1764 = arith.mulf %1763, %53 : vector<8x16xf32>
    %1765 = arith.mulf %1763, %101 : vector<8x16xf32>
    %1766 = arith.mulf %1763, %149 : vector<8x16xf32>
    %1767 = arith.mulf %1763, %197 : vector<8x16xf32>
    %1768 = vector.extract_strided_slice %1658 {offsets = [0, 15], sizes = [8, 1], strides = [1, 1]} : vector<8x16xf32> to vector<8x1xf32>
    %1769 = vector.shape_cast %1768 : vector<8x1xf32> to vector<8x1xf32>
    %1770 = vector.broadcast %1769 : vector<8x1xf32> to vector<8x16xf32>
    %1771 = arith.mulf %1770, %56 : vector<8x16xf32>
    %1772 = arith.mulf %1770, %104 : vector<8x16xf32>
    %1773 = arith.mulf %1770, %152 : vector<8x16xf32>
    %1774 = arith.mulf %1770, %200 : vector<8x16xf32>
    %1775 = arith.addf %1659, %1666 : vector<8x16xf32>
    %1776 = arith.addf %1673, %1680 : vector<8x16xf32>
    %1777 = arith.addf %1687, %1694 : vector<8x16xf32>
    %1778 = arith.addf %1701, %1708 : vector<8x16xf32>
    %1779 = arith.addf %1715, %1722 : vector<8x16xf32>
    %1780 = arith.addf %1729, %1736 : vector<8x16xf32>
    %1781 = arith.addf %1743, %1750 : vector<8x16xf32>
    %1782 = arith.addf %1757, %1764 : vector<8x16xf32>
    %1783 = arith.addf %1775, %1776 : vector<8x16xf32>
    %1784 = arith.addf %1777, %1778 : vector<8x16xf32>
    %1785 = arith.addf %1779, %1780 : vector<8x16xf32>
    %1786 = arith.addf %1781, %1782 : vector<8x16xf32>
    %1787 = arith.addf %1783, %1784 : vector<8x16xf32>
    %1788 = arith.addf %1785, %1786 : vector<8x16xf32>
    %1789 = arith.addf %1787, %1788 : vector<8x16xf32>
    %1790 = arith.addf %1789, %1771 : vector<8x16xf32>
    %1791 = arith.addf %1660, %1667 : vector<8x16xf32>
    %1792 = arith.addf %1674, %1681 : vector<8x16xf32>
    %1793 = arith.addf %1688, %1695 : vector<8x16xf32>
    %1794 = arith.addf %1702, %1709 : vector<8x16xf32>
    %1795 = arith.addf %1716, %1723 : vector<8x16xf32>
    %1796 = arith.addf %1730, %1737 : vector<8x16xf32>
    %1797 = arith.addf %1744, %1751 : vector<8x16xf32>
    %1798 = arith.addf %1758, %1765 : vector<8x16xf32>
    %1799 = arith.addf %1791, %1792 : vector<8x16xf32>
    %1800 = arith.addf %1793, %1794 : vector<8x16xf32>
    %1801 = arith.addf %1795, %1796 : vector<8x16xf32>
    %1802 = arith.addf %1797, %1798 : vector<8x16xf32>
    %1803 = arith.addf %1799, %1800 : vector<8x16xf32>
    %1804 = arith.addf %1801, %1802 : vector<8x16xf32>
    %1805 = arith.addf %1803, %1804 : vector<8x16xf32>
    %1806 = arith.addf %1805, %1772 : vector<8x16xf32>
    %1807 = arith.addf %1661, %1668 : vector<8x16xf32>
    %1808 = arith.addf %1675, %1682 : vector<8x16xf32>
    %1809 = arith.addf %1689, %1696 : vector<8x16xf32>
    %1810 = arith.addf %1703, %1710 : vector<8x16xf32>
    %1811 = arith.addf %1717, %1724 : vector<8x16xf32>
    %1812 = arith.addf %1731, %1738 : vector<8x16xf32>
    %1813 = arith.addf %1745, %1752 : vector<8x16xf32>
    %1814 = arith.addf %1759, %1766 : vector<8x16xf32>
    %1815 = arith.addf %1807, %1808 : vector<8x16xf32>
    %1816 = arith.addf %1809, %1810 : vector<8x16xf32>
    %1817 = arith.addf %1811, %1812 : vector<8x16xf32>
    %1818 = arith.addf %1813, %1814 : vector<8x16xf32>
    %1819 = arith.addf %1815, %1816 : vector<8x16xf32>
    %1820 = arith.addf %1817, %1818 : vector<8x16xf32>
    %1821 = arith.addf %1819, %1820 : vector<8x16xf32>
    %1822 = arith.addf %1821, %1773 : vector<8x16xf32>
    %1823 = arith.addf %1662, %1669 : vector<8x16xf32>
    %1824 = arith.addf %1676, %1683 : vector<8x16xf32>
    %1825 = arith.addf %1690, %1697 : vector<8x16xf32>
    %1826 = arith.addf %1704, %1711 : vector<8x16xf32>
    %1827 = arith.addf %1718, %1725 : vector<8x16xf32>
    %1828 = arith.addf %1732, %1739 : vector<8x16xf32>
    %1829 = arith.addf %1746, %1753 : vector<8x16xf32>
    %1830 = arith.addf %1760, %1767 : vector<8x16xf32>
    %1831 = arith.addf %1823, %1824 : vector<8x16xf32>
    %1832 = arith.addf %1825, %1826 : vector<8x16xf32>
    %1833 = arith.addf %1827, %1828 : vector<8x16xf32>
    %1834 = arith.addf %1829, %1830 : vector<8x16xf32>
    %1835 = arith.addf %1831, %1832 : vector<8x16xf32>
    %1836 = arith.addf %1833, %1834 : vector<8x16xf32>
    %1837 = arith.addf %1835, %1836 : vector<8x16xf32>
    %1838 = arith.addf %1837, %1774 : vector<8x16xf32>
    %cst_141 = arith.constant 5.000000e-01 : f32
    %1839 = vector.broadcast %cst_141 : f32 to vector<8x16xf32>
    %1840 = arith.mulf %1839, %1790 : vector<8x16xf32>
    %1841 = math.tanh %1840 : vector<8x16xf32>
    %cst_142 = arith.constant 5.000000e-01 : f32
    %1842 = vector.broadcast %cst_142 : f32 to vector<8x16xf32>
    %1843 = arith.mulf %1842, %1841 : vector<8x16xf32>
    %cst_143 = arith.constant 5.000000e-01 : f32
    %1844 = vector.broadcast %cst_143 : f32 to vector<8x16xf32>
    %1845 = arith.addf %1843, %1844 : vector<8x16xf32>
    %cst_144 = arith.constant 5.000000e-01 : f32
    %1846 = vector.broadcast %cst_144 : f32 to vector<8x16xf32>
    %1847 = arith.mulf %1846, %1806 : vector<8x16xf32>
    %1848 = math.tanh %1847 : vector<8x16xf32>
    %cst_145 = arith.constant 5.000000e-01 : f32
    %1849 = vector.broadcast %cst_145 : f32 to vector<8x16xf32>
    %1850 = arith.mulf %1849, %1848 : vector<8x16xf32>
    %cst_146 = arith.constant 5.000000e-01 : f32
    %1851 = vector.broadcast %cst_146 : f32 to vector<8x16xf32>
    %1852 = arith.addf %1850, %1851 : vector<8x16xf32>
    %cst_147 = arith.constant 5.000000e-01 : f32
    %1853 = vector.broadcast %cst_147 : f32 to vector<8x16xf32>
    %1854 = arith.mulf %1853, %1838 : vector<8x16xf32>
    %1855 = math.tanh %1854 : vector<8x16xf32>
    %cst_148 = arith.constant 5.000000e-01 : f32
    %1856 = vector.broadcast %cst_148 : f32 to vector<8x16xf32>
    %1857 = arith.mulf %1856, %1855 : vector<8x16xf32>
    %cst_149 = arith.constant 5.000000e-01 : f32
    %1858 = vector.broadcast %cst_149 : f32 to vector<8x16xf32>
    %1859 = arith.addf %1857, %1858 : vector<8x16xf32>
    %1860 = math.tanh %1822 : vector<8x16xf32>
    %1861 = arith.mulf %1852, %1656 : vector<8x16xf32>
    %1862 = arith.mulf %1845, %1860 : vector<8x16xf32>
    %1863 = arith.addf %1861, %1862 : vector<8x16xf32>
    %1864 = math.tanh %1863 : vector<8x16xf32>
    %1865 = arith.mulf %1859, %1864 : vector<8x16xf32>
    %1866 = tpu.concatenate %1, %1865 in 1 : vector<8x16xf32>, vector<8x16xf32> -> vector<8x32xf32>
    %cst_150 = arith.constant dense<0.000000e+00> : vector<8x32xf32>
    %1867 = tpu.matmul %1866, %4, %cst_150 {dimension_numbers = #tpu.dot_dimension_numbers<[1], [0], [0], [1], [0, 0, 1, 1], [], []>} : vector<8x32xf32>, vector<32x32xf32>, vector<8x32xf32> -> vector<8x32xf32>
    %1868 = vector.broadcast %7 : vector<1x32xf32> to vector<8x32xf32>
    %1869 = arith.addf %1867, %1868 : vector<8x32xf32>
    %cst_151 = arith.constant dense<0.000000e+00> : vector<8x2xf32>
    %1870 = tpu.matmul %1869, %5, %cst_151 {dimension_numbers = #tpu.dot_dimension_numbers<[1], [0], [0], [1], [0, 0, 1, 1], [], []>} : vector<8x32xf32>, vector<32x2xf32>, vector<8x2xf32> -> vector<8x2xf32>
    %1871 = vector.broadcast %8 : vector<1x2xf32> to vector<8x2xf32>
    %1872 = arith.addf %1870, %1871 : vector<8x2xf32>
    %cst_152 = arith.constant dense<0xFF800000> : vector<8xf32>
    %1873 = vector.multi_reduction <maximumf>, %1872, %cst_152 [1] : vector<8x2xf32> to vector<8xf32>
    %1874 = vector.shape_cast %1873 : vector<8xf32> to vector<8x1xf32>
    %1875 = vector.broadcast %1874 : vector<8x1xf32> to vector<8x2xf32>
    %1876 = arith.subf %1872, %1875 : vector<8x2xf32>
    %1877 = math.exp %1876 : vector<8x2xf32>
    %cst_153 = arith.constant dense<0.000000e+00> : vector<8xf32>
    %1878 = vector.multi_reduction <add>, %1877, %cst_153 [1] : vector<8x2xf32> to vector<8xf32>
    %1879 = vector.shape_cast %1878 : vector<8xf32> to vector<8x1xf32>
    %1880 = vector.broadcast %1879 : vector<8x1xf32> to vector<8x2xf32>
    %1881 = arith.divf %1877, %1880 : vector<8x2xf32>
    %cst_154 = arith.constant 0.000000e+00 : f32
    %1882 = vector.broadcast %cst_154 : f32 to vector<8x2xf32>
    %1883 = arith.maximumf %1872, %1882 : vector<8x2xf32>
    %1884 = arith.mulf %1872, %2 : vector<8x2xf32>
    %1885 = arith.subf %1883, %1884 : vector<8x2xf32>
    %1886 = math.absf %1872 : vector<8x2xf32>
    %cst_155 = arith.constant 0.000000e+00 : f32
    %1887 = vector.broadcast %cst_155 : f32 to vector<8x2xf32>
    %1888 = arith.subf %1887, %1886 : vector<8x2xf32>
    %1889 = math.exp %1888 : vector<8x2xf32>
    %1890 = math.log1p %1889 : vector<8x2xf32>
    %1891 = arith.addf %1885, %1890 : vector<8x2xf32>
    %1892 = tpu.iota {dimensions = array<i32: 0>} : vector<8x2xi32>
    %c2_i32 = arith.constant 2 : i32
    %1893 = vector.broadcast %c2_i32 : i32 to vector<8x2xi32>
    %1894 = arith.cmpi slt, %1892, %1893 : vector<8x2xi32>
    %cst_156 = arith.constant 0.000000e+00 : f32
    %1895 = vector.broadcast %cst_156 : f32 to vector<8x2xf32>
    %1896 = arith.select %1894, %1891, %1895 : vector<8x2xi1>, vector<8x2xf32>
    %1897 = vector.shape_cast %1896 : vector<8x2xf32> to vector<1x8x2xf32>
    %cst_157 = arith.constant dense<0.000000e+00> : vector<1xf32>
    %1898 = vector.multi_reduction <add>, %1897, %cst_157 [1, 2] : vector<1x8x2xf32> to vector<1xf32>
    %1899 = vector.shape_cast %1898 : vector<1xf32> to vector<1x1x1xf32>
    %1900 = vector.extract %1899[0, 0, 0] : f32 from vector<1x1x1xf32>
    %1901 = vector.broadcast %1900 : f32 to vector<1x1xf32>
    %cst_158 = arith.constant 2.500000e-01 : f32
    %1902 = vector.broadcast %cst_158 : f32 to vector<1x1xf32>
    %1903 = arith.mulf %1901, %1902 : vector<1x1xf32>
    %1904 = tpu.iota {dimensions = array<i32: 1>} : vector<8x2xi32>
    %cst_159 = arith.constant dense<0xFF800000> : vector<8xf32>
    %1905 = vector.multi_reduction <maximumf>, %1881, %cst_159 [1] : vector<8x2xf32> to vector<8xf32>
    %1906 = vector.shape_cast %1905 : vector<8xf32> to vector<8x1xf32>
    %1907 = vector.broadcast %1906 : vector<8x1xf32> to vector<8x2xf32>
    %1908 = arith.cmpf oeq, %1881, %1907 : vector<8x2xf32>
    %c2_i32_160 = arith.constant 2 : i32
    %1909 = vector.broadcast %c2_i32_160 : i32 to vector<8x2xi32>
    %1910 = arith.select %1908, %1904, %1909 : vector<8x2xi1>, vector<8x2xi32>
    %cst_161 = arith.constant dense<2147483647> : vector<8xi32>
    %1911 = vector.multi_reduction <minsi>, %1910, %cst_161 [1] : vector<8x2xi32> to vector<8xi32>
    %1912 = vector.shape_cast %1911 : vector<8xi32> to vector<8x1xi32>
    %1913 = arith.sitofp %1912 : vector<8x1xi32> to vector<8x1xf32>
    %1914 = vector.shape_cast %1903 : vector<1x1xf32> to vector<1x1xf32>
    %1915 = vector.broadcast %1914 : vector<1x1xf32> to vector<8x1xf32>
    %cst_162 = arith.constant 0.000000e+00 : f32
    %1916 = vector.broadcast %cst_162 : f32 to vector<8x92xf32>
    %1917 = tpu.concatenate %1869, %1881, %1913, %1915, %1916 in 1 : vector<8x32xf32>, vector<8x2xf32>, vector<8x1xf32>, vector<8x1xf32>, vector<8x92xf32> -> vector<8x128xf32>
    %c0_163 = arith.constant 0 : index
    %c0_164 = arith.constant 0 : index
    %1918 = vector.load %arg2[%c0_163, %c0_164] : memref<8x128xf32, #tpu.memory_space<vmem>>, vector<8x128xf32>
    tpu.vector_store %arg2[%c0_163, %c0_164], %1917 {strides = array<i32>} : memref<8x128xf32, #tpu.memory_space<vmem>>, vector<8x128xf32>,
    return
  }
}

</mosaic_0001>

<llo_original>
// kernel: mix_model_forward.1
$region0: #{mix_model_forward.1}
  #allocation0 [shape = 'u32[]', space=smem, size = 0x4, offset = 0x4, fixed_abs, tag = 'smem constant byte address 0x4 - core index']
  #allocation1 [shape = 'u32[144,128]{1,0:T(1,128)}', space=vmem, size = 0x12000, scoped, tag = 'internal scratch']
  %s0 = inlined_call_operand.vmem [shape: f32[80,16], index: 0, kind: input, shape index: {}]
  %s1 = inlined_call_operand.vmem [shape: f32[168,64], index: 1, kind: input, shape index: {}]
  %s2 = inlined_call_operand.vmem [shape: f32[8,128], index: 2, kind: output, shape index: {}]
  %s3 = sld [smem:[#allocation0]]
  $region18: #{mix_model_forward.1} parent=0
    _
  %s5 = ssub.s32 1, %s3
  %s6 = scalar_select 0, %s5, %s3
  // Predicated region
  $region2: #{mix_model_forward.1} parent=0 // pred_check
    _
  $region3: #{mix_model_forward.1} parent=0 // pred_check_branch
    %8 = sbr.rel (0) target = $region5
  $region4: #{mix_model_forward.1} parent=0 // pred_region
    _
  $region5: #{mix_model_forward.1} parent=0 // pred_fallthru
    _
  // Predicated region
  $region6: #{mix_model_forward.1} parent=0 // pred_check
    _
  $region7: #{mix_model_forward.1} parent=0 // pred_check_branch
    %10 = sbr.rel (0) target = $region9
  $region8: #{mix_model_forward.1} parent=0 // pred_region
    _
  $region9: #{mix_model_forward.1} parent=0 // pred_fallthru
    _
  %v11 = vld [vmem:[%s0] sm:$0xff]
  %v12 = vld [vmem:[%s0 + $0x8] sm:$0xff]
  %v13 = vld [vmem:[%s0 + $0x10] sm:$0xff]
  %v14 = vld [vmem:[%s0 + $0x18] sm:$0xff]
  %v15 = vld [vmem:[%s0 + $0x20] sm:$0xff]
  %v16 = vld [vmem:[%s0 + $0x28] sm:$0xff]
  %v17 = vld [vmem:[%s0 + $0x30] sm:$0xff]
  %v18 = vld [vmem:[%s0 + $0x38] sm:$0xff]
  %v19 = vld [vmem:[%s0 + $0x40] sm:$0xff]
  %v20 = vld [vmem:[%s0 + $0x48] sm:$0xff]
  %v21 = vld [vmem:[%s1] sm:$0xff]
  %v22 = vld [vmem:[%s1 + $0x8] sm:$0xff]
  %v23 = vld [vmem:[%s1 + $0x50] sm:$0xff]
  %v24 = vld [vmem:[%s1 + $0x58] sm:$0xff]
  %v25 = vld [vmem:[%s1 + $0x60] sm:$0xff]
  %v26 = vld [vmem:[%s1 + $0x68] sm:$0xff]
  %v27 = vld [vmem:[%s1 + $0x70] sm:$0xff]
  %v28 = vld [vmem:[%s1 + $0x78] sm:$0xff]
  %v29 = vld [vmem:[%s1 + $0x80] sm:$0xff]
  %v30 = vld [vmem:[%s1 + $0x88] sm:$0xff]
  %v31 = vld [vmem:[%s1 + $0x90] sm:$0x1]
  %v32 = vld [vmem:[%s1 + $0x98] sm:$0x1]
  %v33 = vld [vmem:[%s1 + $0xa0] sm:$0x1]
  %v34 = vld [vmem:[%s1 + $0x10] sm:$0x1]
  %v35 = vlaneseq
  %v36 = vshrl.u32 %v35, 7
  %v37 = vsub.s32 0, %v36
  %v38 = vrot.slane %v34, %v37
  %v39 = vld [vmem:[%s1 + $0x11] sm:$0x1]
  %v40 = vlaneseq
  %v41 = vshrl.u32 %v40, 7
  %v42 = vsub.s32 0, %v41
  %v43 = vrot.slane %v39, %v42
  %v44 = vld [vmem:[%s1 + $0x12] sm:$0x1]
  %v45 = vlaneseq
  %v46 = vshrl.u32 %v45, 7
  %v47 = vsub.s32 0, %v46
  %v48 = vrot.slane %v44, %v47
  %v49 = vld [vmem:[%s1 + $0x13] sm:$0x1]
  %v50 = vlaneseq
  %v51 = vshrl.u32 %v50, 7
  %v52 = vsub.s32 0, %v51
  %v53 = vrot.slane %v49, %v52
  %v54 = vld [vmem:[%s1 + $0x14] sm:$0x1]
  %v55 = vlaneseq
  %v56 = vshrl.u32 %v55, 7
  %v57 = vsub.s32 0, %v56
  %v58 = vrot.slane %v54, %v57
  %v59 = vld [vmem:[%s1 + $0x15] sm:$0x1]
  %v60 = vlaneseq
  %v61 = vshrl.u32 %v60, 7
  %v62 = vsub.s32 0, %v61
  %v63 = vrot.slane %v59, %v62
  %v64 = vld [vmem:[%s1 + $0x16] sm:$0x1]
  %v65 = vlaneseq
  %v66 = vshrl.u32 %v65, 7
  %v67 = vsub.s32 0, %v66
  %v68 = vrot.slane %v64, %v67
  %v69 = vld [vmem:[%s1 + $0x17] sm:$0x1]
  %v70 = vlaneseq
  %v71 = vshrl.u32 %v70, 7
  %v72 = vsub.s32 0, %v71
  %v73 = vrot.slane %v69, %v72
  %v74 = vld [vmem:[%s1 + $0x18] sm:$0x1]
  %v75 = vlaneseq
  %v76 = vshrl.u32 %v75, 7
  %v77 = vsub.s32 0, %v76
  %v78 = vrot.slane %v74, %v77
  %v79 = vld [vmem:[%s1 + $0x19] sm:$0x1]
  %v80 = vlaneseq
  %v81 = vshrl.u32 %v80, 7
  %v82 = vsub.s32 0, %v81
  %v83 = vrot.slane %v79, %v82
  %v84 = vld [vmem:[%s1 + $0x1a] sm:$0x1]
  %v85 = vlaneseq
  %v86 = vshrl.u32 %v85, 7
  %v87 = vsub.s32 0, %v86
  %v88 = vrot.slane %v84, %v87
  %v89 = vld [vmem:[%s1 + $0x1b] sm:$0x1]
  %v90 = vlaneseq
  %v91 = vshrl.u32 %v90, 7
  %v92 = vsub.s32 0, %v91
  %v93 = vrot.slane %v89, %v92
  %v94 = vld [vmem:[%s1 + $0x1c] sm:$0x1]
  %v95 = vlaneseq
  %v96 = vshrl.u32 %v95, 7
  %v97 = vsub.s32 0, %v96
  %v98 = vrot.slane %v94, %v97
  %v99 = vld [vmem:[%s1 + $0x1d] sm:$0x1]
  %v100 = vlaneseq
  %v101 = vshrl.u32 %v100, 7
  %v102 = vsub.s32 0, %v101
  %v103 = vrot.slane %v99, %v102
  %v104 = vld [vmem:[%s1 + $0x1e] sm:$0x1]
  %v105 = vlaneseq
  %v106 = vshrl.u32 %v105, 7
  %v107 = vsub.s32 0, %v106
  %v108 = vrot.slane %v104, %v107
  %v109 = vld [vmem:[%s1 + $0x1f] sm:$0x1]
  %v110 = vlaneseq
  %v111 = vshrl.u32 %v110, 7
  %v112 = vsub.s32 0, %v111
  %v113 = vrot.slane %v109, %v112
  %v114 = vld [vmem:[%s1 + $0x20] sm:$0x1]
  %v115 = vlaneseq
  %v116 = vshrl.u32 %v115, 7
  %v117 = vsub.s32 0, %v116
  %v118 = vrot.slane %v114, %v117
  %v119 = vld [vmem:[%s1 + $0x21] sm:$0x1]
  %v120 = vlaneseq
  %v121 = vshrl.u32 %v120, 7
  %v122 = vsub.s32 0, %v121
  %v123 = vrot.slane %v119, %v122
  %v124 = vld [vmem:[%s1 + $0x22] sm:$0x1]
  %v125 = vlaneseq
  %v126 = vshrl.u32 %v125, 7
  %v127 = vsub.s32 0, %v126
  %v128 = vrot.slane %v124, %v127
  %v129 = vld [vmem:[%s1 + $0x23] sm:$0x1]
  %v130 = vlaneseq
  %v131 = vshrl.u32 %v130, 7
  %v132 = vsub.s32 0, %v131
  %v133 = vrot.slane %v129, %v132
  %v134 = vld [vmem:[%s1 + $0x24] sm:$0x1]
  %v135 = vlaneseq
  %v136 = vshrl.u32 %v135, 7
  %v137 = vsub.s32 0, %v136
  %v138 = vrot.slane %v134, %v137
  %v139 = vld [vmem:[%s1 + $0x25] sm:$0x1]
  %v140 = vlaneseq
  %v141 = vshrl.u32 %v140, 7
  %v142 = vsub.s32 0, %v141
  %v143 = vrot.slane %v139, %v142
  %v144 = vld [vmem:[%s1 + $0x26] sm:$0x1]
  %v145 = vlaneseq
  %v146 = vshrl.u32 %v145, 7
  %v147 = vsub.s32 0, %v146
  %v148 = vrot.slane %v144, %v147
  %v149 = vld [vmem:[%s1 + $0x27] sm:$0x1]
  %v150 = vlaneseq
  %v151 = vshrl.u32 %v150, 7
  %v152 = vsub.s32 0, %v151
  %v153 = vrot.slane %v149, %v152
  %v154 = vld [vmem:[%s1 + $0x28] sm:$0x1]
  %v155 = vlaneseq
  %v156 = vshrl.u32 %v155, 7
  %v157 = vsub.s32 0, %v156
  %v158 = vrot.slane %v154, %v157
  %v159 = vld [vmem:[%s1 + $0x29] sm:$0x1]
  %v160 = vlaneseq
  %v161 = vshrl.u32 %v160, 7
  %v162 = vsub.s32 0, %v161
  %v163 = vrot.slane %v159, %v162
  %v164 = vld [vmem:[%s1 + $0x2a] sm:$0x1]
  %v165 = vlaneseq
  %v166 = vshrl.u32 %v165, 7
  %v167 = vsub.s32 0, %v166
  %v168 = vrot.slane %v164, %v167
  %v169 = vld [vmem:[%s1 + $0x2b] sm:$0x1]
  %v170 = vlaneseq
  %v171 = vshrl.u32 %v170, 7
  %v172 = vsub.s32 0, %v171
  %v173 = vrot.slane %v169, %v172
  %v174 = vld [vmem:[%s1 + $0x2c] sm:$0x1]
  %v175 = vlaneseq
  %v176 = vshrl.u32 %v175, 7
  %v177 = vsub.s32 0, %v176
  %v178 = vrot.slane %v174, %v177
  %v179 = vld [vmem:[%s1 + $0x2d] sm:$0x1]
  %v180 = vlaneseq
  %v181 = vshrl.u32 %v180, 7
  %v182 = vsub.s32 0, %v181
  %v183 = vrot.slane %v179, %v182
  %v184 = vld [vmem:[%s1 + $0x2e] sm:$0x1]
  %v185 = vlaneseq
  %v186 = vshrl.u32 %v185, 7
  %v187 = vsub.s32 0, %v186
  %v188 = vrot.slane %v184, %v187
  %v189 = vld [vmem:[%s1 + $0x2f] sm:$0x1]
  %v190 = vlaneseq
  %v191 = vshrl.u32 %v190, 7
  %v192 = vsub.s32 0, %v191
  %v193 = vrot.slane %v189, %v192
  %v194 = vld [vmem:[%s1 + $0x30] sm:$0x1]
  %v195 = vlaneseq
  %v196 = vshrl.u32 %v195, 7
  %v197 = vsub.s32 0, %v196
  %v198 = vrot.slane %v194, %v197
  %v199 = vld [vmem:[%s1 + $0x31] sm:$0x1]
  %v200 = vlaneseq
  %v201 = vshrl.u32 %v200, 7
  %v202 = vsub.s32 0, %v201
  %v203 = vrot.slane %v199, %v202
  %v204 = vld [vmem:[%s1 + $0x32] sm:$0x1]
  %v205 = vlaneseq
  %v206 = vshrl.u32 %v205, 7
  %v207 = vsub.s32 0, %v206
  %v208 = vrot.slane %v204, %v207
  %v209 = vld [vmem:[%s1 + $0x33] sm:$0x1]
  %v210 = vlaneseq
  %v211 = vshrl.u32 %v210, 7
  %v212 = vsub.s32 0, %v211
  %v213 = vrot.slane %v209, %v212
  %v214 = vld [vmem:[%s1 + $0x34] sm:$0x1]
  %v215 = vlaneseq
  %v216 = vshrl.u32 %v215, 7
  %v217 = vsub.s32 0, %v216
  %v218 = vrot.slane %v214, %v217
  %v219 = vld [vmem:[%s1 + $0x35] sm:$0x1]
  %v220 = vlaneseq
  %v221 = vshrl.u32 %v220, 7
  %v222 = vsub.s32 0, %v221
  %v223 = vrot.slane %v219, %v222
  %v224 = vld [vmem:[%s1 + $0x36] sm:$0x1]
  %v225 = vlaneseq
  %v226 = vshrl.u32 %v225, 7
  %v227 = vsub.s32 0, %v226
  %v228 = vrot.slane %v224, %v227
  %v229 = vld [vmem:[%s1 + $0x37] sm:$0x1]
  %v230 = vlaneseq
  %v231 = vshrl.u32 %v230, 7
  %v232 = vsub.s32 0, %v231
  %v233 = vrot.slane %v229, %v232
  %v234 = vld [vmem:[%s1 + $0x38] sm:$0x1]
  %v235 = vlaneseq
  %v236 = vshrl.u32 %v235, 7
  %v237 = vsub.s32 0, %v236
  %v238 = vrot.slane %v234, %v237
  %v239 = vld [vmem:[%s1 + $0x39] sm:$0x1]
  %v240 = vlaneseq
  %v241 = vshrl.u32 %v240, 7
  %v242 = vsub.s32 0, %v241
  %v243 = vrot.slane %v239, %v242
  %v244 = vld [vmem:[%s1 + $0x3a] sm:$0x1]
  %v245 = vlaneseq
  %v246 = vshrl.u32 %v245, 7
  %v247 = vsub.s32 0, %v246
  %v248 = vrot.slane %v244, %v247
  %v249 = vld [vmem:[%s1 + $0x3b] sm:$0x1]
  %v250 = vlaneseq
  %v251 = vshrl.u32 %v250, 7
  %v252 = vsub.s32 0, %v251
  %v253 = vrot.slane %v249, %v252
  %v254 = vld [vmem:[%s1 + $0x3c] sm:$0x1]
  %v255 = vlaneseq
  %v256 = vshrl.u32 %v255, 7
  %v257 = vsub.s32 0, %v256
  %v258 = vrot.slane %v254, %v257
  %v259 = vld [vmem:[%s1 + $0x3d] sm:$0x1]
  %v260 = vlaneseq
  %v261 = vshrl.u32 %v260, 7
  %v262 = vsub.s32 0, %v261
  %v263 = vrot.slane %v259, %v262
  %v264 = vld [vmem:[%s1 + $0x3e] sm:$0x1]
  %v265 = vlaneseq
  %v266 = vshrl.u32 %v265, 7
  %v267 = vsub.s32 0, %v266
  %v268 = vrot.slane %v264, %v267
  %v269 = vld [vmem:[%s1 + $0x3f] sm:$0x1]
  %v270 = vlaneseq
  %v271 = vshrl.u32 %v270, 7
  %v272 = vsub.s32 0, %v271
  %v273 = vrot.slane %v269, %v272
  %v274 = vld [vmem:[%s1 + $0x40] sm:$0x1]
  %v275 = vlaneseq
  %v276 = vshrl.u32 %v275, 7
  %v277 = vsub.s32 0, %v276
  %v278 = vrot.slane %v274, %v277
  %v279 = vld [vmem:[%s1 + $0x41] sm:$0x1]
  %v280 = vlaneseq
  %v281 = vshrl.u32 %v280, 7
  %v282 = vsub.s32 0, %v281
  %v283 = vrot.slane %v279, %v282
  %v284 = vld [vmem:[%s1 + $0x42] sm:$0x1]
  %v285 = vlaneseq
  %v286 = vshrl.u32 %v285, 7
  %v287 = vsub.s32 0, %v286
  %v288 = vrot.slane %v284, %v287
  %v289 = vld [vmem:[%s1 + $0x43] sm:$0x1]
  %v290 = vlaneseq
  %v291 = vshrl.u32 %v290, 7
  %v292 = vsub.s32 0, %v291
  %v293 = vrot.slane %v289, %v292
  %v294 = vld [vmem:[%s1 + $0x44] sm:$0x1]
  %v295 = vlaneseq
  %v296 = vshrl.u32 %v295, 7
  %v297 = vsub.s32 0, %v296
  %v298 = vrot.slane %v294, %v297
  %v299 = vld [vmem:[%s1 + $0x45] sm:$0x1]
  %v300 = vlaneseq
  %v301 = vshrl.u32 %v300, 7
  %v302 = vsub.s32 0, %v301
  %v303 = vrot.slane %v299, %v302
  %v304 = vld [vmem:[%s1 + $0x46] sm:$0x1]
  %v305 = vlaneseq
  %v306 = vshrl.u32 %v305, 7
  %v307 = vsub.s32 0, %v306
  %v308 = vrot.slane %v304, %v307
  %v309 = vld [vmem:[%s1 + $0x47] sm:$0x1]
  %v310 = vlaneseq
  %v311 = vshrl.u32 %v310, 7
  %v312 = vsub.s32 0, %v311
  %v313 = vrot.slane %v309, %v312
  %v314 = vld [vmem:[%s1 + $0x48] sm:$0x1]
  %v315 = vlaneseq
  %v316 = vshrl.u32 %v315, 7
  %v317 = vsub.s32 0, %v316
  %v318 = vrot.slane %v314, %v317
  %v319 = vld [vmem:[%s1 + $0x49] sm:$0x1]
  %v320 = vlaneseq
  %v321 = vshrl.u32 %v320, 7
  %v322 = vsub.s32 0, %v321
  %v323 = vrot.slane %v319, %v322
  %v324 = vld [vmem:[%s1 + $0x4a] sm:$0x1]
  %v325 = vlaneseq
  %v326 = vshrl.u32 %v325, 7
  %v327 = vsub.s32 0, %v326
  %v328 = vrot.slane %v324, %v327
  %v329 = vld [vmem:[%s1 + $0x4b] sm:$0x1]
  %v330 = vlaneseq
  %v331 = vshrl.u32 %v330, 7
  %v332 = vsub.s32 0, %v331
  %v333 = vrot.slane %v329, %v332
  %v334 = vld [vmem:[%s1 + $0x4c] sm:$0x1]
  %v335 = vlaneseq
  %v336 = vshrl.u32 %v335, 7
  %v337 = vsub.s32 0, %v336
  %v338 = vrot.slane %v334, %v337
  %v339 = vld [vmem:[%s1 + $0x4d] sm:$0x1]
  %v340 = vlaneseq
  %v341 = vshrl.u32 %v340, 7
  %v342 = vsub.s32 0, %v341
  %v343 = vrot.slane %v339, %v342
  %v344 = vld [vmem:[%s1 + $0x4e] sm:$0x1]
  %v345 = vlaneseq
  %v346 = vshrl.u32 %v345, 7
  %v347 = vsub.s32 0, %v346
  %v348 = vrot.slane %v344, %v347
  %v349 = vld [vmem:[%s1 + $0x4f] sm:$0x1]
  %v350 = vlaneseq
  %v351 = vshrl.u32 %v350, 7
  %v352 = vsub.s32 0, %v351
  %v353 = vrot.slane %v349, %v352
  %v354 = vlaneseq
  %v355 = vshrl.u32 %v354, 7
  %v356 = vsub.s32 0, %v355
  %v357 = vrot.slane %v31, %v356
  %vm358 = vcmask 130048
  %v360 = vsel %vm358, %v11, 0
  %v363 = vsel %vm358, %v12, 0
  %v366 = vsel %vm358, %v13, 0
  %v369 = vsel %vm358, %v14, 0
  %v372 = vsel %vm358, %v15, 0
  %v375 = vsel %vm358, %v16, 0
  %v378 = vsel %vm358, %v17, 0
  %v381 = vsel %vm358, %v18, 0
  %383 = vmatprep.subr.mxu0 0.0
  %384 = vmatpush1.msra.mxu0 0.0
  %385 = vmatprep.subr.mxu0 0.0
  %386 = vmatpush1.msra.mxu0 0.0
  %387 = vmatprep.subr.mxu0 0.0
  %388 = vmatpush1.msra.mxu0 0.0
  %389 = vmatprep.subr.mxu0 0.0
  %390 = vmatpush1.msra.mxu0 0.0
  %391 = vmatprep.subr.mxu0 0.0
  %392 = vmatpush1.msra.mxu0 0.0
  %393 = vmatprep.subr.mxu0 0.0
  %394 = vmatpush1.msra.mxu0 0.0
  %395 = vmatprep.subr.mxu0 0.0
  %396 = vmatpush1.msra.mxu0 0.0
  %397 = vmatprep.subr.mxu0 0.0
  %398 = vmatpush1.msra.mxu0 0.0
  %399 = vmatprep.subr.mxu0 0.0
  %400 = vmatpush1.msra.mxu0 0.0
  %401 = vmatprep.subr.mxu0 0.0
  %402 = vmatpush1.msra.mxu0 0.0
  %403 = vmatprep.subr.mxu0 0.0
  %404 = vmatpush1.msra.mxu0 0.0
  %405 = vmatprep.subr.mxu0 0.0
  %406 = vmatpush1.msra.mxu0 0.0
  %407 = vmatprep.subr.mxu0 0.0
  %408 = vmatpush1.msra.mxu0 0.0
  %409 = vmatprep.subr.mxu0 0.0
  %410 = vmatpush1.msra.mxu0 0.0
  %411 = vmatprep.subr.mxu0 0.0
  %412 = vmatpush1.msra.mxu0 %v22
  %413 = vmatprep.subr.mxu0 0.0
  %414 = vmatpush1.msra.mxu0 %v21
  %415 = vmatprep.subr.mxu0 0.0
  %416 = vmatpush2.msra.mxu0 0.0
  %417 = vmatprep.subr.mxu0 0.0
  %418 = vmatpush2.msra.mxu0 0.0
  %419 = vmatprep.subr.mxu0 0.0
  %420 = vmatpush2.msra.mxu0 0.0
  %421 = vmatprep.subr.mxu0 0.0
  %422 = vmatpush2.msra.mxu0 0.0
  %423 = vmatprep.subr.mxu0 0.0
  %424 = vmatpush2.msra.mxu0 0.0
  %425 = vmatprep.subr.mxu0 0.0
  %426 = vmatpush2.msra.mxu0 0.0
  %427 = vmatprep.subr.mxu0 0.0
  %428 = vmatpush2.msra.mxu0 0.0
  %429 = vmatprep.subr.mxu0 0.0
  %430 = vmatpush2.msra.mxu0 0.0
  %431 = vmatprep.subr.mxu0 0.0
  %432 = vmatpush2.msra.mxu0 0.0
  %433 = vmatprep.subr.mxu0 0.0
  %434 = vmatpush2.msra.mxu0 0.0
  %435 = vmatprep.subr.mxu0 0.0
  %436 = vmatpush2.msra.mxu0 0.0
  %437 = vmatprep.subr.mxu0 0.0
  %438 = vmatpush2.msra.mxu0 0.0
  %439 = vmatprep.subr.mxu0 0.0
  %440 = vmatpush2.msra.mxu0 0.0
  %441 = vmatprep.subr.mxu0 0.0
  %442 = vmatpush2.msra.mxu0 0.0
  %443 = vmatprep.subr.mxu0 0.0
  %444 = vmatpush2.msra.mxu0 0.0
  %445 = vmatprep.subr.mxu0 0.0
  %446 = vmatpush2.msra.mxu0 0.0
  %447 = vmatprep.mubr.f32.mxu0 0.0
  %448 = vmatmul.mubr.f32.gmra.mxu0 %v360
  %v449 = vpop.f32.mrf.mxu0
  %v450 = vadd.f32 %v357, %v449
  %v451 = vpop.f32.mrf.mxu0
  %452 = vmatprep.mubr.f32.mxu0 0.0
  %453 = vmatmul.mubr.f32.gmra.mxu0 %v363
  %v454 = vpop.f32.mrf.mxu0
  %v455 = vadd.f32 %v357, %v454
  %v456 = vpop.f32.mrf.mxu0
  %457 = vmatprep.mubr.f32.mxu0 0.0
  %458 = vmatmul.mubr.f32.gmra.mxu0 %v366
  %v459 = vpop.f32.mrf.mxu0
  %v460 = vadd.f32 %v357, %v459
  %v461 = vpop.f32.mrf.mxu0
  %462 = vmatprep.mubr.f32.mxu0 0.0
  %463 = vmatmul.mubr.f32.gmra.mxu0 %v369
  %v464 = vpop.f32.mrf.mxu0
  %v465 = vadd.f32 %v357, %v464
  %v466 = vpop.f32.mrf.mxu0
  %467 = vmatprep.mubr.f32.mxu0 0.0
  %468 = vmatmul.mubr.f32.gmra.mxu0 %v372
  %v469 = vpop.f32.mrf.mxu0
  %v470 = vadd.f32 %v357, %v469
  %v471 = vpop.f32.mrf.mxu0
  %472 = vmatprep.mubr.f32.mxu0 0.0
  %473 = vmatmul.mubr.f32.gmra.mxu0 %v375
  %v474 = vpop.f32.mrf.mxu0
  %v475 = vadd.f32 %v357, %v474
  %v476 = vpop.f32.mrf.mxu0
  %477 = vmatprep.mubr.f32.mxu0 0.0
  %478 = vmatmul.mubr.f32.gmra.mxu0 %v378
  %v479 = vpop.f32.mrf.mxu0
  %v480 = vadd.f32 %v357, %v479
  %v481 = vpop.f32.mrf.mxu0
  %482 = vmatprep.mubr.f32.mxu0 0.0
  %483 = vmatmul.mubr.f32.gmra.mxu0 %v381
  %v484 = vpop.f32.mrf.mxu0
  %v485 = vadd.f32 %v357, %v484
  %v486 = vpop.f32.mrf.mxu0
  %487 = vdwg.mxu0
  %v488 = vmul.f32 %v38, 0.0
  %v489 = vmul.f32 %v118, 0.0
  %v490 = vmul.f32 %v198, 0.0
  %v491 = vmul.f32 %v278, 0.0
  %v492 = vmul.f32 %v43, 0.0
  %v493 = vmul.f32 %v123, 0.0
  %v494 = vmul.f32 %v203, 0.0
  %v495 = vmul.f32 %v283, 0.0
  %v496 = vmul.f32 %v48, 0.0
  %v497 = vmul.f32 %v128, 0.0
  %v498 = vmul.f32 %v208, 0.0
  %v499 = vmul.f32 %v288, 0.0
  %v500 = vmul.f32 %v53, 0.0
  %v501 = vmul.f32 %v133, 0.0
  %v502 = vmul.f32 %v213, 0.0
  %v503 = vmul.f32 %v293, 0.0
  %v504 = vmul.f32 %v58, 0.0
  %v505 = vmul.f32 %v138, 0.0
  %v506 = vmul.f32 %v218, 0.0
  %v507 = vmul.f32 %v298, 0.0
  %v508 = vmul.f32 %v63, 0.0
  %v509 = vmul.f32 %v143, 0.0
  %v510 = vmul.f32 %v223, 0.0
  %v511 = vmul.f32 %v303, 0.0
  %v512 = vmul.f32 %v68, 0.0
  %v513 = vmul.f32 %v148, 0.0
  %v514 = vmul.f32 %v228, 0.0
  %v515 = vmul.f32 %v308, 0.0
  %v516 = vmul.f32 %v73, 0.0
  %v517 = vmul.f32 %v153, 0.0
  %v518 = vmul.f32 %v233, 0.0
  %v519 = vmul.f32 %v313, 0.0
  %v520 = vmul.f32 %v78, 0.0
  %v521 = vmul.f32 %v158, 0.0
  %v522 = vmul.f32 %v238, 0.0
  %v523 = vmul.f32 %v318, 0.0
  %v524 = vmul.f32 %v83, 0.0
  %v525 = vmul.f32 %v163, 0.0
  %v526 = vmul.f32 %v243, 0.0
  %v527 = vmul.f32 %v323, 0.0
  %v528 = vmul.f32 %v88, 0.0
  %v529 = vmul.f32 %v168, 0.0
  %v530 = vmul.f32 %v248, 0.0
  %v531 = vmul.f32 %v328, 0.0
  %v532 = vmul.f32 %v93, 0.0
  %v533 = vmul.f32 %v173, 0.0
  %v534 = vmul.f32 %v253, 0.0
  %v535 = vmul.f32 %v333, 0.0
  %v536 = vmul.f32 %v98, 0.0
  %v537 = vmul.f32 %v178, 0.0
  %v538 = vmul.f32 %v258, 0.0
  %v539 = vmul.f32 %v338, 0.0
  %v540 = vmul.f32 %v103, 0.0
  %v541 = vmul.f32 %v183, 0.0
  %v542 = vmul.f32 %v263, 0.0
  %v543 = vmul.f32 %v343, 0.0
  %v544 = vmul.f32 %v108, 0.0
  %v545 = vmul.f32 %v188, 0.0
  %v546 = vmul.f32 %v268, 0.0
  %v547 = vmul.f32 %v348, 0.0
  %v548 = vmul.f32 %v113, 0.0
  %v549 = vmul.f32 %v193, 0.0
  %v550 = vmul.f32 %v273, 0.0
  %v551 = vmul.f32 %v353, 0.0
  %v552 = vadd.f32 %v450, %v488
  %v553 = vadd.f32 %v492, %v496
  %v554 = vadd.f32 %v500, %v504
  %v555 = vadd.f32 %v508, %v512
  %v556 = vadd.f32 %v516, %v520
  %v557 = vadd.f32 %v524, %v528
  %v558 = vadd.f32 %v532, %v536
  %v559 = vadd.f32 %v540, %v544
  %v560 = vadd.f32 %v552, %v553
  %v561 = vadd.f32 %v554, %v555
  %v562 = vadd.f32 %v556, %v557
  %v563 = vadd.f32 %v558, %v559
  %v564 = vadd.f32 %v560, %v561
  %v565 = vadd.f32 %v562, %v563
  %v566 = vadd.f32 %v564, %v565
  %v567 = vadd.f32 %v566, %v548
  %569 = vrot.lane.b32.xlu0 %v489, 16
  %v570 = vpop.permute.xlu0 %569
  %v572 = vadd.f32 %v450, %v570
  %v573 = vadd.f32 %v493, %v497
  %v574 = vadd.f32 %v501, %v505
  %v575 = vadd.f32 %v509, %v513
  %v576 = vadd.f32 %v517, %v521
  %v577 = vadd.f32 %v525, %v529
  %v578 = vadd.f32 %v533, %v537
  %v579 = vadd.f32 %v541, %v545
  %581 = vrot.lane.b32.xlu0 %v573, 16
  %v582 = vpop.permute.xlu0 %581
  %v584 = vadd.f32 %v572, %v582
  %v585 = vadd.f32 %v574, %v575
  %v586 = vadd.f32 %v576, %v577
  %v587 = vadd.f32 %v578, %v579
  %589 = vrot.lane.b32.xlu0 %v585, 16
  %v590 = vpop.permute.xlu0 %589
  %v592 = vadd.f32 %v584, %v590
  %v593 = vadd.f32 %v586, %v587
  %595 = vrot.lane.b32.xlu0 %v593, 16
  %v596 = vpop.permute.xlu0 %595
  %v598 = vadd.f32 %v592, %v596
  %600 = vrot.lane.b32.xlu0 %v549, 16
  %v601 = vpop.permute.xlu0 %600
  %v603 = vadd.f32 %v598, %v601
  %605 = vrot.lane.b32.xlu0 %v490, 32
  %v606 = vpop.permute.xlu0 %605
  %v608 = vadd.f32 %v450, %v606
  %v609 = vadd.f32 %v494, %v498
  %v610 = vadd.f32 %v502, %v506
  %v611 = vadd.f32 %v510, %v514
  %v612 = vadd.f32 %v518, %v522
  %v613 = vadd.f32 %v526, %v530
  %v614 = vadd.f32 %v534, %v538
  %v615 = vadd.f32 %v542, %v546
  %617 = vrot.lane.b32.xlu0 %v609, 32
  %v618 = vpop.permute.xlu0 %617
  %v620 = vadd.f32 %v608, %v618
  %v621 = vadd.f32 %v610, %v611
  %v622 = vadd.f32 %v612, %v613
  %v623 = vadd.f32 %v614, %v615
  %625 = vrot.lane.b32.xlu0 %v621, 32
  %v626 = vpop.permute.xlu0 %625
  %v628 = vadd.f32 %v620, %v626
  %v629 = vadd.f32 %v622, %v623
  %631 = vrot.lane.b32.xlu0 %v629, 32
  %v632 = vpop.permute.xlu0 %631
  %v634 = vadd.f32 %v628, %v632
  %636 = vrot.lane.b32.xlu0 %v550, 32
  %v637 = vpop.permute.xlu0 %636
  %v639 = vadd.f32 %v634, %v637
  %641 = vrot.lane.b32.xlu0 %v491, 48
  %v642 = vpop.permute.xlu0 %641
  %v644 = vadd.f32 %v450, %v642
  %v645 = vadd.f32 %v495, %v499
  %v646 = vadd.f32 %v503, %v507
  %v647 = vadd.f32 %v511, %v515
  %v648 = vadd.f32 %v519, %v523
  %v649 = vadd.f32 %v527, %v531
  %v650 = vadd.f32 %v535, %v539
  %v651 = vadd.f32 %v543, %v547
  %653 = vrot.lane.b32.xlu0 %v645, 48
  %v654 = vpop.permute.xlu0 %653
  %v656 = vadd.f32 %v644, %v654
  %v657 = vadd.f32 %v646, %v647
  %v658 = vadd.f32 %v648, %v649
  %v659 = vadd.f32 %v650, %v651
  %661 = vrot.lane.b32.xlu0 %v657, 48
  %v662 = vpop.permute.xlu0 %661
  %v664 = vadd.f32 %v656, %v662
  %v665 = vadd.f32 %v658, %v659
  %667 = vrot.lane.b32.xlu0 %v665, 48
  %v668 = vpop.permute.xlu0 %667
  %v670 = vadd.f32 %v664, %v668
  %672 = vrot.lane.b32.xlu0 %v551, 48
  %v673 = vpop.permute.xlu0 %672
  %v675 = vadd.f32 %v670, %v673
  %v676 = vmul.f32 %v567, 0.5
  %v677 = vtanh.pop %v676
  %v678 = vmul.f32 %v677, 0.5
  %v679 = vadd.f32 %v678, 0.5
  %v680 = vmul.f32 %v603, 0.5
  %v681 = vtanh.pop %v680
  %v682 = vmul.f32 %v681, 0.5
  %v683 = vadd.f32 %v682, 0.5
  %v684 = vmul.f32 %v675, 0.5
  %v685 = vtanh.pop %v684
  %v686 = vmul.f32 %v685, 0.5
  %v687 = vadd.f32 %v686, 0.5
  %v688 = vtanh.pop %v639
  %v689 = vmul.f32 %v683, 0.0
  %691 = vrot.lane.b32.xlu0 %v688, 96
  %v692 = vpop.permute.xlu0 %691
  %v694 = vmul.f32 %v679, %v692
  %696 = vrot.lane.b32.xlu0 %v694, 16
  %v697 = vpop.permute.xlu0 %696
  %v699 = vadd.f32 %v689, %v697
  %v700 = vtanh.pop %v699
  %702 = vrot.lane.b32.xlu0 %v700, 32
  %v703 = vpop.permute.xlu0 %702
  %v705 = vmul.f32 %v687, %v703
  %707 = vset.pattern.permute.xlu0 48
  %708 = vperm.xlu0 %707, %v705
  %v709 = vpop.permute.xlu0 %708
  %v711 = vmul.f32 %v709, %v38
  %v712 = vmul.f32 %v709, %v118
  %v713 = vmul.f32 %v709, %v198
  %v714 = vmul.f32 %v709, %v278
  %715 = vset.pattern.permute.xlu0 49
  %716 = vperm.xlu0 %715, %v705
  %v717 = vpop.permute.xlu0 %716
  %v719 = vmul.f32 %v717, %v43
  %v720 = vmul.f32 %v717, %v123
  %v721 = vmul.f32 %v717, %v203
  %v722 = vmul.f32 %v717, %v283
  %723 = vset.pattern.permute.xlu0 50
  %724 = vperm.xlu0 %723, %v705
  %v725 = vpop.permute.xlu0 %724
  %v727 = vmul.f32 %v725, %v48
  %v728 = vmul.f32 %v725, %v128
  %v729 = vmul.f32 %v725, %v208
  %v730 = vmul.f32 %v725, %v288
  %731 = vset.pattern.permute.xlu0 51
  %732 = vperm.xlu0 %731, %v705
  %v733 = vpop.permute.xlu0 %732
  %v735 = vmul.f32 %v733, %v53
  %v736 = vmul.f32 %v733, %v133
  %v737 = vmul.f32 %v733, %v213
  %v738 = vmul.f32 %v733, %v293
  %739 = vset.pattern.permute.xlu0 52
  %740 = vperm.xlu0 %739, %v705
  %v741 = vpop.permute.xlu0 %740
  %v743 = vmul.f32 %v741, %v58
  %v744 = vmul.f32 %v741, %v138
  %v745 = vmul.f32 %v741, %v218
  %v746 = vmul.f32 %v741, %v298
  %747 = vset.pattern.permute.xlu0 53
  %748 = vperm.xlu0 %747, %v705
  %v749 = vpop.permute.xlu0 %748
  %v751 = vmul.f32 %v749, %v63
  %v752 = vmul.f32 %v749, %v143
  %v753 = vmul.f32 %v749, %v223
  %v754 = vmul.f32 %v749, %v303
  %755 = vset.pattern.permute.xlu0 54
  %756 = vperm.xlu0 %755, %v705
  %v757 = vpop.permute.xlu0 %756
  %v759 = vmul.f32 %v757, %v68
  %v760 = vmul.f32 %v757, %v148
  %v761 = vmul.f32 %v757, %v228
  %v762 = vmul.f32 %v757, %v308
  %763 = vset.pattern.permute.xlu0 55
  %764 = vperm.xlu0 %763, %v705
  %v765 = vpop.permute.xlu0 %764
  %v767 = vmul.f32 %v765, %v73
  %v768 = vmul.f32 %v765, %v153
  %v769 = vmul.f32 %v765, %v233
  %v770 = vmul.f32 %v765, %v313
  %771 = vset.pattern.permute.xlu0 56
  %772 = vperm.xlu0 %771, %v705
  %v773 = vpop.permute.xlu0 %772
  %v775 = vmul.f32 %v773, %v78
  %v776 = vmul.f32 %v773, %v158
  %v777 = vmul.f32 %v773, %v238
  %v778 = vmul.f32 %v773, %v318
  %779 = vset.pattern.permute.xlu0 57
  %780 = vperm.xlu0 %779, %v705
  %v781 = vpop.permute.xlu0 %780
  %v783 = vmul.f32 %v781, %v83
  %v784 = vmul.f32 %v781, %v163
  %v785 = vmul.f32 %v781, %v243
  %v786 = vmul.f32 %v781, %v323
  %787 = vset.pattern.permute.xlu0 58
  %788 = vperm.xlu0 %787, %v705
  %v789 = vpop.permute.xlu0 %788
  %v791 = vmul.f32 %v789, %v88
  %v792 = vmul.f32 %v789, %v168
  %v793 = vmul.f32 %v789, %v248
  %v794 = vmul.f32 %v789, %v328
  %795 = vset.pattern.permute.xlu0 59
  %796 = vperm.xlu0 %795, %v705
  %v797 = vpop.permute.xlu0 %796
  %v799 = vmul.f32 %v797, %v93
  %v800 = vmul.f32 %v797, %v173
  %v801 = vmul.f32 %v797, %v253
  %v802 = vmul.f32 %v797, %v333
  %803 = vset.pattern.permute.xlu0 60
  %804 = vperm.xlu0 %803, %v705
  %v805 = vpop.permute.xlu0 %804
  %v807 = vmul.f32 %v805, %v98
  %v808 = vmul.f32 %v805, %v178
  %v809 = vmul.f32 %v805, %v258
  %v810 = vmul.f32 %v805, %v338
  %811 = vset.pattern.permute.xlu0 61
  %812 = vperm.xlu0 %811, %v705
  %v813 = vpop.permute.xlu0 %812
  %v815 = vmul.f32 %v813, %v103
  %v816 = vmul.f32 %v813, %v183
  %v817 = vmul.f32 %v813, %v263
  %v818 = vmul.f32 %v813, %v343
  %819 = vset.pattern.permute.xlu0 62
  %820 = vperm.xlu0 %819, %v705
  %v821 = vpop.permute.xlu0 %820
  %v823 = vmul.f32 %v821, %v108
  %v824 = vmul.f32 %v821, %v188
  %v825 = vmul.f32 %v821, %v268
  %v826 = vmul.f32 %v821, %v348
  %827 = vset.pattern.permute.xlu0 63
  %828 = vperm.xlu0 %827, %v705
  %v829 = vpop.permute.xlu0 %828
  %v831 = vmul.f32 %v829, %v113
  %v832 = vmul.f32 %v829, %v193
  %v833 = vmul.f32 %v829, %v273
  %v834 = vmul.f32 %v829, %v353
  %v835 = vadd.f32 %v455, %v711
  %v836 = vadd.f32 %v719, %v727
  %v837 = vadd.f32 %v735, %v743
  %v838 = vadd.f32 %v751, %v759
  %v839 = vadd.f32 %v767, %v775
  %v840 = vadd.f32 %v783, %v791
  %v841 = vadd.f32 %v799, %v807
  %v842 = vadd.f32 %v815, %v823
  %v843 = vadd.f32 %v835, %v836
  %v844 = vadd.f32 %v837, %v838
  %v845 = vadd.f32 %v839, %v840
  %v846 = vadd.f32 %v841, %v842
  %v847 = vadd.f32 %v843, %v844
  %v848 = vadd.f32 %v845, %v846
  %v849 = vadd.f32 %v847, %v848
  %v850 = vadd.f32 %v849, %v831
  %852 = vrot.lane.b32.xlu0 %v712, 16
  %v853 = vpop.permute.xlu0 %852
  %v855 = vadd.f32 %v455, %v853
  %v856 = vadd.f32 %v720, %v728
  %v857 = vadd.f32 %v736, %v744
  %v858 = vadd.f32 %v752, %v760
  %v859 = vadd.f32 %v768, %v776
  %v860 = vadd.f32 %v784, %v792
  %v861 = vadd.f32 %v800, %v808
  %v862 = vadd.f32 %v816, %v824
  %864 = vrot.lane.b32.xlu0 %v856, 16
  %v865 = vpop.permute.xlu0 %864
  %v867 = vadd.f32 %v855, %v865
  %v868 = vadd.f32 %v857, %v858
  %v869 = vadd.f32 %v859, %v860
  %v870 = vadd.f32 %v861, %v862
  %872 = vrot.lane.b32.xlu0 %v868, 16
  %v873 = vpop.permute.xlu0 %872
  %v875 = vadd.f32 %v867, %v873
  %v876 = vadd.f32 %v869, %v870
  %878 = vrot.lane.b32.xlu0 %v876, 16
  %v879 = vpop.permute.xlu0 %878
  %v881 = vadd.f32 %v875, %v879
  %883 = vrot.lane.b32.xlu0 %v832, 16
  %v884 = vpop.permute.xlu0 %883
  %v886 = vadd.f32 %v881, %v884
  %888 = vrot.lane.b32.xlu0 %v713, 32
  %v889 = vpop.permute.xlu0 %888
  %v891 = vadd.f32 %v455, %v889
  %v892 = vadd.f32 %v721, %v729
  %v893 = vadd.f32 %v737, %v745
  %v894 = vadd.f32 %v753, %v761
  %v895 = vadd.f32 %v769, %v777
  %v896 = vadd.f32 %v785, %v793
  %v897 = vadd.f32 %v801, %v809
  %v898 = vadd.f32 %v817, %v825
  %900 = vrot.lane.b32.xlu0 %v892, 32
  %v901 = vpop.permute.xlu0 %900
  %v903 = vadd.f32 %v891, %v901
  %v904 = vadd.f32 %v893, %v894
  %v905 = vadd.f32 %v895, %v896
  %v906 = vadd.f32 %v897, %v898
  %908 = vrot.lane.b32.xlu0 %v904, 32
  %v909 = vpop.permute.xlu0 %908
  %v911 = vadd.f32 %v903, %v909
  %v912 = vadd.f32 %v905, %v906
  %914 = vrot.lane.b32.xlu0 %v912, 32
  %v915 = vpop.permute.xlu0 %914
  %v917 = vadd.f32 %v911, %v915
  %919 = vrot.lane.b32.xlu0 %v833, 32
  %v920 = vpop.permute.xlu0 %919
  %v922 = vadd.f32 %v917, %v920
  %924 = vrot.lane.b32.xlu0 %v714, 48
  %v925 = vpop.permute.xlu0 %924
  %v927 = vadd.f32 %v455, %v925
  %v928 = vadd.f32 %v722, %v730
  %v929 = vadd.f32 %v738, %v746
  %v930 = vadd.f32 %v754, %v762
  %v931 = vadd.f32 %v770, %v778
  %v932 = vadd.f32 %v786, %v794
  %v933 = vadd.f32 %v802, %v810
  %v934 = vadd.f32 %v818, %v826
  %936 = vrot.lane.b32.xlu0 %v928, 48
  %v937 = vpop.permute.xlu0 %936
  %v939 = vadd.f32 %v927, %v937
  %v940 = vadd.f32 %v929, %v930
  %v941 = vadd.f32 %v931, %v932
  %v942 = vadd.f32 %v933, %v934
  %944 = vrot.lane.b32.xlu0 %v940, 48
  %v945 = vpop.permute.xlu0 %944
  %v947 = vadd.f32 %v939, %v945
  %v948 = vadd.f32 %v941, %v942
  %950 = vrot.lane.b32.xlu0 %v948, 48
  %v951 = vpop.permute.xlu0 %950
  %v953 = vadd.f32 %v947, %v951
  %955 = vrot.lane.b32.xlu0 %v834, 48
  %v956 = vpop.permute.xlu0 %955
  %v958 = vadd.f32 %v953, %v956
  %v959 = vmul.f32 %v850, 0.5
  %v960 = vtanh.pop %v959
  %v961 = vmul.f32 %v960, 0.5
  %v962 = vadd.f32 %v961, 0.5
  %v963 = vmul.f32 %v886, 0.5
  %v964 = vtanh.pop %v963
  %v965 = vmul.f32 %v964, 0.5
  %v966 = vadd.f32 %v965, 0.5
  %v967 = vmul.f32 %v958, 0.5
  %v968 = vtanh.pop %v967
  %v969 = vmul.f32 %v968, 0.5
  %v970 = vadd.f32 %v969, 0.5
  %v971 = vtanh.pop %v922
  %v972 = vmul.f32 %v966, %v699
  %974 = vrot.lane.b32.xlu0 %v971, 96
  %v975 = vpop.permute.xlu0 %974
  %v977 = vmul.f32 %v962, %v975
  %979 = vrot.lane.b32.xlu0 %v977, 16
  %v980 = vpop.permute.xlu0 %979
  %v982 = vadd.f32 %v972, %v980
  %v983 = vtanh.pop %v982
  %985 = vrot.lane.b32.xlu0 %v983, 32
  %v986 = vpop.permute.xlu0 %985
  %v988 = vmul.f32 %v970, %v986
  %990 = vset.pattern.permute.xlu0 48
  %991 = vperm.xlu0 %990, %v988
  %v992 = vpop.permute.xlu0 %991
  %v994 = vmul.f32 %v992, %v38
  %v995 = vmul.f32 %v992, %v118
  %v996 = vmul.f32 %v992, %v198
  %v997 = vmul.f32 %v992, %v278
  %998 = vset.pattern.permute.xlu0 49
  %999 = vperm.xlu0 %998, %v988
  %v1000 = vpop.permute.xlu0 %999
  %v1002 = vmul.f32 %v1000, %v43
  %v1003 = vmul.f32 %v1000, %v123
  %v1004 = vmul.f32 %v1000, %v203
  %v1005 = vmul.f32 %v1000, %v283
  %1006 = vset.pattern.permute.xlu0 50
  %1007 = vperm.xlu0 %1006, %v988
  %v1008 = vpop.permute.xlu0 %1007
  %v1010 = vmul.f32 %v1008, %v48
  %v1011 = vmul.f32 %v1008, %v128
  %v1012 = vmul.f32 %v1008, %v208
  %v1013 = vmul.f32 %v1008, %v288
  %1014 = vset.pattern.permute.xlu0 51
  %1015 = vperm.xlu0 %1014, %v988
  %v1016 = vpop.permute.xlu0 %1015
  %v1018 = vmul.f32 %v1016, %v53
  %v1019 = vmul.f32 %v1016, %v133
  %v1020 = vmul.f32 %v1016, %v213
  %v1021 = vmul.f32 %v1016, %v293
  %1022 = vset.pattern.permute.xlu0 52
  %1023 = vperm.xlu0 %1022, %v988
  %v1024 = vpop.permute.xlu0 %1023
  %v1026 = vmul.f32 %v1024, %v58
  %v1027 = vmul.f32 %v1024, %v138
  %v1028 = vmul.f32 %v1024, %v218
  %v1029 = vmul.f32 %v1024, %v298
  %1030 = vset.pattern.permute.xlu0 53
  %1031 = vperm.xlu0 %1030, %v988
  %v1032 = vpop.permute.xlu0 %1031
  %v1034 = vmul.f32 %v1032, %v63
  %v1035 = vmul.f32 %v1032, %v143
  %v1036 = vmul.f32 %v1032, %v223
  %v1037 = vmul.f32 %v1032, %v303
  %1038 = vset.pattern.permute.xlu0 54
  %1039 = vperm.xlu0 %1038, %v988
  %v1040 = vpop.permute.xlu0 %1039
  %v1042 = vmul.f32 %v1040, %v68
  %v1043 = vmul.f32 %v1040, %v148
  %v1044 = vmul.f32 %v1040, %v228
  %v1045 = vmul.f32 %v1040, %v308
  %1046 = vset.pattern.permute.xlu0 55
  %1047 = vperm.xlu0 %1046, %v988
  %v1048 = vpop.permute.xlu0 %1047
  %v1050 = vmul.f32 %v1048, %v73
  %v1051 = vmul.f32 %v1048, %v153
  %v1052 = vmul.f32 %v1048, %v233
  %v1053 = vmul.f32 %v1048, %v313
  %1054 = vset.pattern.permute.xlu0 56
  %1055 = vperm.xlu0 %1054, %v988
  %v1056 = vpop.permute.xlu0 %1055
  %v1058 = vmul.f32 %v1056, %v78
  %v1059 = vmul.f32 %v1056, %v158
  %v1060 = vmul.f32 %v1056, %v238
  %v1061 = vmul.f32 %v1056, %v318
  %1062 = vset.pattern.permute.xlu0 57
  %1063 = vperm.xlu0 %1062, %v988
  %v1064 = vpop.permute.xlu0 %1063
  %v1066 = vmul.f32 %v1064, %v83
  %v1067 = vmul.f32 %v1064, %v163
  %v1068 = vmul.f32 %v1064, %v243
  %v1069 = vmul.f32 %v1064, %v323
  %1070 = vset.pattern.permute.xlu0 58
  %1071 = vperm.xlu0 %1070, %v988
  %v1072 = vpop.permute.xlu0 %1071
  %v1074 = vmul.f32 %v1072, %v88
  %v1075 = vmul.f32 %v1072, %v168
  %v1076 = vmul.f32 %v1072, %v248
  %v1077 = vmul.f32 %v1072, %v328
  %1078 = vset.pattern.permute.xlu0 59
  %1079 = vperm.xlu0 %1078, %v988
  %v1080 = vpop.permute.xlu0 %1079
  %v1082 = vmul.f32 %v1080, %v93
  %v1083 = vmul.f32 %v1080, %v173
  %v1084 = vmul.f32 %v1080, %v253
  %v1085 = vmul.f32 %v1080, %v333
  %1086 = vset.pattern.permute.xlu0 60
  %1087 = vperm.xlu0 %1086, %v988
  %v1088 = vpop.permute.xlu0 %1087
  %v1090 = vmul.f32 %v1088, %v98
  %v1091 = vmul.f32 %v1088, %v178
  %v1092 = vmul.f32 %v1088, %v258
  %v1093 = vmul.f32 %v1088, %v338
  %1094 = vset.pattern.permute.xlu0 61
  %1095 = vperm.xlu0 %1094, %v988
  %v1096 = vpop.permute.xlu0 %1095
  %v1098 = vmul.f32 %v1096, %v103
  %v1099 = vmul.f32 %v1096, %v183
  %v1100 = vmul.f32 %v1096, %v263
  %v1101 = vmul.f32 %v1096, %v343
  %1102 = vset.pattern.permute.xlu0 62
  %1103 = vperm.xlu0 %1102, %v988
  %v1104 = vpop.permute.xlu0 %1103
  %v1106 = vmul.f32 %v1104, %v108
  %v1107 = vmul.f32 %v1104, %v188
  %v1108 = vmul.f32 %v1104, %v268
  %v1109 = vmul.f32 %v1104, %v348
  %1110 = vset.pattern.permute.xlu0 63
  %1111 = vperm.xlu0 %1110, %v988
  %v1112 = vpop.permute.xlu0 %1111
  %v1114 = vmul.f32 %v1112, %v113
  %v1115 = vmul.f32 %v1112, %v193
  %v1116 = vmul.f32 %v1112, %v273
  %v1117 = vmul.f32 %v1112, %v353
  %v1118 = vadd.f32 %v460, %v994
  %v1119 = vadd.f32 %v1002, %v1010
  %v1120 = vadd.f32 %v1018, %v1026
  %v1121 = vadd.f32 %v1034, %v1042
  %v1122 = vadd.f32 %v1050, %v1058
  %v1123 = vadd.f32 %v1066, %v1074
  %v1124 = vadd.f32 %v1082, %v1090
  %v1125 = vadd.f32 %v1098, %v1106
  %v1126 = vadd.f32 %v1118, %v1119
  %v1127 = vadd.f32 %v1120, %v1121
  %v1128 = vadd.f32 %v1122, %v1123
  %v1129 = vadd.f32 %v1124, %v1125
  %v1130 = vadd.f32 %v1126, %v1127
  %v1131 = vadd.f32 %v1128, %v1129
  %v1132 = vadd.f32 %v1130, %v1131
  %v1133 = vadd.f32 %v1132, %v1114
  %1135 = vrot.lane.b32.xlu0 %v995, 16
  %v1136 = vpop.permute.xlu0 %1135
  %v1138 = vadd.f32 %v460, %v1136
  %v1139 = vadd.f32 %v1003, %v1011
  %v1140 = vadd.f32 %v1019, %v1027
  %v1141 = vadd.f32 %v1035, %v1043
  %v1142 = vadd.f32 %v1051, %v1059
  %v1143 = vadd.f32 %v1067, %v1075
  %v1144 = vadd.f32 %v1083, %v1091
  %v1145 = vadd.f32 %v1099, %v1107
  %1147 = vrot.lane.b32.xlu0 %v1139, 16
  %v1148 = vpop.permute.xlu0 %1147
  %v1150 = vadd.f32 %v1138, %v1148
  %v1151 = vadd.f32 %v1140, %v1141
  %v1152 = vadd.f32 %v1142, %v1143
  %v1153 = vadd.f32 %v1144, %v1145
  %1155 = vrot.lane.b32.xlu0 %v1151, 16
  %v1156 = vpop.permute.xlu0 %1155
  %v1158 = vadd.f32 %v1150, %v1156
  %v1159 = vadd.f32 %v1152, %v1153
  %1161 = vrot.lane.b32.xlu0 %v1159, 16
  %v1162 = vpop.permute.xlu0 %1161
  %v1164 = vadd.f32 %v1158, %v1162
  %1166 = vrot.lane.b32.xlu0 %v1115, 16
  %v1167 = vpop.permute.xlu0 %1166
  %v1169 = vadd.f32 %v1164, %v1167
  %1171 = vrot.lane.b32.xlu0 %v996, 32
  %v1172 = vpop.permute.xlu0 %1171
  %v1174 = vadd.f32 %v460, %v1172
  %v1175 = vadd.f32 %v1004, %v1012
  %v1176 = vadd.f32 %v1020, %v1028
  %v1177 = vadd.f32 %v1036, %v1044
  %v1178 = vadd.f32 %v1052, %v1060
  %v1179 = vadd.f32 %v1068, %v1076
  %v1180 = vadd.f32 %v1084, %v1092
  %v1181 = vadd.f32 %v1100, %v1108
  %1183 = vrot.lane.b32.xlu0 %v1175, 32
  %v1184 = vpop.permute.xlu0 %1183
  %v1186 = vadd.f32 %v1174, %v1184
  %v1187 = vadd.f32 %v1176, %v1177
  %v1188 = vadd.f32 %v1178, %v1179
  %v1189 = vadd.f32 %v1180, %v1181
  %1191 = vrot.lane.b32.xlu0 %v1187, 32
  %v1192 = vpop.permute.xlu0 %1191
  %v1194 = vadd.f32 %v1186, %v1192
  %v1195 = vadd.f32 %v1188, %v1189
  %1197 = vrot.lane.b32.xlu0 %v1195, 32
  %v1198 = vpop.permute.xlu0 %1197
  %v1200 = vadd.f32 %v1194, %v1198
  %1202 = vrot.lane.b32.xlu0 %v1116, 32
  %v1203 = vpop.permute.xlu0 %1202
  %v1205 = vadd.f32 %v1200, %v1203
  %1207 = vrot.lane.b32.xlu0 %v997, 48
  %v1208 = vpop.permute.xlu0 %1207
  %v1210 = vadd.f32 %v460, %v1208
  %v1211 = vadd.f32 %v1005, %v1013
  %v1212 = vadd.f32 %v1021, %v1029
  %v1213 = vadd.f32 %v1037, %v1045
  %v1214 = vadd.f32 %v1053, %v1061
  %v1215 = vadd.f32 %v1069, %v1077
  %v1216 = vadd.f32 %v1085, %v1093
  %v1217 = vadd.f32 %v1101, %v1109
  %1219 = vrot.lane.b32.xlu0 %v1211, 48
  %v1220 = vpop.permute.xlu0 %1219
  %v1222 = vadd.f32 %v1210, %v1220
  %v1223 = vadd.f32 %v1212, %v1213
  %v1224 = vadd.f32 %v1214, %v1215
  %v1225 = vadd.f32 %v1216, %v1217
  %1227 = vrot.lane.b32.xlu0 %v1223, 48
  %v1228 = vpop.permute.xlu0 %1227
  %v1230 = vadd.f32 %v1222, %v1228
  %v1231 = vadd.f32 %v1224, %v1225
  %1233 = vrot.lane.b32.xlu0 %v1231, 48
  %v1234 = vpop.permute.xlu0 %1233
  %v1236 = vadd.f32 %v1230, %v1234
  %1238 = vrot.lane.b32.xlu0 %v1117, 48
  %v1239 = vpop.permute.xlu0 %1238
  %v1241 = vadd.f32 %v1236, %v1239
  %v1242 = vmul.f32 %v1133, 0.5
  %v1243 = vtanh.pop %v1242
  %v1244 = vmul.f32 %v1243, 0.5
  %v1245 = vadd.f32 %v1244, 0.5
  %v1246 = vmul.f32 %v1169, 0.5
  %v1247 = vtanh.pop %v1246
  %v1248 = vmul.f32 %v1247, 0.5
  %v1249 = vadd.f32 %v1248, 0.5
  %v1250 = vmul.f32 %v1241, 0.5
  %v1251 = vtanh.pop %v1250
  %v1252 = vmul.f32 %v1251, 0.5
  %v1253 = vadd.f32 %v1252, 0.5
  %v1254 = vtanh.pop %v1205
  %v1255 = vmul.f32 %v1249, %v982
  %1257 = vrot.lane.b32.xlu0 %v1254, 96
  %v1258 = vpop.permute.xlu0 %1257
  %v1260 = vmul.f32 %v1245, %v1258
  %1262 = vrot.lane.b32.xlu0 %v1260, 16
  %v1263 = vpop.permute.xlu0 %1262
  %v1265 = vadd.f32 %v1255, %v1263
  %v1266 = vtanh.pop %v1265
  %1268 = vrot.lane.b32.xlu0 %v1266, 32
  %v1269 = vpop.permute.xlu0 %1268
  %v1271 = vmul.f32 %v1253, %v1269
  %1273 = vset.pattern.permute.xlu0 48
  %1274 = vperm.xlu0 %1273, %v1271
  %v1275 = vpop.permute.xlu0 %1274
  %v1277 = vmul.f32 %v1275, %v38
  %v1278 = vmul.f32 %v1275, %v118
  %v1279 = vmul.f32 %v1275, %v198
  %v1280 = vmul.f32 %v1275, %v278
  %1281 = vset.pattern.permute.xlu0 49
  %1282 = vperm.xlu0 %1281, %v1271
  %v1283 = vpop.permute.xlu0 %1282
  %v1285 = vmul.f32 %v1283, %v43
  %v1286 = vmul.f32 %v1283, %v123
  %v1287 = vmul.f32 %v1283, %v203
  %v1288 = vmul.f32 %v1283, %v283
  %1289 = vset.pattern.permute.xlu0 50
  %1290 = vperm.xlu0 %1289, %v1271
  %v1291 = vpop.permute.xlu0 %1290
  %v1293 = vmul.f32 %v1291, %v48
  %v1294 = vmul.f32 %v1291, %v128
  %v1295 = vmul.f32 %v1291, %v208
  %v1296 = vmul.f32 %v1291, %v288
  %1297 = vset.pattern.permute.xlu0 51
  %1298 = vperm.xlu0 %1297, %v1271
  %v1299 = vpop.permute.xlu0 %1298
  %v1301 = vmul.f32 %v1299, %v53
  %v1302 = vmul.f32 %v1299, %v133
  %v1303 = vmul.f32 %v1299, %v213
  %v1304 = vmul.f32 %v1299, %v293
  %1305 = vset.pattern.permute.xlu0 52
  %1306 = vperm.xlu0 %1305, %v1271
  %v1307 = vpop.permute.xlu0 %1306
  %v1309 = vmul.f32 %v1307, %v58
  %v1310 = vmul.f32 %v1307, %v138
  %v1311 = vmul.f32 %v1307, %v218
  %v1312 = vmul.f32 %v1307, %v298
  %1313 = vset.pattern.permute.xlu0 53
  %1314 = vperm.xlu0 %1313, %v1271
  %v1315 = vpop.permute.xlu0 %1314
  %v1317 = vmul.f32 %v1315, %v63
  %v1318 = vmul.f32 %v1315, %v143
  %v1319 = vmul.f32 %v1315, %v223
  %v1320 = vmul.f32 %v1315, %v303
  %1321 = vset.pattern.permute.xlu0 54
  %1322 = vperm.xlu0 %1321, %v1271
  %v1323 = vpop.permute.xlu0 %1322
  %v1325 = vmul.f32 %v1323, %v68
  %v1326 = vmul.f32 %v1323, %v148
  %v1327 = vmul.f32 %v1323, %v228
  %v1328 = vmul.f32 %v1323, %v308
  %1329 = vset.pattern.permute.xlu0 55
  %1330 = vperm.xlu0 %1329, %v1271
  %v1331 = vpop.permute.xlu0 %1330
  %v1333 = vmul.f32 %v1331, %v73
  %v1334 = vmul.f32 %v1331, %v153
  %v1335 = vmul.f32 %v1331, %v233
  %v1336 = vmul.f32 %v1331, %v313
  %1337 = vset.pattern.permute.xlu0 56
  %1338 = vperm.xlu0 %1337, %v1271
  %v1339 = vpop.permute.xlu0 %1338
  %v1341 = vmul.f32 %v1339, %v78
  %v1342 = vmul.f32 %v1339, %v158
  %v1343 = vmul.f32 %v1339, %v238
  %v1344 = vmul.f32 %v1339, %v318
  %1345 = vset.pattern.permute.xlu0 57
  %1346 = vperm.xlu0 %1345, %v1271
  %v1347 = vpop.permute.xlu0 %1346
  %v1349 = vmul.f32 %v1347, %v83
  %v1350 = vmul.f32 %v1347, %v163
  %v1351 = vmul.f32 %v1347, %v243
  %v1352 = vmul.f32 %v1347, %v323
  %1353 = vset.pattern.permute.xlu0 58
  %1354 = vperm.xlu0 %1353, %v1271
  %v1355 = vpop.permute.xlu0 %1354
  %v1357 = vmul.f32 %v1355, %v88
  %v1358 = vmul.f32 %v1355, %v168
  %v1359 = vmul.f32 %v1355, %v248
  %v1360 = vmul.f32 %v1355, %v328
  %1361 = vset.pattern.permute.xlu0 59
  %1362 = vperm.xlu0 %1361, %v1271
  %v1363 = vpop.permute.xlu0 %1362
  %v1365 = vmul.f32 %v1363, %v93
  %v1366 = vmul.f32 %v1363, %v173
  %v1367 = vmul.f32 %v1363, %v253
  %v1368 = vmul.f32 %v1363, %v333
  %1369 = vset.pattern.permute.xlu0 60
  %1370 = vperm.xlu0 %1369, %v1271
  %v1371 = vpop.permute.xlu0 %1370
  %v1373 = vmul.f32 %v1371, %v98
  %v1374 = vmul.f32 %v1371, %v178
  %v1375 = vmul.f32 %v1371, %v258
  %v1376 = vmul.f32 %v1371, %v338
  %1377 = vset.pattern.permute.xlu0 61
  %1378 = vperm.xlu0 %1377, %v1271
  %v1379 = vpop.permute.xlu0 %1378
  %v1381 = vmul.f32 %v1379, %v103
  %v1382 = vmul.f32 %v1379, %v183
  %v1383 = vmul.f32 %v1379, %v263
  %v1384 = vmul.f32 %v1379, %v343
  %1385 = vset.pattern.permute.xlu0 62
  %1386 = vperm.xlu0 %1385, %v1271
  %v1387 = vpop.permute.xlu0 %1386
  %v1389 = vmul.f32 %v1387, %v108
  %v1390 = vmul.f32 %v1387, %v188
  %v1391 = vmul.f32 %v1387, %v268
  %v1392 = vmul.f32 %v1387, %v348
  %1393 = vset.pattern.permute.xlu0 63
  %1394 = vperm.xlu0 %1393, %v1271
  %v1395 = vpop.permute.xlu0 %1394
  %v1397 = vmul.f32 %v1395, %v113
  %v1398 = vmul.f32 %v1395, %v193
  %v1399 = vmul.f32 %v1395, %v273
  %v1400 = vmul.f32 %v1395, %v353
  %v1401 = vadd.f32 %v465, %v1277
  %v1402 = vadd.f32 %v1285, %v1293
  %v1403 = vadd.f32 %v1301, %v1309
  %v1404 = vadd.f32 %v1317, %v1325
  %v1405 = vadd.f32 %v1333, %v1341
  %v1406 = vadd.f32 %v1349, %v1357
  %v1407 = vadd.f32 %v1365, %v1373
  %v1408 = vadd.f32 %v1381, %v1389
  %v1409 = vadd.f32 %v1401, %v1402
  %v1410 = vadd.f32 %v1403, %v1404
  %v1411 = vadd.f32 %v1405, %v1406
  %v1412 = vadd.f32 %v1407, %v1408
  %v1413 = vadd.f32 %v1409, %v1410
  %v1414 = vadd.f32 %v1411, %v1412
  %v1415 = vadd.f32 %v1413, %v1414
  %v1416 = vadd.f32 %v1415, %v1397
  %1418 = vrot.lane.b32.xlu0 %v1278, 16
  %v1419 = vpop.permute.xlu0 %1418
  %v1421 = vadd.f32 %v465, %v1419
  %v1422 = vadd.f32 %v1286, %v1294
  %v1423 = vadd.f32 %v1302, %v1310
  %v1424 = vadd.f32 %v1318, %v1326
  %v1425 = vadd.f32 %v1334, %v1342
  %v1426 = vadd.f32 %v1350, %v1358
  %v1427 = vadd.f32 %v1366, %v1374
  %v1428 = vadd.f32 %v1382, %v1390
  %1430 = vrot.lane.b32.xlu0 %v1422, 16
  %v1431 = vpop.permute.xlu0 %1430
  %v1433 = vadd.f32 %v1421, %v1431
  %v1434 = vadd.f32 %v1423, %v1424
  %v1435 = vadd.f32 %v1425, %v1426
  %v1436 = vadd.f32 %v1427, %v1428
  %1438 = vrot.lane.b32.xlu0 %v1434, 16
  %v1439 = vpop.permute.xlu0 %1438
  %v1441 = vadd.f32 %v1433, %v1439
  %v1442 = vadd.f32 %v1435, %v1436
  %1444 = vrot.lane.b32.xlu0 %v1442, 16
  %v1445 = vpop.permute.xlu0 %1444
  %v1447 = vadd.f32 %v1441, %v1445
  %1449 = vrot.lane.b32.xlu0 %v1398, 16
  %v1450 = vpop.permute.xlu0 %1449
  %v1452 = vadd.f32 %v1447, %v1450
  %1454 = vrot.lane.b32.xlu0 %v1279, 32
  %v1455 = vpop.permute.xlu0 %1454
  %v1457 = vadd.f32 %v465, %v1455
  %v1458 = vadd.f32 %v1287, %v1295
  %v1459 = vadd.f32 %v1303, %v1311
  %v1460 = vadd.f32 %v1319, %v1327
  %v1461 = vadd.f32 %v1335, %v1343
  %v1462 = vadd.f32 %v1351, %v1359
  %v1463 = vadd.f32 %v1367, %v1375
  %v1464 = vadd.f32 %v1383, %v1391
  %1466 = vrot.lane.b32.xlu0 %v1458, 32
  %v1467 = vpop.permute.xlu0 %1466
  %v1469 = vadd.f32 %v1457, %v1467
  %v1470 = vadd.f32 %v1459, %v1460
  %v1471 = vadd.f32 %v1461, %v1462
  %v1472 = vadd.f32 %v1463, %v1464
  %1474 = vrot.lane.b32.xlu0 %v1470, 32
  %v1475 = vpop.permute.xlu0 %1474
  %v1477 = vadd.f32 %v1469, %v1475
  %v1478 = vadd.f32 %v1471, %v1472
  %1480 = vrot.lane.b32.xlu0 %v1478, 32
  %v1481 = vpop.permute.xlu0 %1480
  %v1483 = vadd.f32 %v1477, %v1481
  %1485 = vrot.lane.b32.xlu0 %v1399, 32
  %v1486 = vpop.permute.xlu0 %1485
  %v1488 = vadd.f32 %v1483, %v1486
  %1490 = vrot.lane.b32.xlu0 %v1280, 48
  %v1491 = vpop.permute.xlu0 %1490
  %v1493 = vadd.f32 %v465, %v1491
  %v1494 = vadd.f32 %v1288, %v1296
  %v1495 = vadd.f32 %v1304, %v1312
  %v1496 = vadd.f32 %v1320, %v1328
  %v1497 = vadd.f32 %v1336, %v1344
  %v1498 = vadd.f32 %v1352, %v1360
  %v1499 = vadd.f32 %v1368, %v1376
  %v1500 = vadd.f32 %v1384, %v1392
  %1502 = vrot.lane.b32.xlu0 %v1494, 48
  %v1503 = vpop.permute.xlu0 %1502
  %v1505 = vadd.f32 %v1493, %v1503
  %v1506 = vadd.f32 %v1495, %v1496
  %v1507 = vadd.f32 %v1497, %v1498
  %v1508 = vadd.f32 %v1499, %v1500
  %1510 = vrot.lane.b32.xlu0 %v1506, 48
  %v1511 = vpop.permute.xlu0 %1510
  %v1513 = vadd.f32 %v1505, %v1511
  %v1514 = vadd.f32 %v1507, %v1508
  %1516 = vrot.lane.b32.xlu0 %v1514, 48
  %v1517 = vpop.permute.xlu0 %1516
  %v1519 = vadd.f32 %v1513, %v1517
  %1521 = vrot.lane.b32.xlu0 %v1400, 48
  %v1522 = vpop.permute.xlu0 %1521
  %v1524 = vadd.f32 %v1519, %v1522
  %v1525 = vmul.f32 %v1416, 0.5
  %v1526 = vtanh.pop %v1525
  %v1527 = vmul.f32 %v1526, 0.5
  %v1528 = vadd.f32 %v1527, 0.5
  %v1529 = vmul.f32 %v1452, 0.5
  %v1530 = vtanh.pop %v1529
  %v1531 = vmul.f32 %v1530, 0.5
  %v1532 = vadd.f32 %v1531, 0.5
  %v1533 = vmul.f32 %v1524, 0.5
  %v1534 = vtanh.pop %v1533
  %v1535 = vmul.f32 %v1534, 0.5
  %v1536 = vadd.f32 %v1535, 0.5
  %v1537 = vtanh.pop %v1488
  %v1538 = vmul.f32 %v1532, %v1265
  %1540 = vrot.lane.b32.xlu0 %v1537, 96
  %v1541 = vpop.permute.xlu0 %1540
  %v1543 = vmul.f32 %v1528, %v1541
  %1545 = vrot.lane.b32.xlu0 %v1543, 16
  %v1546 = vpop.permute.xlu0 %1545
  %v1548 = vadd.f32 %v1538, %v1546
  %v1549 = vtanh.pop %v1548
  %1551 = vrot.lane.b32.xlu0 %v1549, 32
  %v1552 = vpop.permute.xlu0 %1551
  %v1554 = vmul.f32 %v1536, %v1552
  %1556 = vset.pattern.permute.xlu0 48
  %1557 = vperm.xlu0 %1556, %v1554
  %v1558 = vpop.permute.xlu0 %1557
  %v1560 = vmul.f32 %v1558, %v38
  %v1561 = vmul.f32 %v1558, %v118
  %v1562 = vmul.f32 %v1558, %v198
  %v1563 = vmul.f32 %v1558, %v278
  %1564 = vset.pattern.permute.xlu0 49
  %1565 = vperm.xlu0 %1564, %v1554
  %v1566 = vpop.permute.xlu0 %1565
  %v1568 = vmul.f32 %v1566, %v43
  %v1569 = vmul.f32 %v1566, %v123
  %v1570 = vmul.f32 %v1566, %v203
  %v1571 = vmul.f32 %v1566, %v283
  %1572 = vset.pattern.permute.xlu0 50
  %1573 = vperm.xlu0 %1572, %v1554
  %v1574 = vpop.permute.xlu0 %1573
  %v1576 = vmul.f32 %v1574, %v48
  %v1577 = vmul.f32 %v1574, %v128
  %v1578 = vmul.f32 %v1574, %v208
  %v1579 = vmul.f32 %v1574, %v288
  %1580 = vset.pattern.permute.xlu0 51
  %1581 = vperm.xlu0 %1580, %v1554
  %v1582 = vpop.permute.xlu0 %1581
  %v1584 = vmul.f32 %v1582, %v53
  %v1585 = vmul.f32 %v1582, %v133
  %v1586 = vmul.f32 %v1582, %v213
  %v1587 = vmul.f32 %v1582, %v293
  %1588 = vset.pattern.permute.xlu0 52
  %1589 = vperm.xlu0 %1588, %v1554
  %v1590 = vpop.permute.xlu0 %1589
  %v1592 = vmul.f32 %v1590, %v58
  %v1593 = vmul.f32 %v1590, %v138
  %v1594 = vmul.f32 %v1590, %v218
  %v1595 = vmul.f32 %v1590, %v298
  %1596 = vset.pattern.permute.xlu0 53
  %1597 = vperm.xlu0 %1596, %v1554
  %v1598 = vpop.permute.xlu0 %1597
  %v1600 = vmul.f32 %v1598, %v63
  %v1601 = vmul.f32 %v1598, %v143
  %v1602 = vmul.f32 %v1598, %v223
  %v1603 = vmul.f32 %v1598, %v303
  %1604 = vset.pattern.permute.xlu0 54
  %1605 = vperm.xlu0 %1604, %v1554
  %v1606 = vpop.permute.xlu0 %1605
  %v1608 = vmul.f32 %v1606, %v68
  %v1609 = vmul.f32 %v1606, %v148
  %v1610 = vmul.f32 %v1606, %v228
  %v1611 = vmul.f32 %v1606, %v308
  %1612 = vset.pattern.permute.xlu0 55
  %1613 = vperm.xlu0 %1612, %v1554
  %v1614 = vpop.permute.xlu0 %1613
  %v1616 = vmul.f32 %v1614, %v73
  %v1617 = vmul.f32 %v1614, %v153
  %v1618 = vmul.f32 %v1614, %v233
  %v1619 = vmul.f32 %v1614, %v313
  %1620 = vset.pattern.permute.xlu0 56
  %1621 = vperm.xlu0 %1620, %v1554
  %v1622 = vpop.permute.xlu0 %1621
  %v1624 = vmul.f32 %v1622, %v78
  %v1625 = vmul.f32 %v1622, %v158
  %v1626 = vmul.f32 %v1622, %v238
  %v1627 = vmul.f32 %v1622, %v318
  %1628 = vset.pattern.permute.xlu0 57
  %1629 = vperm.xlu0 %1628, %v1554
  %v1630 = vpop.permute.xlu0 %1629
  %v1632 = vmul.f32 %v1630, %v83
  %v1633 = vmul.f32 %v1630, %v163
  %v1634 = vmul.f32 %v1630, %v243
  %v1635 = vmul.f32 %v1630, %v323
  %1636 = vset.pattern.permute.xlu0 58
  %1637 = vperm.xlu0 %1636, %v1554
  %v1638 = vpop.permute.xlu0 %1637
  %v1640 = vmul.f32 %v1638, %v88
  %v1641 = vmul.f32 %v1638, %v168
  %v1642 = vmul.f32 %v1638, %v248
  %v1643 = vmul.f32 %v1638, %v328
  %1644 = vset.pattern.permute.xlu0 59
  %1645 = vperm.xlu0 %1644, %v1554
  %v1646 = vpop.permute.xlu0 %1645
  %v1648 = vmul.f32 %v1646, %v93
  %v1649 = vmul.f32 %v1646, %v173
  %v1650 = vmul.f32 %v1646, %v253
  %v1651 = vmul.f32 %v1646, %v333
  %1652 = vset.pattern.permute.xlu0 60
  %1653 = vperm.xlu0 %1652, %v1554
  %v1654 = vpop.permute.xlu0 %1653
  %v1656 = vmul.f32 %v1654, %v98
  %v1657 = vmul.f32 %v1654, %v178
  %v1658 = vmul.f32 %v1654, %v258
  %v1659 = vmul.f32 %v1654, %v338
  %1660 = vset.pattern.permute.xlu0 61
  %1661 = vperm.xlu0 %1660, %v1554
  %v1662 = vpop.permute.xlu0 %1661
  %v1664 = vmul.f32 %v1662, %v103
  %v1665 = vmul.f32 %v1662, %v183
  %v1666 = vmul.f32 %v1662, %v263
  %v1667 = vmul.f32 %v1662, %v343
  %1668 = vset.pattern.permute.xlu0 62
  %1669 = vperm.xlu0 %1668, %v1554
  %v1670 = vpop.permute.xlu0 %1669
  %v1672 = vmul.f32 %v1670, %v108
  %v1673 = vmul.f32 %v1670, %v188
  %v1674 = vmul.f32 %v1670, %v268
  %v1675 = vmul.f32 %v1670, %v348
  %1676 = vset.pattern.permute.xlu0 63
  %1677 = vperm.xlu0 %1676, %v1554
  %v1678 = vpop.permute.xlu0 %1677
  %v1680 = vmul.f32 %v1678, %v113
  %v1681 = vmul.f32 %v1678, %v193
  %v1682 = vmul.f32 %v1678, %v273
  %v1683 = vmul.f32 %v1678, %v353
  %v1684 = vadd.f32 %v470, %v1560
  %v1685 = vadd.f32 %v1568, %v1576
  %v1686 = vadd.f32 %v1584, %v1592
  %v1687 = vadd.f32 %v1600, %v1608
  %v1688 = vadd.f32 %v1616, %v1624
  %v1689 = vadd.f32 %v1632, %v1640
  %v1690 = vadd.f32 %v1648, %v1656
  %v1691 = vadd.f32 %v1664, %v1672
  %v1692 = vadd.f32 %v1684, %v1685
  %v1693 = vadd.f32 %v1686, %v1687
  %v1694 = vadd.f32 %v1688, %v1689
  %v1695 = vadd.f32 %v1690, %v1691
  %v1696 = vadd.f32 %v1692, %v1693
  %v1697 = vadd.f32 %v1694, %v1695
  %v1698 = vadd.f32 %v1696, %v1697
  %v1699 = vadd.f32 %v1698, %v1680
  %1701 = vrot.lane.b32.xlu0 %v1561, 16
  %v1702 = vpop.permute.xlu0 %1701
  %v1704 = vadd.f32 %v470, %v1702
  %v1705 = vadd.f32 %v1569, %v1577
  %v1706 = vadd.f32 %v1585, %v1593
  %v1707 = vadd.f32 %v1601, %v1609
  %v1708 = vadd.f32 %v1617, %v1625
  %v1709 = vadd.f32 %v1633, %v1641
  %v1710 = vadd.f32 %v1649, %v1657
  %v1711 = vadd.f32 %v1665, %v1673
  %1713 = vrot.lane.b32.xlu0 %v1705, 16
  %v1714 = vpop.permute.xlu0 %1713
  %v1716 = vadd.f32 %v1704, %v1714
  %v1717 = vadd.f32 %v1706, %v1707
  %v1718 = vadd.f32 %v1708, %v1709
  %v1719 = vadd.f32 %v1710, %v1711
  %1721 = vrot.lane.b32.xlu0 %v1717, 16
  %v1722 = vpop.permute.xlu0 %1721
  %v1724 = vadd.f32 %v1716, %v1722
  %v1725 = vadd.f32 %v1718, %v1719
  %1727 = vrot.lane.b32.xlu0 %v1725, 16
  %v1728 = vpop.permute.xlu0 %1727
  %v1730 = vadd.f32 %v1724, %v1728
  %1732 = vrot.lane.b32.xlu0 %v1681, 16
  %v1733 = vpop.permute.xlu0 %1732
  %v1735 = vadd.f32 %v1730, %v1733
  %1737 = vrot.lane.b32.xlu0 %v1562, 32
  %v1738 = vpop.permute.xlu0 %1737
  %v1740 = vadd.f32 %v470, %v1738
  %v1741 = vadd.f32 %v1570, %v1578
  %v1742 = vadd.f32 %v1586, %v1594
  %v1743 = vadd.f32 %v1602, %v1610
  %v1744 = vadd.f32 %v1618, %v1626
  %v1745 = vadd.f32 %v1634, %v1642
  %v1746 = vadd.f32 %v1650, %v1658
  %v1747 = vadd.f32 %v1666, %v1674
  %1749 = vrot.lane.b32.xlu0 %v1741, 32
  %v1750 = vpop.permute.xlu0 %1749
  %v1752 = vadd.f32 %v1740, %v1750
  %v1753 = vadd.f32 %v1742, %v1743
  %v1754 = vadd.f32 %v1744, %v1745
  %v1755 = vadd.f32 %v1746, %v1747
  %1757 = vrot.lane.b32.xlu0 %v1753, 32
  %v1758 = vpop.permute.xlu0 %1757
  %v1760 = vadd.f32 %v1752, %v1758
  %v1761 = vadd.f32 %v1754, %v1755
  %1763 = vrot.lane.b32.xlu0 %v1761, 32
  %v1764 = vpop.permute.xlu0 %1763
  %v1766 = vadd.f32 %v1760, %v1764
  %1768 = vrot.lane.b32.xlu0 %v1682, 32
  %v1769 = vpop.permute.xlu0 %1768
  %v1771 = vadd.f32 %v1766, %v1769
  %1773 = vrot.lane.b32.xlu0 %v1563, 48
  %v1774 = vpop.permute.xlu0 %1773
  %v1776 = vadd.f32 %v470, %v1774
  %v1777 = vadd.f32 %v1571, %v1579
  %v1778 = vadd.f32 %v1587, %v1595
  %v1779 = vadd.f32 %v1603, %v1611
  %v1780 = vadd.f32 %v1619, %v1627
  %v1781 = vadd.f32 %v1635, %v1643
  %v1782 = vadd.f32 %v1651, %v1659
  %v1783 = vadd.f32 %v1667, %v1675
  %1785 = vrot.lane.b32.xlu0 %v1777, 48
  %v1786 = vpop.permute.xlu0 %1785
  %v1788 = vadd.f32 %v1776, %v1786
  %v1789 = vadd.f32 %v1778, %v1779
  %v1790 = vadd.f32 %v1780, %v1781
  %v1791 = vadd.f32 %v1782, %v1783
  %1793 = vrot.lane.b32.xlu0 %v1789, 48
  %v1794 = vpop.permute.xlu0 %1793
  %v1796 = vadd.f32 %v1788, %v1794
  %v1797 = vadd.f32 %v1790, %v1791
  %1799 = vrot.lane.b32.xlu0 %v1797, 48
  %v1800 = vpop.permute.xlu0 %1799
  %v1802 = vadd.f32 %v1796, %v1800
  %1804 = vrot.lane.b32.xlu0 %v1683, 48
  %v1805 = vpop.permute.xlu0 %1804
  %v1807 = vadd.f32 %v1802, %v1805
  %v1808 = vmul.f32 %v1699, 0.5
  %v1809 = vtanh.pop %v1808
  %v1810 = vmul.f32 %v1809, 0.5
  %v1811 = vadd.f32 %v1810, 0.5
  %v1812 = vmul.f32 %v1735, 0.5
  %v1813 = vtanh.pop %v1812
  %v1814 = vmul.f32 %v1813, 0.5
  %v1815 = vadd.f32 %v1814, 0.5
  %v1816 = vmul.f32 %v1807, 0.5
  %v1817 = vtanh.pop %v1816
  %v1818 = vmul.f32 %v1817, 0.5
  %v1819 = vadd.f32 %v1818, 0.5
  %v1820 = vtanh.pop %v1771
  %v1821 = vmul.f32 %v1815, %v1548
  %1823 = vrot.lane.b32.xlu0 %v1820, 96
  %v1824 = vpop.permute.xlu0 %1823
  %v1826 = vmul.f32 %v1811, %v1824
  %1828 = vrot.lane.b32.xlu0 %v1826, 16
  %v1829 = vpop.permute.xlu0 %1828
  %v1831 = vadd.f32 %v1821, %v1829
  %v1832 = vtanh.pop %v1831
  %1834 = vrot.lane.b32.xlu0 %v1832, 32
  %v1835 = vpop.permute.xlu0 %1834
  %v1837 = vmul.f32 %v1819, %v1835
  %1839 = vset.pattern.permute.xlu0 48
  %1840 = vperm.xlu0 %1839, %v1837
  %v1841 = vpop.permute.xlu0 %1840
  %v1843 = vmul.f32 %v1841, %v38
  %v1844 = vmul.f32 %v1841, %v118
  %v1845 = vmul.f32 %v1841, %v198
  %v1846 = vmul.f32 %v1841, %v278
  %1847 = vset.pattern.permute.xlu0 49
  %1848 = vperm.xlu0 %1847, %v1837
  %v1849 = vpop.permute.xlu0 %1848
  %v1851 = vmul.f32 %v1849, %v43
  %v1852 = vmul.f32 %v1849, %v123
  %v1853 = vmul.f32 %v1849, %v203
  %v1854 = vmul.f32 %v1849, %v283
  %1855 = vset.pattern.permute.xlu0 50
  %1856 = vperm.xlu0 %1855, %v1837
  %v1857 = vpop.permute.xlu0 %1856
  %v1859 = vmul.f32 %v1857, %v48
  %v1860 = vmul.f32 %v1857, %v128
  %v1861 = vmul.f32 %v1857, %v208
  %v1862 = vmul.f32 %v1857, %v288
  %1863 = vset.pattern.permute.xlu0 51
  %1864 = vperm.xlu0 %1863, %v1837
  %v1865 = vpop.permute.xlu0 %1864
  %v1867 = vmul.f32 %v1865, %v53
  %v1868 = vmul.f32 %v1865, %v133
  %v1869 = vmul.f32 %v1865, %v213
  %v1870 = vmul.f32 %v1865, %v293
  %1871 = vset.pattern.permute.xlu0 52
  %1872 = vperm.xlu0 %1871, %v1837
  %v1873 = vpop.permute.xlu0 %1872
  %v1875 = vmul.f32 %v1873, %v58
  %v1876 = vmul.f32 %v1873, %v138
  %v1877 = vmul.f32 %v1873, %v218
  %v1878 = vmul.f32 %v1873, %v298
  %1879 = vset.pattern.permute.xlu0 53
  %1880 = vperm.xlu0 %1879, %v1837
  %v1881 = vpop.permute.xlu0 %1880
  %v1883 = vmul.f32 %v1881, %v63
  %v1884 = vmul.f32 %v1881, %v143
  %v1885 = vmul.f32 %v1881, %v223
  %v1886 = vmul.f32 %v1881, %v303
  %1887 = vset.pattern.permute.xlu0 54
  %1888 = vperm.xlu0 %1887, %v1837
  %v1889 = vpop.permute.xlu0 %1888
  %v1891 = vmul.f32 %v1889, %v68
  %v1892 = vmul.f32 %v1889, %v148
  %v1893 = vmul.f32 %v1889, %v228
  %v1894 = vmul.f32 %v1889, %v308
  %1895 = vset.pattern.permute.xlu0 55
  %1896 = vperm.xlu0 %1895, %v1837
  %v1897 = vpop.permute.xlu0 %1896
  %v1899 = vmul.f32 %v1897, %v73
  %v1900 = vmul.f32 %v1897, %v153
  %v1901 = vmul.f32 %v1897, %v233
  %v1902 = vmul.f32 %v1897, %v313
  %1903 = vset.pattern.permute.xlu0 56
  %1904 = vperm.xlu0 %1903, %v1837
  %v1905 = vpop.permute.xlu0 %1904
  %v1907 = vmul.f32 %v1905, %v78
  %v1908 = vmul.f32 %v1905, %v158
  %v1909 = vmul.f32 %v1905, %v238
  %v1910 = vmul.f32 %v1905, %v318
  %1911 = vset.pattern.permute.xlu0 57
  %1912 = vperm.xlu0 %1911, %v1837
  %v1913 = vpop.permute.xlu0 %1912
  %v1915 = vmul.f32 %v1913, %v83
  %v1916 = vmul.f32 %v1913, %v163
  %v1917 = vmul.f32 %v1913, %v243
  %v1918 = vmul.f32 %v1913, %v323
  %1919 = vset.pattern.permute.xlu0 58
  %1920 = vperm.xlu0 %1919, %v1837
  %v1921 = vpop.permute.xlu0 %1920
  %v1923 = vmul.f32 %v1921, %v88
  %v1924 = vmul.f32 %v1921, %v168
  %v1925 = vmul.f32 %v1921, %v248
  %v1926 = vmul.f32 %v1921, %v328
  %1927 = vset.pattern.permute.xlu0 59
  %1928 = vperm.xlu0 %1927, %v1837
  %v1929 = vpop.permute.xlu0 %1928
  %v1931 = vmul.f32 %v1929, %v93
  %v1932 = vmul.f32 %v1929, %v173
  %v1933 = vmul.f32 %v1929, %v253
  %v1934 = vmul.f32 %v1929, %v333
  %1935 = vset.pattern.permute.xlu0 60
  %1936 = vperm.xlu0 %1935, %v1837
  %v1937 = vpop.permute.xlu0 %1936
  %v1939 = vmul.f32 %v1937, %v98
  %v1940 = vmul.f32 %v1937, %v178
  %v1941 = vmul.f32 %v1937, %v258
  %v1942 = vmul.f32 %v1937, %v338
  %1943 = vset.pattern.permute.xlu0 61
  %1944 = vperm.xlu0 %1943, %v1837
  %v1945 = vpop.permute.xlu0 %1944
  %v1947 = vmul.f32 %v1945, %v103
  %v1948 = vmul.f32 %v1945, %v183
  %v1949 = vmul.f32 %v1945, %v263
  %v1950 = vmul.f32 %v1945, %v343
  %1951 = vset.pattern.permute.xlu0 62
  %1952 = vperm.xlu0 %1951, %v1837
  %v1953 = vpop.permute.xlu0 %1952
  %v1955 = vmul.f32 %v1953, %v108
  %v1956 = vmul.f32 %v1953, %v188
  %v1957 = vmul.f32 %v1953, %v268
  %v1958 = vmul.f32 %v1953, %v348
  %1959 = vset.pattern.permute.xlu0 63
  %1960 = vperm.xlu0 %1959, %v1837
  %v1961 = vpop.permute.xlu0 %1960
  %v1963 = vmul.f32 %v1961, %v113
  %v1964 = vmul.f32 %v1961, %v193
  %v1965 = vmul.f32 %v1961, %v273
  %v1966 = vmul.f32 %v1961, %v353
  %v1967 = vadd.f32 %v475, %v1843
  %v1968 = vadd.f32 %v1851, %v1859
  %v1969 = vadd.f32 %v1867, %v1875
  %v1970 = vadd.f32 %v1883, %v1891
  %v1971 = vadd.f32 %v1899, %v1907
  %v1972 = vadd.f32 %v1915, %v1923
  %v1973 = vadd.f32 %v1931, %v1939
  %v1974 = vadd.f32 %v1947, %v1955
  %v1975 = vadd.f32 %v1967, %v1968
  %v1976 = vadd.f32 %v1969, %v1970
  %v1977 = vadd.f32 %v1971, %v1972
  %v1978 = vadd.f32 %v1973, %v1974
  %v1979 = vadd.f32 %v1975, %v1976
  %v1980 = vadd.f32 %v1977, %v1978
  %v1981 = vadd.f32 %v1979, %v1980
  %v1982 = vadd.f32 %v1981, %v1963
  %1984 = vrot.lane.b32.xlu0 %v1844, 16
  %v1985 = vpop.permute.xlu0 %1984
  %v1987 = vadd.f32 %v475, %v1985
  %v1988 = vadd.f32 %v1852, %v1860
  %v1989 = vadd.f32 %v1868, %v1876
  %v1990 = vadd.f32 %v1884, %v1892
  %v1991 = vadd.f32 %v1900, %v1908
  %v1992 = vadd.f32 %v1916, %v1924
  %v1993 = vadd.f32 %v1932, %v1940
  %v1994 = vadd.f32 %v1948, %v1956
  %1996 = vrot.lane.b32.xlu0 %v1988, 16
  %v1997 = vpop.permute.xlu0 %1996
  %v1999 = vadd.f32 %v1987, %v1997
  %v2000 = vadd.f32 %v1989, %v1990
  %v2001 = vadd.f32 %v1991, %v1992
  %v2002 = vadd.f32 %v1993, %v1994
  %2004 = vrot.lane.b32.xlu0 %v2000, 16
  %v2005 = vpop.permute.xlu0 %2004
  %v2007 = vadd.f32 %v1999, %v2005
  %v2008 = vadd.f32 %v2001, %v2002
  %2010 = vrot.lane.b32.xlu0 %v2008, 16
  %v2011 = vpop.permute.xlu0 %2010
  %v2013 = vadd.f32 %v2007, %v2011
  %2015 = vrot.lane.b32.xlu0 %v1964, 16
  %v2016 = vpop.permute.xlu0 %2015
  %v2018 = vadd.f32 %v2013, %v2016
  %2020 = vrot.lane.b32.xlu0 %v1845, 32
  %v2021 = vpop.permute.xlu0 %2020
  %v2023 = vadd.f32 %v475, %v2021
  %v2024 = vadd.f32 %v1853, %v1861
  %v2025 = vadd.f32 %v1869, %v1877
  %v2026 = vadd.f32 %v1885, %v1893
  %v2027 = vadd.f32 %v1901, %v1909
  %v2028 = vadd.f32 %v1917, %v1925
  %v2029 = vadd.f32 %v1933, %v1941
  %v2030 = vadd.f32 %v1949, %v1957
  %2032 = vrot.lane.b32.xlu0 %v2024, 32
  %v2033 = vpop.permute.xlu0 %2032
  %v2035 = vadd.f32 %v2023, %v2033
  %v2036 = vadd.f32 %v2025, %v2026
  %v2037 = vadd.f32 %v2027, %v2028
  %v2038 = vadd.f32 %v2029, %v2030
  %2040 = vrot.lane.b32.xlu0 %v2036, 32
  %v2041 = vpop.permute.xlu0 %2040
  %v2043 = vadd.f32 %v2035, %v2041
  %v2044 = vadd.f32 %v2037, %v2038
  %2046 = vrot.lane.b32.xlu0 %v2044, 32
  %v2047 = vpop.permute.xlu0 %2046
  %v2049 = vadd.f32 %v2043, %v2047
  %2051 = vrot.lane.b32.xlu0 %v1965, 32
  %v2052 = vpop.permute.xlu0 %2051
  %v2054 = vadd.f32 %v2049, %v2052
  %2056 = vrot.lane.b32.xlu0 %v1846, 48
  %v2057 = vpop.permute.xlu0 %2056
  %v2059 = vadd.f32 %v475, %v2057
  %v2060 = vadd.f32 %v1854, %v1862
  %v2061 = vadd.f32 %v1870, %v1878
  %v2062 = vadd.f32 %v1886, %v1894
  %v2063 = vadd.f32 %v1902, %v1910
  %v2064 = vadd.f32 %v1918, %v1926
  %v2065 = vadd.f32 %v1934, %v1942
  %v2066 = vadd.f32 %v1950, %v1958
  %2068 = vrot.lane.b32.xlu0 %v2060, 48
  %v2069 = vpop.permute.xlu0 %2068
  %v2071 = vadd.f32 %v2059, %v2069
  %v2072 = vadd.f32 %v2061, %v2062
  %v2073 = vadd.f32 %v2063, %v2064
  %v2074 = vadd.f32 %v2065, %v2066
  %2076 = vrot.lane.b32.xlu0 %v2072, 48
  %v2077 = vpop.permute.xlu0 %2076
  %v2079 = vadd.f32 %v2071, %v2077
  %v2080 = vadd.f32 %v2073, %v2074
  %2082 = vrot.lane.b32.xlu0 %v2080, 48
  %v2083 = vpop.permute.xlu0 %2082
  %v2085 = vadd.f32 %v2079, %v2083
  %2087 = vrot.lane.b32.xlu0 %v1966, 48
  %v2088 = vpop.permute.xlu0 %2087
  %v2090 = vadd.f32 %v2085, %v2088
  %v2091 = vmul.f32 %v1982, 0.5
  %v2092 = vtanh.pop %v2091
  %v2093 = vmul.f32 %v2092, 0.5
  %v2094 = vadd.f32 %v2093, 0.5
  %v2095 = vmul.f32 %v2018, 0.5
  %v2096 = vtanh.pop %v2095
  %v2097 = vmul.f32 %v2096, 0.5
  %v2098 = vadd.f32 %v2097, 0.5
  %v2099 = vmul.f32 %v2090, 0.5
  %v2100 = vtanh.pop %v2099
  %v2101 = vmul.f32 %v2100, 0.5
  %v2102 = vadd.f32 %v2101, 0.5
  %v2103 = vtanh.pop %v2054
  %v2104 = vmul.f32 %v2098, %v1831
  %2106 = vrot.lane.b32.xlu0 %v2103, 96
  %v2107 = vpop.permute.xlu0 %2106
  %v2109 = vmul.f32 %v2094, %v2107
  %2111 = vrot.lane.b32.xlu0 %v2109, 16
  %v2112 = vpop.permute.xlu0 %2111
  %v2114 = vadd.f32 %v2104, %v2112
  %v2115 = vtanh.pop %v2114
  %2117 = vrot.lane.b32.xlu0 %v2115, 32
  %v2118 = vpop.permute.xlu0 %2117
  %v2120 = vmul.f32 %v2102, %v2118
  %2122 = vset.pattern.permute.xlu0 48
  %2123 = vperm.xlu0 %2122, %v2120
  %v2124 = vpop.permute.xlu0 %2123
  %v2126 = vmul.f32 %v2124, %v38
  %v2127 = vmul.f32 %v2124, %v118
  %v2128 = vmul.f32 %v2124, %v198
  %v2129 = vmul.f32 %v2124, %v278
  %2130 = vset.pattern.permute.xlu0 49
  %2131 = vperm.xlu0 %2130, %v2120
  %v2132 = vpop.permute.xlu0 %2131
  %v2134 = vmul.f32 %v2132, %v43
  %v2135 = vmul.f32 %v2132, %v123
  %v2136 = vmul.f32 %v2132, %v203
  %v2137 = vmul.f32 %v2132, %v283
  %2138 = vset.pattern.permute.xlu0 50
  %2139 = vperm.xlu0 %2138, %v2120
  %v2140 = vpop.permute.xlu0 %2139
  %v2142 = vmul.f32 %v2140, %v48
  %v2143 = vmul.f32 %v2140, %v128
  %v2144 = vmul.f32 %v2140, %v208
  %v2145 = vmul.f32 %v2140, %v288
  %2146 = vset.pattern.permute.xlu0 51
  %2147 = vperm.xlu0 %2146, %v2120
  %v2148 = vpop.permute.xlu0 %2147
  %v2150 = vmul.f32 %v2148, %v53
  %v2151 = vmul.f32 %v2148, %v133
  %v2152 = vmul.f32 %v2148, %v213
  %v2153 = vmul.f32 %v2148, %v293
  %2154 = vset.pattern.permute.xlu0 52
  %2155 = vperm.xlu0 %2154, %v2120
  %v2156 = vpop.permute.xlu0 %2155
  %v2158 = vmul.f32 %v2156, %v58
  %v2159 = vmul.f32 %v2156, %v138
  %v2160 = vmul.f32 %v2156, %v218
  %v2161 = vmul.f32 %v2156, %v298
  %2162 = vset.pattern.permute.xlu0 53
  %2163 = vperm.xlu0 %2162, %v2120
  %v2164 = vpop.permute.xlu0 %2163
  %v2166 = vmul.f32 %v2164, %v63
  %v2167 = vmul.f32 %v2164, %v143
  %v2168 = vmul.f32 %v2164, %v223
  %v2169 = vmul.f32 %v2164, %v303
  %2170 = vset.pattern.permute.xlu0 54
  %2171 = vperm.xlu0 %2170, %v2120
  %v2172 = vpop.permute.xlu0 %2171
  %v2174 = vmul.f32 %v2172, %v68
  %v2175 = vmul.f32 %v2172, %v148
  %v2176 = vmul.f32 %v2172, %v228
  %v2177 = vmul.f32 %v2172, %v308
  %2178 = vset.pattern.permute.xlu0 55
  %2179 = vperm.xlu0 %2178, %v2120
  %v2180 = vpop.permute.xlu0 %2179
  %v2182 = vmul.f32 %v2180, %v73
  %v2183 = vmul.f32 %v2180, %v153
  %v2184 = vmul.f32 %v2180, %v233
  %v2185 = vmul.f32 %v2180, %v313
  %2186 = vset.pattern.permute.xlu0 56
  %2187 = vperm.xlu0 %2186, %v2120
  %v2188 = vpop.permute.xlu0 %2187
  %v2190 = vmul.f32 %v2188, %v78
  %v2191 = vmul.f32 %v2188, %v158
  %v2192 = vmul.f32 %v2188, %v238
  %v2193 = vmul.f32 %v2188, %v318
  %2194 = vset.pattern.permute.xlu0 57
  %2195 = vperm.xlu0 %2194, %v2120
  %v2196 = vpop.permute.xlu0 %2195
  %v2198 = vmul.f32 %v2196, %v83
  %v2199 = vmul.f32 %v2196, %v163
  %v2200 = vmul.f32 %v2196, %v243
  %v2201 = vmul.f32 %v2196, %v323
  %2202 = vset.pattern.permute.xlu0 58
  %2203 = vperm.xlu0 %2202, %v2120
  %v2204 = vpop.permute.xlu0 %2203
  %v2206 = vmul.f32 %v2204, %v88
  %v2207 = vmul.f32 %v2204, %v168
  %v2208 = vmul.f32 %v2204, %v248
  %v2209 = vmul.f32 %v2204, %v328
  %2210 = vset.pattern.permute.xlu0 59
  %2211 = vperm.xlu0 %2210, %v2120
  %v2212 = vpop.permute.xlu0 %2211
  %v2214 = vmul.f32 %v2212, %v93
  %v2215 = vmul.f32 %v2212, %v173
  %v2216 = vmul.f32 %v2212, %v253
  %v2217 = vmul.f32 %v2212, %v333
  %2218 = vset.pattern.permute.xlu0 60
  %2219 = vperm.xlu0 %2218, %v2120
  %v2220 = vpop.permute.xlu0 %2219
  %v2222 = vmul.f32 %v2220, %v98
  %v2223 = vmul.f32 %v2220, %v178
  %v2224 = vmul.f32 %v2220, %v258
  %v2225 = vmul.f32 %v2220, %v338
  %2226 = vset.pattern.permute.xlu0 61
  %2227 = vperm.xlu0 %2226, %v2120
  %v2228 = vpop.permute.xlu0 %2227
  %v2230 = vmul.f32 %v2228, %v103
  %v2231 = vmul.f32 %v2228, %v183
  %v2232 = vmul.f32 %v2228, %v263
  %v2233 = vmul.f32 %v2228, %v343
  %2234 = vset.pattern.permute.xlu0 62
  %2235 = vperm.xlu0 %2234, %v2120
  %v2236 = vpop.permute.xlu0 %2235
  %v2238 = vmul.f32 %v2236, %v108
  %v2239 = vmul.f32 %v2236, %v188
  %v2240 = vmul.f32 %v2236, %v268
  %v2241 = vmul.f32 %v2236, %v348
  %2242 = vset.pattern.permute.xlu0 63
  %2243 = vperm.xlu0 %2242, %v2120
  %v2244 = vpop.permute.xlu0 %2243
  %v2246 = vmul.f32 %v2244, %v113
  %v2247 = vmul.f32 %v2244, %v193
  %v2248 = vmul.f32 %v2244, %v273
  %v2249 = vmul.f32 %v2244, %v353
  %v2250 = vadd.f32 %v480, %v2126
  %v2251 = vadd.f32 %v2134, %v2142
  %v2252 = vadd.f32 %v2150, %v2158
  %v2253 = vadd.f32 %v2166, %v2174
  %v2254 = vadd.f32 %v2182, %v2190
  %v2255 = vadd.f32 %v2198, %v2206
  %v2256 = vadd.f32 %v2214, %v2222
  %v2257 = vadd.f32 %v2230, %v2238
  %v2258 = vadd.f32 %v2250, %v2251
  %v2259 = vadd.f32 %v2252, %v2253
  %v2260 = vadd.f32 %v2254, %v2255
  %v2261 = vadd.f32 %v2256, %v2257
  %v2262 = vadd.f32 %v2258, %v2259
  %v2263 = vadd.f32 %v2260, %v2261
  %v2264 = vadd.f32 %v2262, %v2263
  %v2265 = vadd.f32 %v2264, %v2246
  %2267 = vrot.lane.b32.xlu0 %v2127, 16
  %v2268 = vpop.permute.xlu0 %2267
  %v2270 = vadd.f32 %v480, %v2268
  %v2271 = vadd.f32 %v2135, %v2143
  %v2272 = vadd.f32 %v2151, %v2159
  %v2273 = vadd.f32 %v2167, %v2175
  %v2274 = vadd.f32 %v2183, %v2191
  %v2275 = vadd.f32 %v2199, %v2207
  %v2276 = vadd.f32 %v2215, %v2223
  %v2277 = vadd.f32 %v2231, %v2239
  %2279 = vrot.lane.b32.xlu0 %v2271, 16
  %v2280 = vpop.permute.xlu0 %2279
  %v2282 = vadd.f32 %v2270, %v2280
  %v2283 = vadd.f32 %v2272, %v2273
  %v2284 = vadd.f32 %v2274, %v2275
  %v2285 = vadd.f32 %v2276, %v2277
  %2287 = vrot.lane.b32.xlu0 %v2283, 16
  %v2288 = vpop.permute.xlu0 %2287
  %v2290 = vadd.f32 %v2282, %v2288
  %v2291 = vadd.f32 %v2284, %v2285
  %2293 = vrot.lane.b32.xlu0 %v2291, 16
  %v2294 = vpop.permute.xlu0 %2293
  %v2296 = vadd.f32 %v2290, %v2294
  %2298 = vrot.lane.b32.xlu0 %v2247, 16
  %v2299 = vpop.permute.xlu0 %2298
  %v2301 = vadd.f32 %v2296, %v2299
  %2303 = vrot.lane.b32.xlu0 %v2128, 32
  %v2304 = vpop.permute.xlu0 %2303
  %v2306 = vadd.f32 %v480, %v2304
  %v2307 = vadd.f32 %v2136, %v2144
  %v2308 = vadd.f32 %v2152, %v2160
  %v2309 = vadd.f32 %v2168, %v2176
  %v2310 = vadd.f32 %v2184, %v2192
  %v2311 = vadd.f32 %v2200, %v2208
  %v2312 = vadd.f32 %v2216, %v2224
  %v2313 = vadd.f32 %v2232, %v2240
  %2315 = vrot.lane.b32.xlu0 %v2307, 32
  %v2316 = vpop.permute.xlu0 %2315
  %v2318 = vadd.f32 %v2306, %v2316
  %v2319 = vadd.f32 %v2308, %v2309
  %v2320 = vadd.f32 %v2310, %v2311
  %v2321 = vadd.f32 %v2312, %v2313
  %2323 = vrot.lane.b32.xlu0 %v2319, 32
  %v2324 = vpop.permute.xlu0 %2323
  %v2326 = vadd.f32 %v2318, %v2324
  %v2327 = vadd.f32 %v2320, %v2321
  %2329 = vrot.lane.b32.xlu0 %v2327, 32
  %v2330 = vpop.permute.xlu0 %2329
  %v2332 = vadd.f32 %v2326, %v2330
  %2334 = vrot.lane.b32.xlu0 %v2248, 32
  %v2335 = vpop.permute.xlu0 %2334
  %v2337 = vadd.f32 %v2332, %v2335
  %2339 = vrot.lane.b32.xlu0 %v2129, 48
  %v2340 = vpop.permute.xlu0 %2339
  %v2342 = vadd.f32 %v480, %v2340
  %v2343 = vadd.f32 %v2137, %v2145
  %v2344 = vadd.f32 %v2153, %v2161
  %v2345 = vadd.f32 %v2169, %v2177
  %v2346 = vadd.f32 %v2185, %v2193
  %v2347 = vadd.f32 %v2201, %v2209
  %v2348 = vadd.f32 %v2217, %v2225
  %v2349 = vadd.f32 %v2233, %v2241
  %2351 = vrot.lane.b32.xlu0 %v2343, 48
  %v2352 = vpop.permute.xlu0 %2351
  %v2354 = vadd.f32 %v2342, %v2352
  %v2355 = vadd.f32 %v2344, %v2345
  %v2356 = vadd.f32 %v2346, %v2347
  %v2357 = vadd.f32 %v2348, %v2349
  %2359 = vrot.lane.b32.xlu0 %v2355, 48
  %v2360 = vpop.permute.xlu0 %2359
  %v2362 = vadd.f32 %v2354, %v2360
  %v2363 = vadd.f32 %v2356, %v2357
  %2365 = vrot.lane.b32.xlu0 %v2363, 48
  %v2366 = vpop.permute.xlu0 %2365
  %v2368 = vadd.f32 %v2362, %v2366
  %2370 = vrot.lane.b32.xlu0 %v2249, 48
  %v2371 = vpop.permute.xlu0 %2370
  %v2373 = vadd.f32 %v2368, %v2371
  %v2374 = vmul.f32 %v2265, 0.5
  %v2375 = vtanh.pop %v2374
  %v2376 = vmul.f32 %v2375, 0.5
  %v2377 = vadd.f32 %v2376, 0.5
  %v2378 = vmul.f32 %v2301, 0.5
  %v2379 = vtanh.pop %v2378
  %v2380 = vmul.f32 %v2379, 0.5
  %v2381 = vadd.f32 %v2380, 0.5
  %v2382 = vmul.f32 %v2373, 0.5
  %v2383 = vtanh.pop %v2382
  %v2384 = vmul.f32 %v2383, 0.5
  %v2385 = vadd.f32 %v2384, 0.5
  %v2386 = vtanh.pop %v2337
  %v2387 = vmul.f32 %v2381, %v2114
  %2389 = vrot.lane.b32.xlu0 %v2386, 96
  %v2390 = vpop.permute.xlu0 %2389
  %v2392 = vmul.f32 %v2377, %v2390
  %2394 = vrot.lane.b32.xlu0 %v2392, 16
  %v2395 = vpop.permute.xlu0 %2394
  %v2397 = vadd.f32 %v2387, %v2395
  %v2398 = vtanh.pop %v2397
  %2400 = vrot.lane.b32.xlu0 %v2398, 32
  %v2401 = vpop.permute.xlu0 %2400
  %v2403 = vmul.f32 %v2385, %v2401
  %2405 = vset.pattern.permute.xlu0 48
  %2406 = vperm.xlu0 %2405, %v2403
  %v2407 = vpop.permute.xlu0 %2406
  %v2409 = vmul.f32 %v2407, %v38
  %v2410 = vmul.f32 %v2407, %v118
  %v2411 = vmul.f32 %v2407, %v198
  %v2412 = vmul.f32 %v2407, %v278
  %2413 = vset.pattern.permute.xlu0 49
  %2414 = vperm.xlu0 %2413, %v2403
  %v2415 = vpop.permute.xlu0 %2414
  %v2417 = vmul.f32 %v2415, %v43
  %v2418 = vmul.f32 %v2415, %v123
  %v2419 = vmul.f32 %v2415, %v203
  %v2420 = vmul.f32 %v2415, %v283
  %2421 = vset.pattern.permute.xlu0 50
  %2422 = vperm.xlu0 %2421, %v2403
  %v2423 = vpop.permute.xlu0 %2422
  %v2425 = vmul.f32 %v2423, %v48
  %v2426 = vmul.f32 %v2423, %v128
  %v2427 = vmul.f32 %v2423, %v208
  %v2428 = vmul.f32 %v2423, %v288
  %2429 = vset.pattern.permute.xlu0 51
  %2430 = vperm.xlu0 %2429, %v2403
  %v2431 = vpop.permute.xlu0 %2430
  %v2433 = vmul.f32 %v2431, %v53
  %v2434 = vmul.f32 %v2431, %v133
  %v2435 = vmul.f32 %v2431, %v213
  %v2436 = vmul.f32 %v2431, %v293
  %2437 = vset.pattern.permute.xlu0 52
  %2438 = vperm.xlu0 %2437, %v2403
  %v2439 = vpop.permute.xlu0 %2438
  %v2441 = vmul.f32 %v2439, %v58
  %v2442 = vmul.f32 %v2439, %v138
  %v2443 = vmul.f32 %v2439, %v218
  %v2444 = vmul.f32 %v2439, %v298
  %2445 = vset.pattern.permute.xlu0 53
  %2446 = vperm.xlu0 %2445, %v2403
  %v2447 = vpop.permute.xlu0 %2446
  %v2449 = vmul.f32 %v2447, %v63
  %v2450 = vmul.f32 %v2447, %v143
  %v2451 = vmul.f32 %v2447, %v223
  %v2452 = vmul.f32 %v2447, %v303
  %2453 = vset.pattern.permute.xlu0 54
  %2454 = vperm.xlu0 %2453, %v2403
  %v2455 = vpop.permute.xlu0 %2454
  %v2457 = vmul.f32 %v2455, %v68
  %v2458 = vmul.f32 %v2455, %v148
  %v2459 = vmul.f32 %v2455, %v228
  %v2460 = vmul.f32 %v2455, %v308
  %2461 = vset.pattern.permute.xlu0 55
  %2462 = vperm.xlu0 %2461, %v2403
  %v2463 = vpop.permute.xlu0 %2462
  %v2465 = vmul.f32 %v2463, %v73
  %v2466 = vmul.f32 %v2463, %v153
  %v2467 = vmul.f32 %v2463, %v233
  %v2468 = vmul.f32 %v2463, %v313
  %2469 = vset.pattern.permute.xlu0 56
  %2470 = vperm.xlu0 %2469, %v2403
  %v2471 = vpop.permute.xlu0 %2470
  %v2473 = vmul.f32 %v2471, %v78
  %v2474 = vmul.f32 %v2471, %v158
  %v2475 = vmul.f32 %v2471, %v238
  %v2476 = vmul.f32 %v2471, %v318
  %2477 = vset.pattern.permute.xlu0 57
  %2478 = vperm.xlu0 %2477, %v2403
  %v2479 = vpop.permute.xlu0 %2478
  %v2481 = vmul.f32 %v2479, %v83
  %v2482 = vmul.f32 %v2479, %v163
  %v2483 = vmul.f32 %v2479, %v243
  %v2484 = vmul.f32 %v2479, %v323
  %2485 = vset.pattern.permute.xlu0 58
  %2486 = vperm.xlu0 %2485, %v2403
  %v2487 = vpop.permute.xlu0 %2486
  %v2489 = vmul.f32 %v2487, %v88
  %v2490 = vmul.f32 %v2487, %v168
  %v2491 = vmul.f32 %v2487, %v248
  %v2492 = vmul.f32 %v2487, %v328
  %2493 = vset.pattern.permute.xlu0 59
  %2494 = vperm.xlu0 %2493, %v2403
  %v2495 = vpop.permute.xlu0 %2494
  %v2497 = vmul.f32 %v2495, %v93
  %v2498 = vmul.f32 %v2495, %v173
  %v2499 = vmul.f32 %v2495, %v253
  %v2500 = vmul.f32 %v2495, %v333
  %2501 = vset.pattern.permute.xlu0 60
  %2502 = vperm.xlu0 %2501, %v2403
  %v2503 = vpop.permute.xlu0 %2502
  %v2505 = vmul.f32 %v2503, %v98
  %v2506 = vmul.f32 %v2503, %v178
  %v2507 = vmul.f32 %v2503, %v258
  %v2508 = vmul.f32 %v2503, %v338
  %2509 = vset.pattern.permute.xlu0 61
  %2510 = vperm.xlu0 %2509, %v2403
  %v2511 = vpop.permute.xlu0 %2510
  %v2513 = vmul.f32 %v2511, %v103
  %v2514 = vmul.f32 %v2511, %v183
  %v2515 = vmul.f32 %v2511, %v263
  %v2516 = vmul.f32 %v2511, %v343
  %2517 = vset.pattern.permute.xlu0 62
  %2518 = vperm.xlu0 %2517, %v2403
  %v2519 = vpop.permute.xlu0 %2518
  %v2521 = vmul.f32 %v2519, %v108
  %v2522 = vmul.f32 %v2519, %v188
  %v2523 = vmul.f32 %v2519, %v268
  %v2524 = vmul.f32 %v2519, %v348
  %2525 = vset.pattern.permute.xlu0 63
  %2526 = vperm.xlu0 %2525, %v2403
  %v2527 = vpop.permute.xlu0 %2526
  %v2529 = vmul.f32 %v2527, %v113
  %v2530 = vmul.f32 %v2527, %v193
  %v2531 = vmul.f32 %v2527, %v273
  %v2532 = vmul.f32 %v2527, %v353
  %v2533 = vadd.f32 %v485, %v2409
  %v2534 = vadd.f32 %v2417, %v2425
  %v2535 = vadd.f32 %v2433, %v2441
  %v2536 = vadd.f32 %v2449, %v2457
  %v2537 = vadd.f32 %v2465, %v2473
  %v2538 = vadd.f32 %v2481, %v2489
  %v2539 = vadd.f32 %v2497, %v2505
  %v2540 = vadd.f32 %v2513, %v2521
  %v2541 = vadd.f32 %v2533, %v2534
  %v2542 = vadd.f32 %v2535, %v2536
  %v2543 = vadd.f32 %v2537, %v2538
  %v2544 = vadd.f32 %v2539, %v2540
  %v2545 = vadd.f32 %v2541, %v2542
  %v2546 = vadd.f32 %v2543, %v2544
  %v2547 = vadd.f32 %v2545, %v2546
  %v2548 = vadd.f32 %v2547, %v2529
  %2550 = vrot.lane.b32.xlu0 %v2410, 16
  %v2551 = vpop.permute.xlu0 %2550
  %v2553 = vadd.f32 %v485, %v2551
  %v2554 = vadd.f32 %v2418, %v2426
  %v2555 = vadd.f32 %v2434, %v2442
  %v2556 = vadd.f32 %v2450, %v2458
  %v2557 = vadd.f32 %v2466, %v2474
  %v2558 = vadd.f32 %v2482, %v2490
  %v2559 = vadd.f32 %v2498, %v2506
  %v2560 = vadd.f32 %v2514, %v2522
  %2562 = vrot.lane.b32.xlu0 %v2554, 16
  %v2563 = vpop.permute.xlu0 %2562
  %v2565 = vadd.f32 %v2553, %v2563
  %v2566 = vadd.f32 %v2555, %v2556
  %v2567 = vadd.f32 %v2557, %v2558
  %v2568 = vadd.f32 %v2559, %v2560
  %2570 = vrot.lane.b32.xlu0 %v2566, 16
  %v2571 = vpop.permute.xlu0 %2570
  %v2573 = vadd.f32 %v2565, %v2571
  %v2574 = vadd.f32 %v2567, %v2568
  %2576 = vrot.lane.b32.xlu0 %v2574, 16
  %v2577 = vpop.permute.xlu0 %2576
  %v2579 = vadd.f32 %v2573, %v2577
  %2581 = vrot.lane.b32.xlu0 %v2530, 16
  %v2582 = vpop.permute.xlu0 %2581
  %v2584 = vadd.f32 %v2579, %v2582
  %2586 = vrot.lane.b32.xlu0 %v2411, 32
  %v2587 = vpop.permute.xlu0 %2586
  %v2589 = vadd.f32 %v485, %v2587
  %v2590 = vadd.f32 %v2419, %v2427
  %v2591 = vadd.f32 %v2435, %v2443
  %v2592 = vadd.f32 %v2451, %v2459
  %v2593 = vadd.f32 %v2467, %v2475
  %v2594 = vadd.f32 %v2483, %v2491
  %v2595 = vadd.f32 %v2499, %v2507
  %v2596 = vadd.f32 %v2515, %v2523
  %2598 = vrot.lane.b32.xlu0 %v2590, 32
  %v2599 = vpop.permute.xlu0 %2598
  %v2601 = vadd.f32 %v2589, %v2599
  %v2602 = vadd.f32 %v2591, %v2592
  %v2603 = vadd.f32 %v2593, %v2594
  %v2604 = vadd.f32 %v2595, %v2596
  %2606 = vrot.lane.b32.xlu0 %v2602, 32
  %v2607 = vpop.permute.xlu0 %2606
  %v2609 = vadd.f32 %v2601, %v2607
  %v2610 = vadd.f32 %v2603, %v2604
  %2612 = vrot.lane.b32.xlu0 %v2610, 32
  %v2613 = vpop.permute.xlu0 %2612
  %v2615 = vadd.f32 %v2609, %v2613
  %2617 = vrot.lane.b32.xlu0 %v2531, 32
  %v2618 = vpop.permute.xlu0 %2617
  %v2620 = vadd.f32 %v2615, %v2618
  %2622 = vrot.lane.b32.xlu0 %v2412, 48
  %v2623 = vpop.permute.xlu0 %2622
  %v2625 = vadd.f32 %v485, %v2623
  %v2626 = vadd.f32 %v2420, %v2428
  %v2627 = vadd.f32 %v2436, %v2444
  %v2628 = vadd.f32 %v2452, %v2460
  %v2629 = vadd.f32 %v2468, %v2476
  %v2630 = vadd.f32 %v2484, %v2492
  %v2631 = vadd.f32 %v2500, %v2508
  %v2632 = vadd.f32 %v2516, %v2524
  %2634 = vrot.lane.b32.xlu0 %v2626, 48
  %v2635 = vpop.permute.xlu0 %2634
  %v2637 = vadd.f32 %v2625, %v2635
  %v2638 = vadd.f32 %v2627, %v2628
  %v2639 = vadd.f32 %v2629, %v2630
  %v2640 = vadd.f32 %v2631, %v2632
  %2642 = vrot.lane.b32.xlu0 %v2638, 48
  %v2643 = vpop.permute.xlu0 %2642
  %v2645 = vadd.f32 %v2637, %v2643
  %v2646 = vadd.f32 %v2639, %v2640
  %2648 = vrot.lane.b32.xlu0 %v2646, 48
  %v2649 = vpop.permute.xlu0 %2648
  %v2651 = vadd.f32 %v2645, %v2649
  %2653 = vrot.lane.b32.xlu0 %v2532, 48
  %v2654 = vpop.permute.xlu0 %2653
  %v2656 = vadd.f32 %v2651, %v2654
  %v2657 = vmul.f32 %v2548, 0.5
  %v2658 = vtanh.pop %v2657
  %v2659 = vmul.f32 %v2658, 0.5
  %v2660 = vadd.f32 %v2659, 0.5
  %v2661 = vmul.f32 %v2584, 0.5
  %v2662 = vtanh.pop %v2661
  %v2663 = vmul.f32 %v2662, 0.5
  %v2664 = vadd.f32 %v2663, 0.5
  %v2665 = vmul.f32 %v2656, 0.5
  %v2666 = vtanh.pop %v2665
  %v2667 = vmul.f32 %v2666, 0.5
  %v2668 = vadd.f32 %v2667, 0.5
  %v2669 = vtanh.pop %v2620
  %v2670 = vmul.f32 %v2664, %v2397
  %2672 = vrot.lane.b32.xlu0 %v2669, 96
  %v2673 = vpop.permute.xlu0 %2672
  %v2675 = vmul.f32 %v2660, %v2673
  %2677 = vrot.lane.b32.xlu0 %v2675, 16
  %v2678 = vpop.permute.xlu0 %2677
  %v2680 = vadd.f32 %v2670, %v2678
  %v2681 = vtanh.pop %v2680
  %2683 = vrot.lane.b32.xlu0 %v2681, 32
  %v2684 = vpop.permute.xlu0 %2683
  %v2686 = vmul.f32 %v2668, %v2684
  %2688 = vrot.lane.b32.xlu0 %v2686, 96
  %v2689 = vpop.permute.xlu0 %2688
  %v2691 = vsel %vm358, %v19, %v2689
  %v2692 = vlaneseq
  %v2693 = vshrl.u32 %v2692, 7
  %v2694 = vsub.s32 0, %v2693
  %v2695 = vrot.slane %v32, %v2694
  %vm2696 = vcmask 261120
  %v2698 = vsel %vm2696, %v2691, 0
  %2700 = vmatprep.subr.mxu0 0.0
  %2701 = vmatpush1.msra.mxu0 0.0
  %2702 = vmatprep.subr.mxu0 0.0
  %2703 = vmatpush1.msra.mxu0 0.0
  %2704 = vmatprep.subr.mxu0 0.0
  %2705 = vmatpush1.msra.mxu0 0.0
  %2706 = vmatprep.subr.mxu0 0.0
  %2707 = vmatpush1.msra.mxu0 0.0
  %2708 = vmatprep.subr.mxu0 0.0
  %2709 = vmatpush1.msra.mxu0 0.0
  %2710 = vmatprep.subr.mxu0 0.0
  %2711 = vmatpush1.msra.mxu0 0.0
  %2712 = vmatprep.subr.mxu0 0.0
  %2713 = vmatpush1.msra.mxu0 0.0
  %2714 = vmatprep.subr.mxu0 0.0
  %2715 = vmatpush1.msra.mxu0 0.0
  %2716 = vmatprep.subr.mxu0 0.0
  %2717 = vmatpush1.msra.mxu0 0.0
  %2718 = vmatprep.subr.mxu0 0.0
  %2719 = vmatpush1.msra.mxu0 0.0
  %2720 = vmatprep.subr.mxu0 0.0
  %2721 = vmatpush1.msra.mxu0 0.0
  %2722 = vmatprep.subr.mxu0 0.0
  %2723 = vmatpush1.msra.mxu0 0.0
  %2724 = vmatprep.subr.mxu0 0.0
  %2725 = vmatpush1.msra.mxu0 %v26
  %2726 = vmatprep.subr.mxu0 0.0
  %2727 = vmatpush1.msra.mxu0 %v25
  %2728 = vmatprep.subr.mxu0 0.0
  %2729 = vmatpush1.msra.mxu0 %v24
  %2730 = vmatprep.subr.mxu0 0.0
  %2731 = vmatpush1.msra.mxu0 %v23
  %2732 = vmatprep.subr.mxu0 0.0
  %2733 = vmatpush2.msra.mxu0 0.0
  %2734 = vmatprep.subr.mxu0 0.0
  %2735 = vmatpush2.msra.mxu0 0.0
  %2736 = vmatprep.subr.mxu0 0.0
  %2737 = vmatpush2.msra.mxu0 0.0
  %2738 = vmatprep.subr.mxu0 0.0
  %2739 = vmatpush2.msra.mxu0 0.0
  %2740 = vmatprep.subr.mxu0 0.0
  %2741 = vmatpush2.msra.mxu0 0.0
  %2742 = vmatprep.subr.mxu0 0.0
  %2743 = vmatpush2.msra.mxu0 0.0
  %2744 = vmatprep.subr.mxu0 0.0
  %2745 = vmatpush2.msra.mxu0 0.0
  %2746 = vmatprep.subr.mxu0 0.0
  %2747 = vmatpush2.msra.mxu0 0.0
  %2748 = vmatprep.subr.mxu0 0.0
  %2749 = vmatpush2.msra.mxu0 0.0
  %2750 = vmatprep.subr.mxu0 0.0
  %2751 = vmatpush2.msra.mxu0 0.0
  %2752 = vmatprep.subr.mxu0 0.0
  %2753 = vmatpush2.msra.mxu0 0.0
  %2754 = vmatprep.subr.mxu0 0.0
  %2755 = vmatpush2.msra.mxu0 0.0
  %2756 = vmatprep.subr.mxu0 0.0
  %2757 = vmatpush2.msra.mxu0 0.0
  %2758 = vmatprep.subr.mxu0 0.0
  %2759 = vmatpush2.msra.mxu0 0.0
  %2760 = vmatprep.subr.mxu0 0.0
  %2761 = vmatpush2.msra.mxu0 0.0
  %2762 = vmatprep.subr.mxu0 0.0
  %2763 = vmatpush2.msra.mxu0 0.0
  %2764 = vmatprep.mubr.f32.mxu0 0.0
  %2765 = vmatmul.mubr.f32.gmra.mxu0 %v2698
  %v2766 = vpop.f32.mrf.mxu0
  %v2767 = vadd.f32 %v2695, %v2766
  %v2768 = vpop.f32.mrf.mxu0
  %2769 = vdwg.mxu0
  %v2770 = vlaneseq
  %v2771 = vshrl.u32 %v2770, 7
  %v2772 = vsub.s32 0, %v2771
  %v2773 = vrot.slane %v33, %v2772
  %v2775 = vsel %vm2696, %v2767, 0
  %2777 = vmatprep.subr.mxu0 0.0
  %2778 = vmatpush1.msra.mxu0 0.0
  %2779 = vmatprep.subr.mxu0 0.0
  %2780 = vmatpush1.msra.mxu0 0.0
  %2781 = vmatprep.subr.mxu0 0.0
  %2782 = vmatpush1.msra.mxu0 0.0
  %2783 = vmatprep.subr.mxu0 0.0
  %2784 = vmatpush1.msra.mxu0 0.0
  %2785 = vmatprep.subr.mxu0 0.0
  %2786 = vmatpush1.msra.mxu0 0.0
  %2787 = vmatprep.subr.mxu0 0.0
  %2788 = vmatpush1.msra.mxu0 0.0
  %2789 = vmatprep.subr.mxu0 0.0
  %2790 = vmatpush1.msra.mxu0 0.0
  %2791 = vmatprep.subr.mxu0 0.0
  %2792 = vmatpush1.msra.mxu0 0.0
  %2793 = vmatprep.subr.mxu0 0.0
  %2794 = vmatpush1.msra.mxu0 0.0
  %2795 = vmatprep.subr.mxu0 0.0
  %2796 = vmatpush1.msra.mxu0 0.0
  %2797 = vmatprep.subr.mxu0 0.0
  %2798 = vmatpush1.msra.mxu0 0.0
  %2799 = vmatprep.subr.mxu0 0.0
  %2800 = vmatpush1.msra.mxu0 0.0
  %2801 = vmatprep.subr.mxu0 0.0
  %2802 = vmatpush1.msra.mxu0 %v30
  %2803 = vmatprep.subr.mxu0 0.0
  %2804 = vmatpush1.msra.mxu0 %v29
  %2805 = vmatprep.subr.mxu0 0.0
  %2806 = vmatpush1.msra.mxu0 %v28
  %2807 = vmatprep.subr.mxu0 0.0
  %2808 = vmatpush1.msra.mxu0 %v27
  %2809 = vmatprep.subr.mxu0 0.0
  %2810 = vmatpush2.msra.mxu0 0.0
  %2811 = vmatprep.subr.mxu0 0.0
  %2812 = vmatpush2.msra.mxu0 0.0
  %2813 = vmatprep.subr.mxu0 0.0
  %2814 = vmatpush2.msra.mxu0 0.0
  %2815 = vmatprep.subr.mxu0 0.0
  %2816 = vmatpush2.msra.mxu0 0.0
  %2817 = vmatprep.subr.mxu0 0.0
  %2818 = vmatpush2.msra.mxu0 0.0
  %2819 = vmatprep.subr.mxu0 0.0
  %2820 = vmatpush2.msra.mxu0 0.0
  %2821 = vmatprep.subr.mxu0 0.0
  %2822 = vmatpush2.msra.mxu0 0.0
  %2823 = vmatprep.subr.mxu0 0.0
  %2824 = vmatpush2.msra.mxu0 0.0
  %2825 = vmatprep.subr.mxu0 0.0
  %2826 = vmatpush2.msra.mxu0 0.0
  %2827 = vmatprep.subr.mxu0 0.0
  %2828 = vmatpush2.msra.mxu0 0.0
  %2829 = vmatprep.subr.mxu0 0.0
  %2830 = vmatpush2.msra.mxu0 0.0
  %2831 = vmatprep.subr.mxu0 0.0
  %2832 = vmatpush2.msra.mxu0 0.0
  %2833 = vmatprep.subr.mxu0 0.0
  %2834 = vmatpush2.msra.mxu0 0.0
  %2835 = vmatprep.subr.mxu0 0.0
  %2836 = vmatpush2.msra.mxu0 0.0
  %2837 = vmatprep.subr.mxu0 0.0
  %2838 = vmatpush2.msra.mxu0 0.0
  %2839 = vmatprep.subr.mxu0 0.0
  %2840 = vmatpush2.msra.mxu0 0.0
  %2841 = vmatprep.mubr.f32.mxu0 0.0
  %2842 = vmatmul.mubr.f32.gmra.mxu0 %v2775
  %v2843 = vpop.f32.mrf.mxu0
  %v2844 = vadd.f32 %v2773, %v2843
  %v2845 = vpop.f32.mrf.mxu0
  %2846 = vdwg.mxu0
  %vm2847 = vcmask 15360
  %v2848 = vsel %vm2847, %v2844, -inf
  %2849 = vmax.xlane.f32.xlu0 %v2848
  %v2850 = vpop.xlane.xlu0 %2849
  %v2851 = vsub.f32 %v2844, %v2850
  %v2852 = vmul.f32 %v2851, 1.442695
  %v2853 = vpow.pop %v2852
  %v2854 = vsel %vm2847, %v2853, 0.0
  %2855 = vadd.xlane.f32.xlu0 %v2854
  %v2856 = vpop.xlane.xlu0 %2855
  %v2857 = vrcp.pop %v2856
  %v2858 = vmul.f32 %v2853, %v2857
  %v2859 = vmax.f32 %v2844, 0.0
  %v2860 = vmul.f32 %v2844, %v20
  %v2861 = vsub.f32 %v2859, %v2860
  %v2862 = vand.u32 2147483647, %v2844
  %v2863 = vsub.f32 0.0, %v2862
  %v2864 = vmul.f32 %v2863, 1.442695
  %v2865 = vpow.pop %v2864
  %v2866 = vadd.f32 %v2865, 1.0
  %v2867 = vlog2.pop %v2866
  %v2868 = vmul.f32 %v2867, 0.6931472
  %v2869 = vmul.f32 -0.5, %v2865
  %v2870 = vadd.f32 %v2869, 1.0
  %v2871 = vmul.f32 %v2870, %v2865
  %v2872 = vand.u32 2147483647, %v2865
  %vm2873 = vcmp.lt.f32.partialorder %v2872, 0.0004427343
  %v2874 = vsel %vm2873, %v2871, %v2868
  %v2875 = vadd.f32 %v2861, %v2874
  %v2876 = vlaneseq
  %v2877 = vshrl.u32 %v2876, 7
  %vm2878 = vcmp.lt.s32.totalorder %v2877, 2
  %v2879 = vsel %vm2878, %v2875, 0.0
  %v2880 = vsel %vm2847, %v2879, 0.0
  %2881 = vadd.xlane.f32.xlu0 %v2880
  %v2882 = vpop.xlane.xlu0 %2881
  %v2883 = vrot.slane %v2882, 4
  %v2884 = vadd.f32 %v2882, %v2883
  %v2885 = vrot.slane %v2884, 2
  %v2886 = vadd.f32 %v2884, %v2885
  %v2887 = vrot.slane %v2886, 1
  %v2888 = vadd.f32 %v2886, %v2887
  %s2889 = vtos %v2888
  %v2890 = vstv %s2889
  %v2891 = vmul.f32 %v2890, 0.25
  %v2892 = vlaneseq
  %v2893 = vand.u32 %v2892, 127
  %v2894 = vsel %vm2847, %v2858, -inf
  %2895 = vmax.xlane.f32.xlu0 %v2894
  %v2896 = vpop.xlane.xlu0 %2895
  %vm2897 = vcmp.eq.f32.partialorder %v2858, %v2896
  %v2898 = vsel %vm2897, %v2893, 2
  %v2899 = vsel %vm2847, %v2898, 2147483647
  %v2900 = vand.u32 %v2899, 65535
  %v2901 = vshra.s32 %v2899, 16
  %v2902 = vcvt.s32.f32 %v2900
  %v2903 = vcvt.s32.f32 %v2901
  %2904 = vmin.xlane.f32.xlu0 %v2903
  %v2905 = vpop.xlane.xlu0 %2904
  %vm2906 = vcmp.eq.f32.partialorder %v2903, %v2905
  %v2907 = vsel %vm2906, %v2902, inf
  %2908 = vmin.xlane.f32.xlu0 %v2907
  %v2909 = vpop.xlane.xlu0 %2908
  %v2910 = vcvt.f32.s32 %v2909
  %v2911 = vcvt.f32.s32 %v2905
  %v2912 = vshll.u32 %v2911, 16
  %v2913 = vadd.s32 %v2912, %v2910
  %v2914 = vcvt.s32.f32 %v2913
  %2916 = vrot.lane.b32.xlu0 %v2858, 32
  %v2917 = vpop.permute.xlu0 %2916
  %v2919 = vsel %vm2696, %v2767, %v2917
  %vm2920 = vcmask 277504
  %v2921 = vsel %vm2920, %v2919, %v2914
  %vm2922 = vcmask 285696
  %v2923 = vsel %vm2922, %v2921, %v2891
  %vm2924 = vcmask 293888
  %v2925 = vsel %vm2924, %v2923, 0.0
  %2926 = vst [vmem:[%s2] sm:$0xff] %v2925
  // Predicated region
  $region10: #{mix_model_forward.1} parent=0 // pred_check
    _
  $region11: #{mix_model_forward.1} parent=0 // pred_check_branch
    %2928 = sbr.rel (0) target = $region13
  $region12: #{mix_model_forward.1} parent=0 // pred_region
    _
  $region13: #{mix_model_forward.1} parent=0 // pred_fallthru
    _
  // Predicated region
  $region14: #{mix_model_forward.1} parent=0 // pred_check
    _
  $region15: #{mix_model_forward.1} parent=0 // pred_check_branch
    %2930 = sbr.rel (0) target = $region17
  $region16: #{mix_model_forward.1} parent=0 // pred_region
    _
  $region17: #{mix_model_forward.1} parent=0 // pred_fallthru
    _

</llo_original>
